<compile_context>
chip_gen: v7x
topology: tpu7x:2x2x1
jax: 0.10.0
libtpu: 0.0.40
codegen_flags: <defaults>
</compile_context>

<pallas_src>
import math

import jax
import jax.numpy as jnp
import numpy as np
from jax.experimental import pallas as pl
from jax.experimental.pallas import tpu as pltpu

_PARALLEL = pltpu.CompilerParams(dimension_semantics=("parallel",))
_INV_SQRT2 = float(1.0 / math.sqrt(2.0))


# ------------------------------------------------------------ block specs ---

def _blk(shape):
    zeros = (0,) * (len(shape) - 1)
    return pl.BlockSpec(shape, lambda n: (n,) + zeros)


def _rep(shape):
    zeros = (0,) * len(shape)
    return pl.BlockSpec(shape, lambda n: zeros)


# --------------------------------------------------------- kernel helpers ---

def _inorm_lrelu(v, g_ref, b_ref):
    # v: (M, C) f32.  InstanceNorm (two-pass variance) + LeakyReLU(0.2).
    if g_ref is not None:
        mean = jnp.mean(v, axis=0, keepdims=True)
        vc = v - mean
        var = jnp.mean(vc * vc, axis=0, keepdims=True)
        v = vc * jax.lax.rsqrt(var + 1e-5) * g_ref[...] + b_ref[...]
    return jnp.where(v >= 0.0, v, 0.2 * v)


def _conv3x3(ap_ref, w_ref, b_ref, H, W, Cin, Cout):
    # ap_ref: (H+2, W+2, Cin) f32 VMEM halo scratch (zero border).
    # w_ref : (9, Cin, Cout) bf16.  b_ref: (1, Cout) f32.
    # Returns (H*W, Cout) f32.  Nine large-M bf16 MXU matmuls, f32 accumulate.
    acc = jnp.zeros((H * W, Cout), jnp.float32)
    for k in range(9):
        dy, dx = k // 3, k % 3
        slab = ap_ref[dy:dy + H, dx:dx + W, :].reshape(H * W, Cin)
        acc = acc + jnp.dot(slab.astype(jnp.bfloat16), w_ref[k],
                            preferred_element_type=jnp.float32)
    return acc + b_ref[...]


# ---------------------------------------------------------------- kernels ---

def _make_kernel_a(normalize, downsample, H, W, C):
    HW = H * W
    Ho = H // 2 if downsample else H
    Wo = W // 2 if downsample else W

    def kernel(*refs):
        it = iter(refs)
        x_ref = next(it)                                  # (1, H, W, C) f32
        g1 = bt1 = g2 = bt2 = None
        if normalize:
            g1, bt1, g2, bt2 = next(it), next(it), next(it), next(it)
        w1_ref, b1_ref = next(it), next(it)               # (9,C,C) bf16 / (1,C)
        p_ref = next(it) if downsample else None          # (HoWo, HW) bf16
        o_ref, ap_ref = next(it), next(it)                # out bf16 / scratch

        # norm1 + LeakyReLU on the whole block (single reductions / stores).
        a = _inorm_lrelu(x_ref[0].reshape(HW, C), g1, bt1)

        # In-kernel zero halo (replaces wrapper-side jnp.pad) -> conv1.
        ap_ref[...] = jnp.zeros_like(ap_ref)
        ap_ref[1:H + 1, 1:W + 1, :] = a.reshape(H, W, C)
        r = _conv3x3(ap_ref, w1_ref, b1_ref, H, W, C, C)  # (HW, C) f32

        # Fused 2x2 avg-pool (one matmul against a constant 0.25 matrix).
        if downsample:
            r = jnp.dot(p_ref[...], r.astype(jnp.bfloat16),
                        preferred_element_type=jnp.float32)   # (HoWo, C)

        # norm2 + LeakyReLU epilogue; emit bf16 activation for conv2.
        a2 = _inorm_lrelu(r, g2, bt2)
        o_ref[0] = a2.reshape(Ho, Wo, C).astype(o_ref.dtype)

    return kernel


def _make_kernel_b(downsample, learned_sc, H, W, Cin, Cout):
    Ho = H // 2 if downsample else H
    Wo = W // 2 if downsample else W
    HoWo, HW = Ho * Wo, H * W

    def kernel(*refs):
        it = iter(refs)
        a2_ref, x_ref = next(it), next(it)        # (1,Ho,Wo,Cin) bf16 / x f32
        w2_ref, b2_ref = next(it), next(it)       # (9,Cin,Cout) bf16 / (1,Cout)
        wsc_ref = next(it) if learned_sc else None
        p_ref = next(it) if downsample else None
        o_ref, ap_ref = next(it), next(it)

        # Residual: conv2 over the already-activated a2 (zero halo in VMEM).
        ap_ref[...] = jnp.zeros_like(ap_ref)
        ap_ref[1:Ho + 1, 1:Wo + 1, :] = a2_ref[0].astype(jnp.float32)
        r = _conv3x3(ap_ref, w2_ref, b2_ref, Ho, Wo, Cin, Cout)   # (HoWo,Cout)

        # Shortcut: [1x1 conv] -> [2x2 avg-pool], fully fused.
        s = x_ref[0].reshape(HW, Cin)
        if learned_sc:
            s = jnp.dot(s.astype(jnp.bfloat16), wsc_ref[...],
                        preferred_element_type=jnp.float32)       # (HW, Cout)
        if downsample:
            s = jnp.dot(p_ref[...], s.astype(jnp.bfloat16),
                        preferred_element_type=jnp.float32)       # (HoWo,Cout)

        out = (s + r) * _INV_SQRT2
        o_ref[0] = out.reshape(Ho, Wo, Cout).astype(o_ref.dtype)

    return kernel


# --------------------------------------------------------------- wrapper ----

def res_blk_forward(params, x_nchw, *, normalize, downsample, learned_sc):
    """ResBlk.forward — input/output NCHW (PyTorch convention)."""
    x = jnp.transpose(x_nchw, (0, 2, 3, 1)).astype(jnp.float32)   # NHWC
    # TODO(synk): chain ResBlks in NHWC so this transpose happens once per
    # network instead of once per block.
    N, H, W, Cin = x.shape
    Cout = params['w2'].shape[0]
    Ho = H // 2 if downsample else H
    Wo = W // 2 if downsample else W

    # Weight prep (host-side glue): OIHW -> (9, Cin, Cout) bf16.
    w1 = jnp.transpose(params['w1'], (2, 3, 1, 0)).reshape(9, Cin, Cin)
    w1 = w1.astype(jnp.bfloat16)
    w2 = jnp.transpose(params['w2'], (2, 3, 1, 0)).reshape(9, Cin, Cout)
    w2 = w2.astype(jnp.bfloat16)
    b1 = params['b1'].reshape(1, Cin).astype(jnp.float32)
    b2 = params['b2'].reshape(1, Cout).astype(jnp.float32)

    pool_mat = None
    if downsample:
        P = np.zeros((Ho * Wo, H * W), np.float32)
        for ho in range(Ho):
            for wo in range(Wo):
                for dy in range(2):
                    for dx in range(2):
                        P[ho * Wo + wo, (2 * ho + dy) * W + 2 * wo + dx] = 0.25
        pool_mat = jnp.asarray(P, dtype=jnp.bfloat16)

    # ---- kernel A: [norm1]+lrelu -> conv1 -> [pool] -> [norm2]+lrelu ----
    a_in, a_specs = [x], [_blk((1, H, W, Cin))]
    if normalize:
        for name in ('g1', 'bt1', 'g2', 'bt2'):
            a_in.append(params[name].reshape(1, Cin).astype(jnp.float32))
            a_specs.append(_rep((1, Cin)))
    a_in += [w1, b1]
    a_specs += [_rep((9, Cin, Cin)), _rep((1, Cin))]
    if downsample:
        a_in.append(pool_mat)
        a_specs.append(_rep((Ho * Wo, H * W)))

    a2 = pl.pallas_call(
        _make_kernel_a(normalize, downsample, H, W, Cin),
        out_shape=jax.ShapeDtypeStruct((N, Ho, Wo, Cin), jnp.bfloat16),
        grid=(N,),
        in_specs=a_specs,
        out_specs=_blk((1, Ho, Wo, Cin)),
        scratch_shapes=[pltpu.VMEM((H + 2, W + 2, Cin), jnp.float32)],
        compiler_params=_PARALLEL,
    )(*a_in)

    # ---- kernel B: conv2 + shortcut([1x1] -> [pool]) + add/sqrt(2) ----
    b_in = [a2, x, w2, b2]
    b_specs = [_blk((1, Ho, Wo, Cin)), _blk((1, H, W, Cin)),
               _rep((9, Cin, Cout)), _rep((1, Cout))]
    if learned_sc:
        wsc = jnp.transpose(params['wsc'][:, :, 0, 0], (1, 0))
        b_in.append(wsc.astype(jnp.bfloat16))
        b_specs.append(_rep((Cin, Cout)))
    if downsample:
        b_in.append(pool_mat)
        b_specs.append(_rep((Ho * Wo, H * W)))

    out = pl.pallas_call(
        _make_kernel_b(downsample, learned_sc, H, W, Cin, Cout),
        out_shape=jax.ShapeDtypeStruct((N, Ho, Wo, Cout), jnp.float32),
        grid=(N,),
        in_specs=b_specs,
        out_specs=_blk((1, Ho, Wo, Cout)),
        scratch_shapes=[pltpu.VMEM((Ho + 2, Wo + 2, Cin), jnp.float32)],
        compiler_params=_PARALLEL,
    )(*b_in)

    return jnp.transpose(out, (0, 3, 1, 2))                       # NCHW


# --------------------------------------------------- pure-JAX reference -----

def ref_forward(params, x, normalize, downsample, learned_sc):
    hp = jax.lax.Precision.HIGHEST

    def conv(x, w, b=None, pad=1):
        y = jax.lax.conv_general_dilated(
            x, w, (1, 1), [(pad, pad), (pad, pad)],
            dimension_numbers=('NCHW', 'OIHW', 'NCHW'), precision=hp)
        if b is not None:
            y = y + b[None, :, None, None]
        return y

    def inorm(x, g, b):
        m = x.mean(axis=(2, 3), keepdims=True)
        v = ((x - m) ** 2).mean(axis=(2, 3), keepdims=True)
        return (x - m) / jnp.sqrt(v + 1e-5) * g[None, :, None, None] \
            + b[None, :, None, None]

    def lrelu_(x):
        return jnp.where(x >= 0, x, 0.2 * x)

    def pool(x):
        N, C, H, W = x.shape
        return x.reshape(N, C, H // 2, 2, W // 2, 2).mean(axis=(3, 5))

    r = x
    if normalize:
        r = inorm(r, params['g1'], params['bt1'])
    r = lrelu_(r)
    r = conv(r, params['w1'], params['b1'])
    if downsample:
        r = pool(r)
    if normalize:
        r = inorm(r, params['g2'], params['bt2'])
    r = lrelu_(r)
    r = conv(r, params['w2'], params['b2'])

    s = x
    if learned_sc:
        s = conv(s, params['wsc'], None, pad=0)
    if downsample:
        s = pool(s)
    return (s + r) / math.sqrt(2.0)


# -------------------------------------------------------------------- main --

if __name__ == "__main__":
    N, dim_in, dim_out, H, W = 2, 4, 8, 16, 16
    normalize, downsample = True, True
    learned_sc = dim_in != dim_out

    key = jax.random.PRNGKey(0)
    ks = jax.random.split(key, 10)
    params = {
        'w1': jax.random.normal(ks[0], (dim_in, dim_in, 3, 3), jnp.float32) * 0.2,
        'b1': jax.random.normal(ks[1], (dim_in,), jnp.float32) * 0.1,
        'w2': jax.random.normal(ks[2], (dim_out, dim_in, 3, 3), jnp.float32) * 0.2,
        'b2': jax.random.normal(ks[3], (dim_out,), jnp.float32) * 0.1,
        'g1': 1.0 + 0.1 * jax.random.normal(ks[4], (dim_in,), jnp.float32),
        'bt1': 0.1 * jax.random.normal(ks[5], (dim_in,), jnp.float32),
        'g2': 1.0 + 0.1 * jax.random.normal(ks[6], (dim_in,), jnp.float32),
        'bt2': 0.1 * jax.random.normal(ks[7], (dim_in,), jnp.float32),
        'wsc': jax.random.normal(ks[8], (dim_out, dim_in, 1, 1), jnp.float32) * 0.2,
    }
    x = jax.random.normal(ks[9], (N, dim_in, H, W), jnp.float32)   # NCHW

    fwd = jax.jit(res_blk_forward,
                  static_argnames=('normalize', 'downsample', 'learned_sc'))
    out = fwd(params, x, normalize=normalize, downsample=downsample,
              learned_sc=learned_sc)
    out = jax.block_until_ready(out)

    ref = ref_forward(params, x, normalize, downsample, learned_sc)
    assert out.shape == ref.shape == (N, dim_out, H // 2, W // 2), out.shape
    err = float(jnp.max(jnp.abs(out - ref)))
    # bf16 MXU path vs f32/HIGHEST reference: observed max-abs err ~1e-2 scale.
    assert err < 1e-1, f"max abs err {err}"

    print("KERNEL_OK")
</pallas_src>

<mosaic_0001>
module attributes {stable_mosaic.version = 11 : i64} {
  func.func @kernel(%arg0: i32, %arg1: memref<1x16x16x4xf32, #tpu.memory_space<vmem>>, %arg2: memref<1x4xf32, #tpu.memory_space<vmem>>, %arg3: memref<1x4xf32, #tpu.memory_space<vmem>>, %arg4: memref<1x4xf32, #tpu.memory_space<vmem>>, %arg5: memref<1x4xf32, #tpu.memory_space<vmem>>, %arg6: memref<9x4x4xbf16, #tpu.memory_space<vmem>>, %arg7: memref<1x4xf32, #tpu.memory_space<vmem>>, %arg8: memref<64x256xbf16, #tpu.memory_space<vmem>>, %arg9: memref<1x8x8x4xbf16, #tpu.memory_space<vmem>>, %arg10: memref<18x18x4xf32, #tpu.memory_space<vmem>>) attributes {dimension_semantics = [#tpu.dimension_semantics<parallel>], iteration_bounds = array<i64: 2>, scalar_prefetch = 0 : i64, scratch_operands = 1 : i64, tpu.core_type = #tpu.core_type<tc>, window_params = [{transform_indices = @transform_0, window_bounds = array<i64: 1, 16, 16, 4>}, {pipeline_mode = #tpu.pipeline_mode<synchronous>, transform_indices = @transform_1, window_bounds = array<i64: 1, 4>}, {pipeline_mode = #tpu.pipeline_mode<synchronous>, transform_indices = @transform_2, window_bounds = array<i64: 1, 4>}, {pipeline_mode = #tpu.pipeline_mode<synchronous>, transform_indices = @transform_3, window_bounds = array<i64: 1, 4>}, {pipeline_mode = #tpu.pipeline_mode<synchronous>, transform_indices = @transform_4, window_bounds = array<i64: 1, 4>}, {pipeline_mode = #tpu.pipeline_mode<synchronous>, transform_indices = @transform_5, window_bounds = array<i64: 9, 4, 4>}, {pipeline_mode = #tpu.pipeline_mode<synchronous>, transform_indices = @transform_6, window_bounds = array<i64: 1, 4>}, {pipeline_mode = #tpu.pipeline_mode<synchronous>, transform_indices = @transform_7, window_bounds = array<i64: 64, 256>}, {transform_indices = @transform_8, window_bounds = array<i64: 1, 8, 8, 4>}]} {
    %c0 = arith.constant 0 : index
    %c0_0 = arith.constant 0 : index
    %c0_1 = arith.constant 0 : index
    %c0_2 = arith.constant 0 : index
    %0 = vector.load %arg1[%c0, %c0_0, %c0_1, %c0_2] : memref<1x16x16x4xf32, #tpu.memory_space<vmem>>, vector<1x16x16x4xf32>
    %1 = vector.shape_cast %0 : vector<1x16x16x4xf32> to vector<16x16x4xf32>
    %2 = vector.shape_cast %1 : vector<16x16x4xf32> to vector<256x4xf32>
    %cst = arith.constant dense<0.000000e+00> : vector<4xf32>
    %3 = vector.multi_reduction <add>, %2, %cst [0] : vector<256x4xf32> to vector<4xf32>
    %4 = vector.shape_cast %3 : vector<4xf32> to vector<1x4xf32>
    %cst_3 = arith.constant 2.560000e+02 : f32
    %5 = vector.broadcast %cst_3 : f32 to vector<1x4xf32>
    %6 = arith.divf %4, %5 : vector<1x4xf32>
    %7 = vector.broadcast %6 : vector<1x4xf32> to vector<256x4xf32>
    %8 = arith.subf %2, %7 : vector<256x4xf32>
    %9 = arith.mulf %8, %8 : vector<256x4xf32>
    %cst_4 = arith.constant dense<0.000000e+00> : vector<4xf32>
    %10 = vector.multi_reduction <add>, %9, %cst_4 [0] : vector<256x4xf32> to vector<4xf32>
    %11 = vector.shape_cast %10 : vector<4xf32> to vector<1x4xf32>
    %cst_5 = arith.constant 2.560000e+02 : f32
    %12 = vector.broadcast %cst_5 : f32 to vector<1x4xf32>
    %13 = arith.divf %11, %12 : vector<1x4xf32>
    %cst_6 = arith.constant 9.99999974E-6 : f32
    %14 = vector.broadcast %cst_6 : f32 to vector<1x4xf32>
    %15 = arith.addf %13, %14 : vector<1x4xf32>
    %16 = math.rsqrt %15 : vector<1x4xf32>
    %17 = vector.broadcast %16 : vector<1x4xf32> to vector<256x4xf32>
    %18 = arith.mulf %8, %17 : vector<256x4xf32>
    %c0_7 = arith.constant 0 : index
    %c0_8 = arith.constant 0 : index
    %19 = vector.load %arg2[%c0_7, %c0_8] : memref<1x4xf32, #tpu.memory_space<vmem>>, vector<1x4xf32>
    %20 = vector.broadcast %19 : vector<1x4xf32> to vector<256x4xf32>
    %21 = arith.mulf %18, %20 : vector<256x4xf32>
    %c0_9 = arith.constant 0 : index
    %c0_10 = arith.constant 0 : index
    %22 = vector.load %arg3[%c0_9, %c0_10] : memref<1x4xf32, #tpu.memory_space<vmem>>, vector<1x4xf32>
    %23 = vector.broadcast %22 : vector<1x4xf32> to vector<256x4xf32>
    %24 = arith.addf %21, %23 : vector<256x4xf32>
    %cst_11 = arith.constant 0.000000e+00 : f32
    %25 = vector.broadcast %cst_11 : f32 to vector<256x4xf32>
    %26 = arith.cmpf oge, %24, %25 : vector<256x4xf32>
    %cst_12 = arith.constant 2.000000e-01 : f32
    %27 = vector.broadcast %cst_12 : f32 to vector<256x4xf32>
    %28 = arith.mulf %27, %24 : vector<256x4xf32>
    %29 = arith.select %26, %24, %28 : vector<256x4xi1>, vector<256x4xf32>
    %cst_13 = arith.constant 0.000000e+00 : f32
    %30 = vector.broadcast %cst_13 : f32 to vector<18x18x4xf32>
    %c0_14 = arith.constant 0 : index
    %c0_15 = arith.constant 0 : index
    %c0_16 = arith.constant 0 : index
    %31 = vector.load %arg10[%c0_14, %c0_15, %c0_16] : memref<18x18x4xf32, #tpu.memory_space<vmem>>, vector<18x18x4xf32>
    tpu.vector_store %arg10[%c0_14, %c0_15, %c0_16], %30 {strides = array<i32>} : memref<18x18x4xf32, #tpu.memory_space<vmem>>, vector<18x18x4xf32>,
    %32 = vector.shape_cast %29 : vector<256x4xf32> to vector<16x16x4xf32>
    %c1 = arith.constant 1 : index
    %c1_17 = arith.constant 1 : index
    %c0_18 = arith.constant 0 : index
    %33 = vector.load %arg10[%c1, %c1_17, %c0_18] : memref<18x18x4xf32, #tpu.memory_space<vmem>>, vector<16x16x4xf32>
    tpu.vector_store %arg10[%c1, %c1_17, %c0_18], %32 {strides = array<i32>} : memref<18x18x4xf32, #tpu.memory_space<vmem>>, vector<16x16x4xf32>,
    %cst_19 = arith.constant 0.000000e+00 : f32
    %34 = vector.broadcast %cst_19 : f32 to vector<256x4xf32>
    %c0_20 = arith.constant 0 : index
    %c0_21 = arith.constant 0 : index
    %c0_22 = arith.constant 0 : index
    %35 = vector.load %arg10[%c0_20, %c0_21, %c0_22] : memref<18x18x4xf32, #tpu.memory_space<vmem>>, vector<16x16x4xf32>
    %36 = vector.shape_cast %35 : vector<16x16x4xf32> to vector<256x4xf32>
    %37 = arith.truncf %36 : vector<256x4xf32> to vector<256x4xbf16>
    %c0_23 = arith.constant 0 : index
    %c0_24 = arith.constant 0 : index
    %c0_25 = arith.constant 0 : index
    %38 = vector.load %arg6[%c0_23, %c0_24, %c0_25] : memref<9x4x4xbf16, #tpu.memory_space<vmem>>, vector<1x4x4xbf16>
    %39 = vector.shape_cast %38 : vector<1x4x4xbf16> to vector<4x4xbf16>
    %cst_26 = arith.constant dense<0.000000e+00> : vector<256x4xf32>
    %40 = tpu.matmul %37, %39, %cst_26 {dimension_numbers = #tpu.dot_dimension_numbers<[1], [0], [0], [1], [0, 0, 1, 1], [], []>} : vector<256x4xbf16>, vector<4x4xbf16>, vector<256x4xf32> -> vector<256x4xf32>
    %41 = arith.addf %34, %40 : vector<256x4xf32>
    %c0_27 = arith.constant 0 : index
    %c1_28 = arith.constant 1 : index
    %c0_29 = arith.constant 0 : index
    %42 = vector.load %arg10[%c0_27, %c1_28, %c0_29] : memref<18x18x4xf32, #tpu.memory_space<vmem>>, vector<16x16x4xf32>
    %43 = vector.shape_cast %42 : vector<16x16x4xf32> to vector<256x4xf32>
    %44 = arith.truncf %43 : vector<256x4xf32> to vector<256x4xbf16>
    %c1_30 = arith.constant 1 : index
    %c0_31 = arith.constant 0 : index
    %c0_32 = arith.constant 0 : index
    %45 = vector.load %arg6[%c1_30, %c0_31, %c0_32] : memref<9x4x4xbf16, #tpu.memory_space<vmem>>, vector<1x4x4xbf16>
    %46 = vector.shape_cast %45 : vector<1x4x4xbf16> to vector<4x4xbf16>
    %cst_33 = arith.constant dense<0.000000e+00> : vector<256x4xf32>
    %47 = tpu.matmul %44, %46, %cst_33 {dimension_numbers = #tpu.dot_dimension_numbers<[1], [0], [0], [1], [0, 0, 1, 1], [], []>} : vector<256x4xbf16>, vector<4x4xbf16>, vector<256x4xf32> -> vector<256x4xf32>
    %48 = arith.addf %41, %47 : vector<256x4xf32>
    %c0_34 = arith.constant 0 : index
    %c2 = arith.constant 2 : index
    %c0_35 = arith.constant 0 : index
    %49 = vector.load %arg10[%c0_34, %c2, %c0_35] : memref<18x18x4xf32, #tpu.memory_space<vmem>>, vector<16x16x4xf32>
    %50 = vector.shape_cast %49 : vector<16x16x4xf32> to vector<256x4xf32>
    %51 = arith.truncf %50 : vector<256x4xf32> to vector<256x4xbf16>
    %c2_36 = arith.constant 2 : index
    %c0_37 = arith.constant 0 : index
    %c0_38 = arith.constant 0 : index
    %52 = vector.load %arg6[%c2_36, %c0_37, %c0_38] : memref<9x4x4xbf16, #tpu.memory_space<vmem>>, vector<1x4x4xbf16>
    %53 = vector.shape_cast %52 : vector<1x4x4xbf16> to vector<4x4xbf16>
    %cst_39 = arith.constant dense<0.000000e+00> : vector<256x4xf32>
    %54 = tpu.matmul %51, %53, %cst_39 {dimension_numbers = #tpu.dot_dimension_numbers<[1], [0], [0], [1], [0, 0, 1, 1], [], []>} : vector<256x4xbf16>, vector<4x4xbf16>, vector<256x4xf32> -> vector<256x4xf32>
    %55 = arith.addf %48, %54 : vector<256x4xf32>
    %c1_40 = arith.constant 1 : index
    %c0_41 = arith.constant 0 : index
    %c0_42 = arith.constant 0 : index
    %56 = vector.load %arg10[%c1_40, %c0_41, %c0_42] : memref<18x18x4xf32, #tpu.memory_space<vmem>>, vector<16x16x4xf32>
    %57 = vector.shape_cast %56 : vector<16x16x4xf32> to vector<256x4xf32>
    %58 = arith.truncf %57 : vector<256x4xf32> to vector<256x4xbf16>
    %c3 = arith.constant 3 : index
    %c0_43 = arith.constant 0 : index
    %c0_44 = arith.constant 0 : index
    %59 = vector.load %arg6[%c3, %c0_43, %c0_44] : memref<9x4x4xbf16, #tpu.memory_space<vmem>>, vector<1x4x4xbf16>
    %60 = vector.shape_cast %59 : vector<1x4x4xbf16> to vector<4x4xbf16>
    %cst_45 = arith.constant dense<0.000000e+00> : vector<256x4xf32>
    %61 = tpu.matmul %58, %60, %cst_45 {dimension_numbers = #tpu.dot_dimension_numbers<[1], [0], [0], [1], [0, 0, 1, 1], [], []>} : vector<256x4xbf16>, vector<4x4xbf16>, vector<256x4xf32> -> vector<256x4xf32>
    %62 = arith.addf %55, %61 : vector<256x4xf32>
    %c1_46 = arith.constant 1 : index
    %c1_47 = arith.constant 1 : index
    %c0_48 = arith.constant 0 : index
    %63 = vector.load %arg10[%c1_46, %c1_47, %c0_48] : memref<18x18x4xf32, #tpu.memory_space<vmem>>, vector<16x16x4xf32>
    %64 = vector.shape_cast %63 : vector<16x16x4xf32> to vector<256x4xf32>
    %65 = arith.truncf %64 : vector<256x4xf32> to vector<256x4xbf16>
    %c4 = arith.constant 4 : index
    %c0_49 = arith.constant 0 : index
    %c0_50 = arith.constant 0 : index
    %66 = vector.load %arg6[%c4, %c0_49, %c0_50] : memref<9x4x4xbf16, #tpu.memory_space<vmem>>, vector<1x4x4xbf16>
    %67 = vector.shape_cast %66 : vector<1x4x4xbf16> to vector<4x4xbf16>
    %cst_51 = arith.constant dense<0.000000e+00> : vector<256x4xf32>
    %68 = tpu.matmul %65, %67, %cst_51 {dimension_numbers = #tpu.dot_dimension_numbers<[1], [0], [0], [1], [0, 0, 1, 1], [], []>} : vector<256x4xbf16>, vector<4x4xbf16>, vector<256x4xf32> -> vector<256x4xf32>
    %69 = arith.addf %62, %68 : vector<256x4xf32>
    %c1_52 = arith.constant 1 : index
    %c2_53 = arith.constant 2 : index
    %c0_54 = arith.constant 0 : index
    %70 = vector.load %arg10[%c1_52, %c2_53, %c0_54] : memref<18x18x4xf32, #tpu.memory_space<vmem>>, vector<16x16x4xf32>
    %71 = vector.shape_cast %70 : vector<16x16x4xf32> to vector<256x4xf32>
    %72 = arith.truncf %71 : vector<256x4xf32> to vector<256x4xbf16>
    %c5 = arith.constant 5 : index
    %c0_55 = arith.constant 0 : index
    %c0_56 = arith.constant 0 : index
    %73 = vector.load %arg6[%c5, %c0_55, %c0_56] : memref<9x4x4xbf16, #tpu.memory_space<vmem>>, vector<1x4x4xbf16>
    %74 = vector.shape_cast %73 : vector<1x4x4xbf16> to vector<4x4xbf16>
    %cst_57 = arith.constant dense<0.000000e+00> : vector<256x4xf32>
    %75 = tpu.matmul %72, %74, %cst_57 {dimension_numbers = #tpu.dot_dimension_numbers<[1], [0], [0], [1], [0, 0, 1, 1], [], []>} : vector<256x4xbf16>, vector<4x4xbf16>, vector<256x4xf32> -> vector<256x4xf32>
    %76 = arith.addf %69, %75 : vector<256x4xf32>
    %c2_58 = arith.constant 2 : index
    %c0_59 = arith.constant 0 : index
    %c0_60 = arith.constant 0 : index
    %77 = vector.load %arg10[%c2_58, %c0_59, %c0_60] : memref<18x18x4xf32, #tpu.memory_space<vmem>>, vector<16x16x4xf32>
    %78 = vector.shape_cast %77 : vector<16x16x4xf32> to vector<256x4xf32>
    %79 = arith.truncf %78 : vector<256x4xf32> to vector<256x4xbf16>
    %c6 = arith.constant 6 : index
    %c0_61 = arith.constant 0 : index
    %c0_62 = arith.constant 0 : index
    %80 = vector.load %arg6[%c6, %c0_61, %c0_62] : memref<9x4x4xbf16, #tpu.memory_space<vmem>>, vector<1x4x4xbf16>
    %81 = vector.shape_cast %80 : vector<1x4x4xbf16> to vector<4x4xbf16>
    %cst_63 = arith.constant dense<0.000000e+00> : vector<256x4xf32>
    %82 = tpu.matmul %79, %81, %cst_63 {dimension_numbers = #tpu.dot_dimension_numbers<[1], [0], [0], [1], [0, 0, 1, 1], [], []>} : vector<256x4xbf16>, vector<4x4xbf16>, vector<256x4xf32> -> vector<256x4xf32>
    %83 = arith.addf %76, %82 : vector<256x4xf32>
    %c2_64 = arith.constant 2 : index
    %c1_65 = arith.constant 1 : index
    %c0_66 = arith.constant 0 : index
    %84 = vector.load %arg10[%c2_64, %c1_65, %c0_66] : memref<18x18x4xf32, #tpu.memory_space<vmem>>, vector<16x16x4xf32>
    %85 = vector.shape_cast %84 : vector<16x16x4xf32> to vector<256x4xf32>
    %86 = arith.truncf %85 : vector<256x4xf32> to vector<256x4xbf16>
    %c7 = arith.constant 7 : index
    %c0_67 = arith.constant 0 : index
    %c0_68 = arith.constant 0 : index
    %87 = vector.load %arg6[%c7, %c0_67, %c0_68] : memref<9x4x4xbf16, #tpu.memory_space<vmem>>, vector<1x4x4xbf16>
    %88 = vector.shape_cast %87 : vector<1x4x4xbf16> to vector<4x4xbf16>
    %cst_69 = arith.constant dense<0.000000e+00> : vector<256x4xf32>
    %89 = tpu.matmul %86, %88, %cst_69 {dimension_numbers = #tpu.dot_dimension_numbers<[1], [0], [0], [1], [0, 0, 1, 1], [], []>} : vector<256x4xbf16>, vector<4x4xbf16>, vector<256x4xf32> -> vector<256x4xf32>
    %90 = arith.addf %83, %89 : vector<256x4xf32>
    %c2_70 = arith.constant 2 : index
    %c2_71 = arith.constant 2 : index
    %c0_72 = arith.constant 0 : index
    %91 = vector.load %arg10[%c2_70, %c2_71, %c0_72] : memref<18x18x4xf32, #tpu.memory_space<vmem>>, vector<16x16x4xf32>
    %92 = vector.shape_cast %91 : vector<16x16x4xf32> to vector<256x4xf32>
    %93 = arith.truncf %92 : vector<256x4xf32> to vector<256x4xbf16>
    %c8 = arith.constant 8 : index
    %c0_73 = arith.constant 0 : index
    %c0_74 = arith.constant 0 : index
    %94 = vector.load %arg6[%c8, %c0_73, %c0_74] : memref<9x4x4xbf16, #tpu.memory_space<vmem>>, vector<1x4x4xbf16>
    %95 = vector.shape_cast %94 : vector<1x4x4xbf16> to vector<4x4xbf16>
    %cst_75 = arith.constant dense<0.000000e+00> : vector<256x4xf32>
    %96 = tpu.matmul %93, %95, %cst_75 {dimension_numbers = #tpu.dot_dimension_numbers<[1], [0], [0], [1], [0, 0, 1, 1], [], []>} : vector<256x4xbf16>, vector<4x4xbf16>, vector<256x4xf32> -> vector<256x4xf32>
    %97 = arith.addf %90, %96 : vector<256x4xf32>
    %c0_76 = arith.constant 0 : index
    %c0_77 = arith.constant 0 : index
    %98 = vector.load %arg7[%c0_76, %c0_77] : memref<1x4xf32, #tpu.memory_space<vmem>>, vector<1x4xf32>
    %99 = vector.broadcast %98 : vector<1x4xf32> to vector<256x4xf32>
    %100 = arith.addf %97, %99 : vector<256x4xf32>
    %c0_78 = arith.constant 0 : index
    %c0_79 = arith.constant 0 : index
    %101 = vector.load %arg8[%c0_78, %c0_79] : memref<64x256xbf16, #tpu.memory_space<vmem>>, vector<64x256xbf16>
    %102 = arith.truncf %100 : vector<256x4xf32> to vector<256x4xbf16>
    %cst_80 = arith.constant dense<0.000000e+00> : vector<64x4xf32>
    %103 = tpu.matmul %101, %102, %cst_80 {dimension_numbers = #tpu.dot_dimension_numbers<[1], [0], [0], [1], [0, 0, 1, 1], [], []>} : vector<64x256xbf16>, vector<256x4xbf16>, vector<64x4xf32> -> vector<64x4xf32>
    %cst_81 = arith.constant dense<0.000000e+00> : vector<4xf32>
    %104 = vector.multi_reduction <add>, %103, %cst_81 [0] : vector<64x4xf32> to vector<4xf32>
    %105 = vector.shape_cast %104 : vector<4xf32> to vector<1x4xf32>
    %cst_82 = arith.constant 6.400000e+01 : f32
    %106 = vector.broadcast %cst_82 : f32 to vector<1x4xf32>
    %107 = arith.divf %105, %106 : vector<1x4xf32>
    %108 = vector.broadcast %107 : vector<1x4xf32> to vector<64x4xf32>
    %109 = arith.subf %103, %108 : vector<64x4xf32>
    %110 = arith.mulf %109, %109 : vector<64x4xf32>
    %cst_83 = arith.constant dense<0.000000e+00> : vector<4xf32>
    %111 = vector.multi_reduction <add>, %110, %cst_83 [0] : vector<64x4xf32> to vector<4xf32>
    %112 = vector.shape_cast %111 : vector<4xf32> to vector<1x4xf32>
    %cst_84 = arith.constant 6.400000e+01 : f32
    %113 = vector.broadcast %cst_84 : f32 to vector<1x4xf32>
    %114 = arith.divf %112, %113 : vector<1x4xf32>
    %cst_85 = arith.constant 9.99999974E-6 : f32
    %115 = vector.broadcast %cst_85 : f32 to vector<1x4xf32>
    %116 = arith.addf %114, %115 : vector<1x4xf32>
    %117 = math.rsqrt %116 : vector<1x4xf32>
    %118 = vector.broadcast %117 : vector<1x4xf32> to vector<64x4xf32>
    %119 = arith.mulf %109, %118 : vector<64x4xf32>
    %c0_86 = arith.constant 0 : index
    %c0_87 = arith.constant 0 : index
    %120 = vector.load %arg4[%c0_86, %c0_87] : memref<1x4xf32, #tpu.memory_space<vmem>>, vector<1x4xf32>
    %121 = vector.broadcast %120 : vector<1x4xf32> to vector<64x4xf32>
    %122 = arith.mulf %119, %121 : vector<64x4xf32>
    %c0_88 = arith.constant 0 : index
    %c0_89 = arith.constant 0 : index
    %123 = vector.load %arg5[%c0_88, %c0_89] : memref<1x4xf32, #tpu.memory_space<vmem>>, vector<1x4xf32>
    %124 = vector.broadcast %123 : vector<1x4xf32> to vector<64x4xf32>
    %125 = arith.addf %122, %124 : vector<64x4xf32>
    %cst_90 = arith.constant 0.000000e+00 : f32
    %126 = vector.broadcast %cst_90 : f32 to vector<64x4xf32>
    %127 = arith.cmpf oge, %125, %126 : vector<64x4xf32>
    %cst_91 = arith.constant 2.000000e-01 : f32
    %128 = vector.broadcast %cst_91 : f32 to vector<64x4xf32>
    %129 = arith.mulf %128, %125 : vector<64x4xf32>
    %130 = arith.select %127, %125, %129 : vector<64x4xi1>, vector<64x4xf32>
    %131 = vector.shape_cast %130 : vector<64x4xf32> to vector<8x8x4xf32>
    %132 = arith.truncf %131 : vector<8x8x4xf32> to vector<8x8x4xbf16>
    %c0_92 = arith.constant 0 : index
    %c0_93 = arith.constant 0 : index
    %c0_94 = arith.constant 0 : index
    %c0_95 = arith.constant 0 : index
    %133 = vector.load %arg9[%c0_92, %c0_93, %c0_94, %c0_95] : memref<1x8x8x4xbf16, #tpu.memory_space<vmem>>, vector<1x8x8x4xbf16>
    %134 = vector.shape_cast %133 : vector<1x8x8x4xbf16> to vector<8x8x4xbf16>
    %135 = vector.shape_cast %132 : vector<8x8x4xbf16> to vector<1x8x8x4xbf16>
    tpu.vector_store %arg9[%c0_92, %c0_93, %c0_94, %c0_95], %135 {strides = array<i32>} : memref<1x8x8x4xbf16, #tpu.memory_space<vmem>>, vector<1x8x8x4xbf16>,
    return
  }
  func.func @transform_0(%arg0: i32) -> (i32, i32, i32, i32) {
    %c0_i32 = arith.constant 0 : i32
    %c0_i32_0 = arith.constant 0 : i32
    %c0_i32_1 = arith.constant 0 : i32
    %c0_i32_2 = arith.constant 0 : i32
    return %arg0, %c0_i32, %c0_i32_0, %c0_i32_1 : i32, i32, i32, i32
  }
  func.func @transform_1(%arg0: i32) -> (i32, i32) {
    %c0_i32 = arith.constant 0 : i32
    %c0_i32_0 = arith.constant 0 : i32
    %c0_i32_1 = arith.constant 0 : i32
    return %c0_i32, %c0_i32_0 : i32, i32
  }
  func.func @transform_2(%arg0: i32) -> (i32, i32) {
    %c0_i32 = arith.constant 0 : i32
    %c0_i32_0 = arith.constant 0 : i32
    %c0_i32_1 = arith.constant 0 : i32
    return %c0_i32, %c0_i32_0 : i32, i32
  }
  func.func @transform_3(%arg0: i32) -> (i32, i32) {
    %c0_i32 = arith.constant 0 : i32
    %c0_i32_0 = arith.constant 0 : i32
    %c0_i32_1 = arith.constant 0 : i32
    return %c0_i32, %c0_i32_0 : i32, i32
  }
  func.func @transform_4(%arg0: i32) -> (i32, i32) {
    %c0_i32 = arith.constant 0 : i32
    %c0_i32_0 = arith.constant 0 : i32
    %c0_i32_1 = arith.constant 0 : i32
    return %c0_i32, %c0_i32_0 : i32, i32
  }
  func.func @transform_5(%arg0: i32) -> (i32, i32, i32) {
    %c0_i32 = arith.constant 0 : i32
    %c0_i32_0 = arith.constant 0 : i32
    %c0_i32_1 = arith.constant 0 : i32
    %c0_i32_2 = arith.constant 0 : i32
    return %c0_i32, %c0_i32_0, %c0_i32_1 : i32, i32, i32
  }
  func.func @transform_6(%arg0: i32) -> (i32, i32) {
    %c0_i32 = arith.constant 0 : i32
    %c0_i32_0 = arith.constant 0 : i32
    %c0_i32_1 = arith.constant 0 : i32
    return %c0_i32, %c0_i32_0 : i32, i32
  }
  func.func @transform_7(%arg0: i32) -> (i32, i32) {
    %c0_i32 = arith.constant 0 : i32
    %c0_i32_0 = arith.constant 0 : i32
    %c0_i32_1 = arith.constant 0 : i32
    return %c0_i32, %c0_i32_0 : i32, i32
  }
  func.func @transform_8(%arg0: i32) -> (i32, i32, i32, i32) {
    %c0_i32 = arith.constant 0 : i32
    %c0_i32_0 = arith.constant 0 : i32
    %c0_i32_1 = arith.constant 0 : i32
    %c0_i32_2 = arith.constant 0 : i32
    return %arg0, %c0_i32, %c0_i32_0, %c0_i32_1 : i32, i32, i32, i32
  }
}

module attributes {stable_mosaic.version = 11 : i64} {
  func.func @kernel(%arg0: i32, %arg1: memref<1x8x8x4xbf16, #tpu.memory_space<vmem>>, %arg2: memref<1x16x16x4xf32, #tpu.memory_space<vmem>>, %arg3: memref<9x4x8xbf16, #tpu.memory_space<vmem>>, %arg4: memref<1x8xf32, #tpu.memory_space<vmem>>, %arg5: memref<4x8xbf16, #tpu.memory_space<vmem>>, %arg6: memref<64x256xbf16, #tpu.memory_space<vmem>>, %arg7: memref<1x8x8x8xf32, #tpu.memory_space<vmem>>, %arg8: memref<10x10x4xf32, #tpu.memory_space<vmem>>) attributes {dimension_semantics = [#tpu.dimension_semantics<parallel>], iteration_bounds = array<i64: 2>, scalar_prefetch = 0 : i64, scratch_operands = 1 : i64, tpu.core_type = #tpu.core_type<tc>, window_params = [{transform_indices = @transform_0, window_bounds = array<i64: 1, 8, 8, 4>}, {transform_indices = @transform_1, window_bounds = array<i64: 1, 16, 16, 4>}, {pipeline_mode = #tpu.pipeline_mode<synchronous>, transform_indices = @transform_2, window_bounds = array<i64: 9, 4, 8>}, {pipeline_mode = #tpu.pipeline_mode<synchronous>, transform_indices = @transform_3, window_bounds = array<i64: 1, 8>}, {pipeline_mode = #tpu.pipeline_mode<synchronous>, transform_indices = @transform_4, window_bounds = array<i64: 4, 8>}, {pipeline_mode = #tpu.pipeline_mode<synchronous>, transform_indices = @transform_5, window_bounds = array<i64: 64, 256>}, {transform_indices = @transform_6, window_bounds = array<i64: 1, 8, 8, 8>}]} {
    %cst = arith.constant 0.000000e+00 : f32
    %0 = vector.broadcast %cst : f32 to vector<10x10x4xf32>
    %c0 = arith.constant 0 : index
    %c0_0 = arith.constant 0 : index
    %c0_1 = arith.constant 0 : index
    %1 = vector.load %arg8[%c0, %c0_0, %c0_1] : memref<10x10x4xf32, #tpu.memory_space<vmem>>, vector<10x10x4xf32>
    tpu.vector_store %arg8[%c0, %c0_0, %c0_1], %0 {strides = array<i32>} : memref<10x10x4xf32, #tpu.memory_space<vmem>>, vector<10x10x4xf32>,
    %c0_2 = arith.constant 0 : index
    %c0_3 = arith.constant 0 : index
    %c0_4 = arith.constant 0 : index
    %c0_5 = arith.constant 0 : index
    %2 = vector.load %arg1[%c0_2, %c0_3, %c0_4, %c0_5] : memref<1x8x8x4xbf16, #tpu.memory_space<vmem>>, vector<1x8x8x4xbf16>
    %3 = vector.shape_cast %2 : vector<1x8x8x4xbf16> to vector<8x8x4xbf16>
    %4 = arith.extf %3 : vector<8x8x4xbf16> to vector<8x8x4xf32>
    %c1 = arith.constant 1 : index
    %c1_6 = arith.constant 1 : index
    %c0_7 = arith.constant 0 : index
    %5 = vector.load %arg8[%c1, %c1_6, %c0_7] : memref<10x10x4xf32, #tpu.memory_space<vmem>>, vector<8x8x4xf32>
    tpu.vector_store %arg8[%c1, %c1_6, %c0_7], %4 {strides = array<i32>} : memref<10x10x4xf32, #tpu.memory_space<vmem>>, vector<8x8x4xf32>,
    %cst_8 = arith.constant 0.000000e+00 : f32
    %6 = vector.broadcast %cst_8 : f32 to vector<64x8xf32>
    %c0_9 = arith.constant 0 : index
    %c0_10 = arith.constant 0 : index
    %c0_11 = arith.constant 0 : index
    %7 = vector.load %arg8[%c0_9, %c0_10, %c0_11] : memref<10x10x4xf32, #tpu.memory_space<vmem>>, vector<8x8x4xf32>
    %8 = vector.shape_cast %7 : vector<8x8x4xf32> to vector<64x4xf32>
    %9 = arith.truncf %8 : vector<64x4xf32> to vector<64x4xbf16>
    %c0_12 = arith.constant 0 : index
    %c0_13 = arith.constant 0 : index
    %c0_14 = arith.constant 0 : index
    %10 = vector.load %arg3[%c0_12, %c0_13, %c0_14] : memref<9x4x8xbf16, #tpu.memory_space<vmem>>, vector<1x4x8xbf16>
    %11 = vector.shape_cast %10 : vector<1x4x8xbf16> to vector<4x8xbf16>
    %cst_15 = arith.constant dense<0.000000e+00> : vector<64x8xf32>
    %12 = tpu.matmul %9, %11, %cst_15 {dimension_numbers = #tpu.dot_dimension_numbers<[1], [0], [0], [1], [0, 0, 1, 1], [], []>} : vector<64x4xbf16>, vector<4x8xbf16>, vector<64x8xf32> -> vector<64x8xf32>
    %13 = arith.addf %6, %12 : vector<64x8xf32>
    %c0_16 = arith.constant 0 : index
    %c1_17 = arith.constant 1 : index
    %c0_18 = arith.constant 0 : index
    %14 = vector.load %arg8[%c0_16, %c1_17, %c0_18] : memref<10x10x4xf32, #tpu.memory_space<vmem>>, vector<8x8x4xf32>
    %15 = vector.shape_cast %14 : vector<8x8x4xf32> to vector<64x4xf32>
    %16 = arith.truncf %15 : vector<64x4xf32> to vector<64x4xbf16>
    %c1_19 = arith.constant 1 : index
    %c0_20 = arith.constant 0 : index
    %c0_21 = arith.constant 0 : index
    %17 = vector.load %arg3[%c1_19, %c0_20, %c0_21] : memref<9x4x8xbf16, #tpu.memory_space<vmem>>, vector<1x4x8xbf16>
    %18 = vector.shape_cast %17 : vector<1x4x8xbf16> to vector<4x8xbf16>
    %cst_22 = arith.constant dense<0.000000e+00> : vector<64x8xf32>
    %19 = tpu.matmul %16, %18, %cst_22 {dimension_numbers = #tpu.dot_dimension_numbers<[1], [0], [0], [1], [0, 0, 1, 1], [], []>} : vector<64x4xbf16>, vector<4x8xbf16>, vector<64x8xf32> -> vector<64x8xf32>
    %20 = arith.addf %13, %19 : vector<64x8xf32>
    %c0_23 = arith.constant 0 : index
    %c2 = arith.constant 2 : index
    %c0_24 = arith.constant 0 : index
    %21 = vector.load %arg8[%c0_23, %c2, %c0_24] : memref<10x10x4xf32, #tpu.memory_space<vmem>>, vector<8x8x4xf32>
    %22 = vector.shape_cast %21 : vector<8x8x4xf32> to vector<64x4xf32>
    %23 = arith.truncf %22 : vector<64x4xf32> to vector<64x4xbf16>
    %c2_25 = arith.constant 2 : index
    %c0_26 = arith.constant 0 : index
    %c0_27 = arith.constant 0 : index
    %24 = vector.load %arg3[%c2_25, %c0_26, %c0_27] : memref<9x4x8xbf16, #tpu.memory_space<vmem>>, vector<1x4x8xbf16>
    %25 = vector.shape_cast %24 : vector<1x4x8xbf16> to vector<4x8xbf16>
    %cst_28 = arith.constant dense<0.000000e+00> : vector<64x8xf32>
    %26 = tpu.matmul %23, %25, %cst_28 {dimension_numbers = #tpu.dot_dimension_numbers<[1], [0], [0], [1], [0, 0, 1, 1], [], []>} : vector<64x4xbf16>, vector<4x8xbf16>, vector<64x8xf32> -> vector<64x8xf32>
    %27 = arith.addf %20, %26 : vector<64x8xf32>
    %c1_29 = arith.constant 1 : index
    %c0_30 = arith.constant 0 : index
    %c0_31 = arith.constant 0 : index
    %28 = vector.load %arg8[%c1_29, %c0_30, %c0_31] : memref<10x10x4xf32, #tpu.memory_space<vmem>>, vector<8x8x4xf32>
    %29 = vector.shape_cast %28 : vector<8x8x4xf32> to vector<64x4xf32>
    %30 = arith.truncf %29 : vector<64x4xf32> to vector<64x4xbf16>
    %c3 = arith.constant 3 : index
    %c0_32 = arith.constant 0 : index
    %c0_33 = arith.constant 0 : index
    %31 = vector.load %arg3[%c3, %c0_32, %c0_33] : memref<9x4x8xbf16, #tpu.memory_space<vmem>>, vector<1x4x8xbf16>
    %32 = vector.shape_cast %31 : vector<1x4x8xbf16> to vector<4x8xbf16>
    %cst_34 = arith.constant dense<0.000000e+00> : vector<64x8xf32>
    %33 = tpu.matmul %30, %32, %cst_34 {dimension_numbers = #tpu.dot_dimension_numbers<[1], [0], [0], [1], [0, 0, 1, 1], [], []>} : vector<64x4xbf16>, vector<4x8xbf16>, vector<64x8xf32> -> vector<64x8xf32>
    %34 = arith.addf %27, %33 : vector<64x8xf32>
    %c1_35 = arith.constant 1 : index
    %c1_36 = arith.constant 1 : index
    %c0_37 = arith.constant 0 : index
    %35 = vector.load %arg8[%c1_35, %c1_36, %c0_37] : memref<10x10x4xf32, #tpu.memory_space<vmem>>, vector<8x8x4xf32>
    %36 = vector.shape_cast %35 : vector<8x8x4xf32> to vector<64x4xf32>
    %37 = arith.truncf %36 : vector<64x4xf32> to vector<64x4xbf16>
    %c4 = arith.constant 4 : index
    %c0_38 = arith.constant 0 : index
    %c0_39 = arith.constant 0 : index
    %38 = vector.load %arg3[%c4, %c0_38, %c0_39] : memref<9x4x8xbf16, #tpu.memory_space<vmem>>, vector<1x4x8xbf16>
    %39 = vector.shape_cast %38 : vector<1x4x8xbf16> to vector<4x8xbf16>
    %cst_40 = arith.constant dense<0.000000e+00> : vector<64x8xf32>
    %40 = tpu.matmul %37, %39, %cst_40 {dimension_numbers = #tpu.dot_dimension_numbers<[1], [0], [0], [1], [0, 0, 1, 1], [], []>} : vector<64x4xbf16>, vector<4x8xbf16>, vector<64x8xf32> -> vector<64x8xf32>
    %41 = arith.addf %34, %40 : vector<64x8xf32>
    %c1_41 = arith.constant 1 : index
    %c2_42 = arith.constant 2 : index
    %c0_43 = arith.constant 0 : index
    %42 = vector.load %arg8[%c1_41, %c2_42, %c0_43] : memref<10x10x4xf32, #tpu.memory_space<vmem>>, vector<8x8x4xf32>
    %43 = vector.shape_cast %42 : vector<8x8x4xf32> to vector<64x4xf32>
    %44 = arith.truncf %43 : vector<64x4xf32> to vector<64x4xbf16>
    %c5 = arith.constant 5 : index
    %c0_44 = arith.constant 0 : index
    %c0_45 = arith.constant 0 : index
    %45 = vector.load %arg3[%c5, %c0_44, %c0_45] : memref<9x4x8xbf16, #tpu.memory_space<vmem>>, vector<1x4x8xbf16>
    %46 = vector.shape_cast %45 : vector<1x4x8xbf16> to vector<4x8xbf16>
    %cst_46 = arith.constant dense<0.000000e+00> : vector<64x8xf32>
    %47 = tpu.matmul %44, %46, %cst_46 {dimension_numbers = #tpu.dot_dimension_numbers<[1], [0], [0], [1], [0, 0, 1, 1], [], []>} : vector<64x4xbf16>, vector<4x8xbf16>, vector<64x8xf32> -> vector<64x8xf32>
    %48 = arith.addf %41, %47 : vector<64x8xf32>
    %c2_47 = arith.constant 2 : index
    %c0_48 = arith.constant 0 : index
    %c0_49 = arith.constant 0 : index
    %49 = vector.load %arg8[%c2_47, %c0_48, %c0_49] : memref<10x10x4xf32, #tpu.memory_space<vmem>>, vector<8x8x4xf32>
    %50 = vector.shape_cast %49 : vector<8x8x4xf32> to vector<64x4xf32>
    %51 = arith.truncf %50 : vector<64x4xf32> to vector<64x4xbf16>
    %c6 = arith.constant 6 : index
    %c0_50 = arith.constant 0 : index
    %c0_51 = arith.constant 0 : index
    %52 = vector.load %arg3[%c6, %c0_50, %c0_51] : memref<9x4x8xbf16, #tpu.memory_space<vmem>>, vector<1x4x8xbf16>
    %53 = vector.shape_cast %52 : vector<1x4x8xbf16> to vector<4x8xbf16>
    %cst_52 = arith.constant dense<0.000000e+00> : vector<64x8xf32>
    %54 = tpu.matmul %51, %53, %cst_52 {dimension_numbers = #tpu.dot_dimension_numbers<[1], [0], [0], [1], [0, 0, 1, 1], [], []>} : vector<64x4xbf16>, vector<4x8xbf16>, vector<64x8xf32> -> vector<64x8xf32>
    %55 = arith.addf %48, %54 : vector<64x8xf32>
    %c2_53 = arith.constant 2 : index
    %c1_54 = arith.constant 1 : index
    %c0_55 = arith.constant 0 : index
    %56 = vector.load %arg8[%c2_53, %c1_54, %c0_55] : memref<10x10x4xf32, #tpu.memory_space<vmem>>, vector<8x8x4xf32>
    %57 = vector.shape_cast %56 : vector<8x8x4xf32> to vector<64x4xf32>
    %58 = arith.truncf %57 : vector<64x4xf32> to vector<64x4xbf16>
    %c7 = arith.constant 7 : index
    %c0_56 = arith.constant 0 : index
    %c0_57 = arith.constant 0 : index
    %59 = vector.load %arg3[%c7, %c0_56, %c0_57] : memref<9x4x8xbf16, #tpu.memory_space<vmem>>, vector<1x4x8xbf16>
    %60 = vector.shape_cast %59 : vector<1x4x8xbf16> to vector<4x8xbf16>
    %cst_58 = arith.constant dense<0.000000e+00> : vector<64x8xf32>
    %61 = tpu.matmul %58, %60, %cst_58 {dimension_numbers = #tpu.dot_dimension_numbers<[1], [0], [0], [1], [0, 0, 1, 1], [], []>} : vector<64x4xbf16>, vector<4x8xbf16>, vector<64x8xf32> -> vector<64x8xf32>
    %62 = arith.addf %55, %61 : vector<64x8xf32>
    %c2_59 = arith.constant 2 : index
    %c2_60 = arith.constant 2 : index
    %c0_61 = arith.constant 0 : index
    %63 = vector.load %arg8[%c2_59, %c2_60, %c0_61] : memref<10x10x4xf32, #tpu.memory_space<vmem>>, vector<8x8x4xf32>
    %64 = vector.shape_cast %63 : vector<8x8x4xf32> to vector<64x4xf32>
    %65 = arith.truncf %64 : vector<64x4xf32> to vector<64x4xbf16>
    %c8 = arith.constant 8 : index
    %c0_62 = arith.constant 0 : index
    %c0_63 = arith.constant 0 : index
    %66 = vector.load %arg3[%c8, %c0_62, %c0_63] : memref<9x4x8xbf16, #tpu.memory_space<vmem>>, vector<1x4x8xbf16>
    %67 = vector.shape_cast %66 : vector<1x4x8xbf16> to vector<4x8xbf16>
    %cst_64 = arith.constant dense<0.000000e+00> : vector<64x8xf32>
    %68 = tpu.matmul %65, %67, %cst_64 {dimension_numbers = #tpu.dot_dimension_numbers<[1], [0], [0], [1], [0, 0, 1, 1], [], []>} : vector<64x4xbf16>, vector<4x8xbf16>, vector<64x8xf32> -> vector<64x8xf32>
    %69 = arith.addf %62, %68 : vector<64x8xf32>
    %c0_65 = arith.constant 0 : index
    %c0_66 = arith.constant 0 : index
    %70 = vector.load %arg4[%c0_65, %c0_66] : memref<1x8xf32, #tpu.memory_space<vmem>>, vector<1x8xf32>
    %71 = vector.broadcast %70 : vector<1x8xf32> to vector<64x8xf32>
    %72 = arith.addf %69, %71 : vector<64x8xf32>
    %c0_67 = arith.constant 0 : index
    %c0_68 = arith.constant 0 : index
    %c0_69 = arith.constant 0 : index
    %c0_70 = arith.constant 0 : index
    %73 = vector.load %arg2[%c0_67, %c0_68, %c0_69, %c0_70] : memref<1x16x16x4xf32, #tpu.memory_space<vmem>>, vector<1x16x16x4xf32>
    %74 = vector.shape_cast %73 : vector<1x16x16x4xf32> to vector<16x16x4xf32>
    %75 = vector.shape_cast %74 : vector<16x16x4xf32> to vector<256x4xf32>
    %76 = arith.truncf %75 : vector<256x4xf32> to vector<256x4xbf16>
    %c0_71 = arith.constant 0 : index
    %c0_72 = arith.constant 0 : index
    %77 = vector.load %arg5[%c0_71, %c0_72] : memref<4x8xbf16, #tpu.memory_space<vmem>>, vector<4x8xbf16>
    %cst_73 = arith.constant dense<0.000000e+00> : vector<256x8xf32>
    %78 = tpu.matmul %76, %77, %cst_73 {dimension_numbers = #tpu.dot_dimension_numbers<[1], [0], [0], [1], [0, 0, 1, 1], [], []>} : vector<256x4xbf16>, vector<4x8xbf16>, vector<256x8xf32> -> vector<256x8xf32>
    %c0_74 = arith.constant 0 : index
    %c0_75 = arith.constant 0 : index
    %79 = vector.load %arg6[%c0_74, %c0_75] : memref<64x256xbf16, #tpu.memory_space<vmem>>, vector<64x256xbf16>
    %80 = arith.truncf %78 : vector<256x8xf32> to vector<256x8xbf16>
    %cst_76 = arith.constant dense<0.000000e+00> : vector<64x8xf32>
    %81 = tpu.matmul %79, %80, %cst_76 {dimension_numbers = #tpu.dot_dimension_numbers<[1], [0], [0], [1], [0, 0, 1, 1], [], []>} : vector<64x256xbf16>, vector<256x8xbf16>, vector<64x8xf32> -> vector<64x8xf32>
    %82 = arith.addf %81, %72 : vector<64x8xf32>
    %cst_77 = arith.constant 0.707106769 : f32
    %83 = vector.broadcast %cst_77 : f32 to vector<64x8xf32>
    %84 = arith.mulf %82, %83 : vector<64x8xf32>
    %85 = vector.shape_cast %84 : vector<64x8xf32> to vector<8x8x8xf32>
    %c0_78 = arith.constant 0 : index
    %c0_79 = arith.constant 0 : index
    %c0_80 = arith.constant 0 : index
    %c0_81 = arith.constant 0 : index
    %86 = vector.load %arg7[%c0_78, %c0_79, %c0_80, %c0_81] : memref<1x8x8x8xf32, #tpu.memory_space<vmem>>, vector<1x8x8x8xf32>
    %87 = vector.shape_cast %86 : vector<1x8x8x8xf32> to vector<8x8x8xf32>
    %88 = vector.shape_cast %85 : vector<8x8x8xf32> to vector<1x8x8x8xf32>
    tpu.vector_store %arg7[%c0_78, %c0_79, %c0_80, %c0_81], %88 {strides = array<i32>} : memref<1x8x8x8xf32, #tpu.memory_space<vmem>>, vector<1x8x8x8xf32>,
    return
  }
  func.func @transform_0(%arg0: i32) -> (i32, i32, i32, i32) {
    %c0_i32 = arith.constant 0 : i32
    %c0_i32_0 = arith.constant 0 : i32
    %c0_i32_1 = arith.constant 0 : i32
    %c0_i32_2 = arith.constant 0 : i32
    return %arg0, %c0_i32, %c0_i32_0, %c0_i32_1 : i32, i32, i32, i32
  }
  func.func @transform_1(%arg0: i32) -> (i32, i32, i32, i32) {
    %c0_i32 = arith.constant 0 : i32
    %c0_i32_0 = arith.constant 0 : i32
    %c0_i32_1 = arith.constant 0 : i32
    %c0_i32_2 = arith.constant 0 : i32
    return %arg0, %c0_i32, %c0_i32_0, %c0_i32_1 : i32, i32, i32, i32
  }
  func.func @transform_2(%arg0: i32) -> (i32, i32, i32) {
    %c0_i32 = arith.constant 0 : i32
    %c0_i32_0 = arith.constant 0 : i32
    %c0_i32_1 = arith.constant 0 : i32
    %c0_i32_2 = arith.constant 0 : i32
    return %c0_i32, %c0_i32_0, %c0_i32_1 : i32, i32, i32
  }
  func.func @transform_3(%arg0: i32) -> (i32, i32) {
    %c0_i32 = arith.constant 0 : i32
    %c0_i32_0 = arith.constant 0 : i32
    %c0_i32_1 = arith.constant 0 : i32
    return %c0_i32, %c0_i32_0 : i32, i32
  }
  func.func @transform_4(%arg0: i32) -> (i32, i32) {
    %c0_i32 = arith.constant 0 : i32
    %c0_i32_0 = arith.constant 0 : i32
    %c0_i32_1 = arith.constant 0 : i32
    return %c0_i32, %c0_i32_0 : i32, i32
  }
  func.func @transform_5(%arg0: i32) -> (i32, i32) {
    %c0_i32 = arith.constant 0 : i32
    %c0_i32_0 = arith.constant 0 : i32
    %c0_i32_1 = arith.constant 0 : i32
    return %c0_i32, %c0_i32_0 : i32, i32
  }
  func.func @transform_6(%arg0: i32) -> (i32, i32, i32, i32) {
    %c0_i32 = arith.constant 0 : i32
    %c0_i32_0 = arith.constant 0 : i32
    %c0_i32_1 = arith.constant 0 : i32
    %c0_i32_2 = arith.constant 0 : i32
    return %arg0, %c0_i32, %c0_i32_0, %c0_i32_1 : i32, i32, i32, i32
  }
}

</mosaic_0001>

<llo_original>
// kernel: res_blk_forward.3
$region0: #{res_blk_forward.3}
  #allocation0 [shape = 'u32[]', space=smem, size = 0x4, offset = 0x4, fixed_abs, tag = 'smem constant byte address 0x4 - core index']
  #allocation1 [shape = 'u32[144,128]{1,0:T(1,128)}', space=vmem, size = 0x12000, scoped, tag = 'internal scratch']
  #allocation2 [shape = 'f32[10,10,4]{2,1,0:T(8,128)}', space=vmem, size = 0x14000, scoped, tag = 'scratch operand']
  %s0 = inlined_call_operand.vmem [shape: bf16[2,8,8,4], index: 0, kind: input, shape index: {}]
  %s1 = inlined_call_operand.vmem [shape: f32[2,16,16,4], index: 1, kind: input, shape index: {}]
  %s2 = inlined_call_operand.vmem [shape: bf16[9,4,8], index: 2, kind: input, shape index: {}]
  %s3 = inlined_call_operand.vmem [shape: f32[1,8], index: 3, kind: input, shape index: {}]
  %s4 = inlined_call_operand.vmem [shape: bf16[4,8], index: 4, kind: input, shape index: {}]
  %s5 = inlined_call_operand.vmem [shape: bf16[64,256], index: 5, kind: input, shape index: {}]
  %s6 = inlined_call_operand.vmem [shape: f32[2,8,8,8], index: 6, kind: output, shape index: {}]
  %s7 = sld [smem:[#allocation0]]
  $region57: #{res_blk_forward.3} parent=0
    _
  %s9 = ssub.s32 1, %s7
  %s10 = scalar_select 0, %s9, %s7
  loop: start=0, step=1, limit=4
  $region2: #{res_blk_forward.3} parent=0 // loop_pre_header
    _
  $region3: #{res_blk_forward.3} parent=0 // loop_header
    %s12 = sphi 0, %s16
    %p13 = scmp.ge.s32.totalorder %s12, 4
    %s22 = sphi 0, %s24
    %s25 = sphi 0, %s22
    %s26 = sphi 0, %s25
    %s42 = sphi 0, %s26
    %s48 = sphi 0, %s50
    %s51 = sphi 0, %s48
    %s52 = sphi 0, %s51
    %s68 = sphi 0, %s52
    %s72 = sphi 0, %s72
    %s74 = sphi 0, %s72
    %s75 = sphi 0, %s74
    %s89 = sphi 0, %s75
    %s93 = sphi 0, %s93
    %s95 = sphi 0, %s93
    %s96 = sphi 0, %s95
    %s110 = sphi 0, %s96
    %s114 = sphi 0, %s114
    %s116 = sphi 0, %s114
    %s117 = sphi 0, %s116
    %s131 = sphi 0, %s117
    %s135 = sphi 0, %s135
    %s137 = sphi 0, %s135
    %s138 = sphi 0, %s137
    %s152 = sphi 0, %s138
    %s158 = sphi 0, %s160
    %s161 = sphi 0, %s158
    %s162 = sphi 0, %s161
    %s178 = sphi 0, %s162
  $region4: #{res_blk_forward.3} parent=0 // loop_header_branch
    %15 = sbr.rel (%p13) target = $region8
  $region5: #{res_blk_forward.3} parent=0 // loop_body
    %s17 = ssub.s32 %s12, 1
    %s18 = ssub.s32 %s12, 2
    %s19 = sadd.s32 %s12, 1
    %s20 = ssub.s32 %s12, %s19
    %p21 = scmp.eq.s32.totalorder %s20, 0
    %s23 = sadd.s32 %s22, 1
    %s24 = scalar_select %p21, %s22, %s23
    %p27 = pneg %p21
    %p28 = scmp.eq.s32.totalorder %s12, 1
    %p29 = por %p27, %p28
    %p30 = scmp.ne.s32.totalorder %s22, %s25
    %p31 = scmp.eq.s32.totalorder %s12, 0
    %p32 = por %p30, %p31
    %p33 = scmp.ne.s32.totalorder %s22, %s25
    %p34 = scmp.eq.s32.totalorder %s17, 1
    %p35 = por %p33, %p34
    %p36 = scmp.ne.s32.totalorder %s25, %s26
    %p37 = scmp.eq.s32.totalorder %s17, 0
    %p38 = por %p36, %p37
    %p39 = scmp.ne.s32.totalorder %s25, %s26
    %p40 = scmp.eq.s32.totalorder %s18, 1
    %p41 = por %p39, %p40
    %p43 = scmp.ne.s32.totalorder %s26, %s42
    %p44 = scmp.eq.s32.totalorder %s18, 0
    %p45 = por %p43, %p44
    %s46 = ssub.s32 %s12, %s19
    %p47 = scmp.eq.s32.totalorder %s46, 0
    %s49 = sadd.s32 %s48, 1
    %s50 = scalar_select %p47, %s48, %s49
    %p53 = pneg %p47
    %p54 = scmp.eq.s32.totalorder %s12, 1
    %p55 = por %p53, %p54
    %p56 = scmp.ne.s32.totalorder %s48, %s51
    %p57 = scmp.eq.s32.totalorder %s12, 0
    %p58 = por %p56, %p57
    %p59 = scmp.ne.s32.totalorder %s48, %s51
    %p60 = scmp.eq.s32.totalorder %s17, 1
    %p61 = por %p59, %p60
    %p62 = scmp.ne.s32.totalorder %s51, %s52
    %p63 = scmp.eq.s32.totalorder %s17, 0
    %p64 = por %p62, %p63
    %p65 = scmp.ne.s32.totalorder %s51, %s52
    %p66 = scmp.eq.s32.totalorder %s18, 1
    %p67 = por %p65, %p66
    %p69 = scmp.ne.s32.totalorder %s52, %s68
    %p70 = scmp.eq.s32.totalorder %s18, 0
    %p71 = por %p69, %p70
    %s73 = sadd.s32 %s72, 1
    %p76 = scmp.eq.s32.totalorder %s12, 1
    %p77 = scmp.ne.s32.totalorder %s72, %s74
    %p78 = scmp.eq.s32.totalorder %s12, 0
    %p79 = por %p77, %p78
    %p80 = scmp.ne.s32.totalorder %s72, %s74
    %p81 = scmp.eq.s32.totalorder %s17, 1
    %p82 = por %p80, %p81
    %p83 = scmp.ne.s32.totalorder %s74, %s75
    %p84 = scmp.eq.s32.totalorder %s17, 0
    %p85 = por %p83, %p84
    %p86 = scmp.ne.s32.totalorder %s74, %s75
    %p87 = scmp.eq.s32.totalorder %s18, 1
    %p88 = por %p86, %p87
    %p90 = scmp.ne.s32.totalorder %s75, %s89
    %p91 = scmp.eq.s32.totalorder %s18, 0
    %p92 = por %p90, %p91
    %s94 = sadd.s32 %s93, 1
    %p97 = scmp.eq.s32.totalorder %s12, 1
    %p98 = scmp.ne.s32.totalorder %s93, %s95
    %p99 = scmp.eq.s32.totalorder %s12, 0
    %p100 = por %p98, %p99
    %p101 = scmp.ne.s32.totalorder %s93, %s95
    %p102 = scmp.eq.s32.totalorder %s17, 1
    %p103 = por %p101, %p102
    %p104 = scmp.ne.s32.totalorder %s95, %s96
    %p105 = scmp.eq.s32.totalorder %s17, 0
    %p106 = por %p104, %p105
    %p107 = scmp.ne.s32.totalorder %s95, %s96
    %p108 = scmp.eq.s32.totalorder %s18, 1
    %p109 = por %p107, %p108
    %p111 = scmp.ne.s32.totalorder %s96, %s110
    %p112 = scmp.eq.s32.totalorder %s18, 0
    %p113 = por %p111, %p112
    %s115 = sadd.s32 %s114, 1
    %p118 = scmp.eq.s32.totalorder %s12, 1
    %p119 = scmp.ne.s32.totalorder %s114, %s116
    %p120 = scmp.eq.s32.totalorder %s12, 0
    %p121 = por %p119, %p120
    %p122 = scmp.ne.s32.totalorder %s114, %s116
    %p123 = scmp.eq.s32.totalorder %s17, 1
    %p124 = por %p122, %p123
    %p125 = scmp.ne.s32.totalorder %s116, %s117
    %p126 = scmp.eq.s32.totalorder %s17, 0
    %p127 = por %p125, %p126
    %p128 = scmp.ne.s32.totalorder %s116, %s117
    %p129 = scmp.eq.s32.totalorder %s18, 1
    %p130 = por %p128, %p129
    %p132 = scmp.ne.s32.totalorder %s117, %s131
    %p133 = scmp.eq.s32.totalorder %s18, 0
    %p134 = por %p132, %p133
    %s136 = sadd.s32 %s135, 1
    %p139 = scmp.eq.s32.totalorder %s12, 1
    %p140 = scmp.ne.s32.totalorder %s135, %s137
    %p141 = scmp.eq.s32.totalorder %s12, 0
    %p142 = por %p140, %p141
    %p143 = scmp.ne.s32.totalorder %s135, %s137
    %p144 = scmp.eq.s32.totalorder %s17, 1
    %p145 = por %p143, %p144
    %p146 = scmp.ne.s32.totalorder %s137, %s138
    %p147 = scmp.eq.s32.totalorder %s17, 0
    %p148 = por %p146, %p147
    %p149 = scmp.ne.s32.totalorder %s137, %s138
    %p150 = scmp.eq.s32.totalorder %s18, 1
    %p151 = por %p149, %p150
    %p153 = scmp.ne.s32.totalorder %s138, %s152
    %p154 = scmp.eq.s32.totalorder %s18, 0
    %p155 = por %p153, %p154
    %s156 = ssub.s32 %s12, %s19
    %p157 = scmp.eq.s32.totalorder %s156, 0
    %s159 = sadd.s32 %s158, 1
    %s160 = scalar_select %p157, %s158, %s159
    %p163 = pneg %p157
    %p164 = scmp.eq.s32.totalorder %s12, 1
    %p165 = por %p163, %p164
    %p166 = scmp.ne.s32.totalorder %s158, %s161
    %p167 = scmp.eq.s32.totalorder %s12, 0
    %p168 = por %p166, %p167
    %p169 = scmp.ne.s32.totalorder %s158, %s161
    %p170 = scmp.eq.s32.totalorder %s17, 1
    %p171 = por %p169, %p170
    %p172 = scmp.ne.s32.totalorder %s161, %s162
    %p173 = scmp.eq.s32.totalorder %s17, 0
    %p174 = por %p172, %p173
    %p175 = scmp.ne.s32.totalorder %s161, %s162
    %p176 = scmp.eq.s32.totalorder %s18, 1
    %p177 = por %p175, %p176
    %p179 = scmp.ne.s32.totalorder %s162, %s178
    %p180 = scmp.eq.s32.totalorder %s18, 0
    %p181 = por %p179, %p180
    %p182 = scmp.le.s32.totalorder 1, %s12
    %p183 = scmp.lt.s32.totalorder %s12, 3
    %p184 = pnand %p182, %p183
    %p185 = pneg %p184
    // Predicated region
    $region9: #{res_blk_forward.3} parent=5 // pred_check
      _
    $region10: #{res_blk_forward.3} parent=5 // pred_check_branch
      %187 = sbr.rel (%p184) target = $region12
    $region11: #{res_blk_forward.3} parent=5 // pred_region
      %s188 = ssub.s32 %s12, 1
      // Predicated region
      $region13: #{res_blk_forward.3} parent=11 // pred_check
        %p189 = pneg %p85
      $region14: #{res_blk_forward.3} parent=11 // pred_check_branch
        %191 = sbr.rel (%p189) target = $region16
      $region15: #{res_blk_forward.3} parent=11 // pred_region
        _
      $region16: #{res_blk_forward.3} parent=11 // pred_fallthru
        _
      // Predicated region
      $region17: #{res_blk_forward.3} parent=11 // pred_check
        %p192 = pneg %p106
      $region18: #{res_blk_forward.3} parent=11 // pred_check_branch
        %194 = sbr.rel (%p192) target = $region20
      $region19: #{res_blk_forward.3} parent=11 // pred_region
        _
      $region20: #{res_blk_forward.3} parent=11 // pred_fallthru
        _
      // Predicated region
      $region21: #{res_blk_forward.3} parent=11 // pred_check
        %p195 = pneg %p127
      $region22: #{res_blk_forward.3} parent=11 // pred_check_branch
        %197 = sbr.rel (%p195) target = $region24
      $region23: #{res_blk_forward.3} parent=11 // pred_region
        _
      $region24: #{res_blk_forward.3} parent=11 // pred_fallthru
        _
      // Predicated region
      $region25: #{res_blk_forward.3} parent=11 // pred_check
        %p198 = pneg %p148
      $region26: #{res_blk_forward.3} parent=11 // pred_check_branch
        %200 = sbr.rel (%p198) target = $region28
      $region27: #{res_blk_forward.3} parent=11 // pred_region
        _
      $region28: #{res_blk_forward.3} parent=11 // pred_fallthru
        _
    $region12: #{res_blk_forward.3} parent=5 // pred_fallthru
      _
    %p201 = scmp.lt.s32.totalorder %s12, 2
    // Predicated region
    $region29: #{res_blk_forward.3} parent=5 // pred_check
      %p202 = pneg %p201
    $region30: #{res_blk_forward.3} parent=5 // pred_check_branch
      %204 = sbr.rel (%p202) target = $region32
    $region31: #{res_blk_forward.3} parent=5 // pred_region
      // Predicated region
      $region33: #{res_blk_forward.3} parent=31 // pred_check
        %p205 = pneg %p32
      $region34: #{res_blk_forward.3} parent=31 // pred_check_branch
        %207 = sbr.rel (%p205) target = $region36
      $region35: #{res_blk_forward.3} parent=31 // pred_region
        %p208 = scmp.lt.s32.totalorder %s12, 1
        %s209 = scalar_select %p208, %s12, 1
        %s210 = smul.addr %s209, 8
        %s211 = smul.addr %s210, 4
        %s212 = scalar_lea.vmem %s0, %s211
      $region36: #{res_blk_forward.3} parent=31 // pred_fallthru
        _
      // Predicated region
      $region37: #{res_blk_forward.3} parent=31 // pred_check
        %p213 = pneg %p58
      $region38: #{res_blk_forward.3} parent=31 // pred_check_branch
        %215 = sbr.rel (%p213) target = $region40
      $region39: #{res_blk_forward.3} parent=31 // pred_region
        %p216 = scmp.lt.s32.totalorder %s12, 1
        %s217 = scalar_select %p216, %s12, 1
        %s218 = smul.addr %s217, 32
        %s219 = smul.addr %s218, 8
        %s220 = scalar_lea.vmem %s1, %s219
      $region40: #{res_blk_forward.3} parent=31 // pred_fallthru
        _
    $region32: #{res_blk_forward.3} parent=5 // pred_fallthru
      _
    %p221 = scmp.le.s32.totalorder 1, %s12
    %p222 = scmp.lt.s32.totalorder %s12, 3
    %p223 = pnand %p221, %p222
    %p224 = pneg %p223
    // Predicated region
    $region41: #{res_blk_forward.3} parent=5 // pred_check
      _
    $region42: #{res_blk_forward.3} parent=5 // pred_check_branch
      %226 = sbr.rel (%p223) target = $region44
    $region43: #{res_blk_forward.3} parent=5 // pred_region
      %s227 = ssub.s32 %s12, 1
      %p228 = scmp.lt.s32.totalorder %s17, 1
      %s229 = scalar_select %p228, %s17, 1
      %s230 = smul.addr %s229, 8
      %s231 = smul.addr %s230, 4
      %s232 = scalar_lea.vmem %s0, %s231
      %p233 = pneg %p38
      %p234 = pneg %p35
      %p235 = scmp.lt.s32.totalorder %s17, 1
      %s236 = scalar_select %p235, %s17, 1
      %s237 = smul.addr %s236, 32
      %s238 = smul.addr %s237, 8
      %s239 = scalar_lea.vmem %s1, %s238
      %p240 = pneg %p64
      %p241 = pneg %p61
      %p242 = pneg %p85
      %p243 = pneg %p82
      %p244 = pneg %p106
      %p245 = pneg %p103
      %p246 = pneg %p127
      %p247 = pneg %p124
      %p248 = pneg %p148
      %p249 = pneg %p145
      %p250 = pneg %p174
      %p251 = pneg %p171
      %p252 = scmp.lt.s32.totalorder %s17, 1
      %s253 = scalar_select %p252, %s17, 1
      %s254 = smul.addr %s253, 8
      %s255 = smul.addr %s254, 8
      %s256 = scalar_lea.vmem %s6, %s255
      %p257 = scmp.lt.s32.totalorder %s17, 1
      %s258 = scalar_select %p257, %s17, 1
      %s259 = smul.addr %s258, 8
      %s260 = smul.addr %s259, 4
      %s261 = scalar_lea.vmem %s0, %s260
      %p262 = scmp.lt.s32.totalorder %s17, 1
      %s263 = scalar_select %p262, %s17, 1
      %s264 = smul.addr %s263, 32
      %s265 = smul.addr %s264, 8
      %s266 = scalar_lea.vmem %s1, %s265
      %p267 = scmp.lt.s32.totalorder %s17, 1
      %s268 = scalar_select %p267, %s17, 1
      %s269 = smul.addr %s268, 8
      %s270 = smul.addr %s269, 8
      %s271 = scalar_lea.vmem %s6, %s270
      %vm273 = vcmask 31744
      %274 = vst.msk [vmem:[#allocation2] sm:$0xff] %vm273, 0.0
      %vm275 = vcmask 25600
      %276 = vst.msk [vmem:[#allocation2 + $0x8] sm:$0x3] %vm275, 0.0
      %277 = vst.msk [vmem:[#allocation2 + $0x10] sm:$0xff] %vm273, 0.0
      %278 = vst.msk [vmem:[#allocation2 + $0x18] sm:$0x3] %vm275, 0.0
      %279 = vst.msk [vmem:[#allocation2 + $0x20] sm:$0xff] %vm273, 0.0
      %280 = vst.msk [vmem:[#allocation2 + $0x28] sm:$0x3] %vm275, 0.0
      %281 = vst.msk [vmem:[#allocation2 + $0x30] sm:$0xff] %vm273, 0.0
      %282 = vst.msk [vmem:[#allocation2 + $0x38] sm:$0x3] %vm275, 0.0
      %283 = vst.msk [vmem:[#allocation2 + $0x40] sm:$0xff] %vm273, 0.0
      %284 = vst.msk [vmem:[#allocation2 + $0x48] sm:$0x3] %vm275, 0.0
      %285 = vst.msk [vmem:[#allocation2 + $0x50] sm:$0xff] %vm273, 0.0
      %286 = vst.msk [vmem:[#allocation2 + $0x58] sm:$0x3] %vm275, 0.0
      %287 = vst.msk [vmem:[#allocation2 + $0x60] sm:$0xff] %vm273, 0.0
      %288 = vst.msk [vmem:[#allocation2 + $0x68] sm:$0x3] %vm275, 0.0
      %289 = vst.msk [vmem:[#allocation2 + $0x70] sm:$0xff] %vm273, 0.0
      %290 = vst.msk [vmem:[#allocation2 + $0x78] sm:$0x3] %vm275, 0.0
      %291 = vst.msk [vmem:[#allocation2 + $0x80] sm:$0xff] %vm273, 0.0
      %292 = vst.msk [vmem:[#allocation2 + $0x88] sm:$0x3] %vm275, 0.0
      %293 = vst.msk [vmem:[#allocation2 + $0x90] sm:$0xff] %vm273, 0.0
      %294 = vst.msk [vmem:[#allocation2 + $0x98] sm:$0x3] %vm275, 0.0
      %v295 = vld [vmem:[%s261] sm:$0xf]
      %v296 = vld [vmem:[%s261 + $0x4] sm:$0xf]
      %v297 = vld [vmem:[%s261 + $0x8] sm:$0xf]
      %v298 = vld [vmem:[%s261 + $0xc] sm:$0xf]
      %v299 = vld [vmem:[%s261 + $0x10] sm:$0xf]
      %v300 = vld [vmem:[%s261 + $0x14] sm:$0xf]
      %v301 = vld [vmem:[%s261 + $0x18] sm:$0xf]
      %v302 = vld [vmem:[%s261 + $0x1c] sm:$0xf]
      %v303 = vunpack.c.l.bf16 %v295
      %v304 = vunpack.c.l.bf16 %v296
      %v305 = vunpack.c.l.bf16 %v297
      %v306 = vunpack.c.l.bf16 %v298
      %v307 = vunpack.c.l.bf16 %v299
      %v308 = vunpack.c.l.bf16 %v300
      %v309 = vunpack.c.l.bf16 %v301
      %v310 = vunpack.c.l.bf16 %v302
      %s311 = scalar_lea.vmem [#allocation2], 16
      %312 = vst.msk [vmem:[%s311 + $0x1] sm:$0xff] %vm273, %v303
      %313 = vst.msk [vmem:[%s311 + $0x11] sm:$0xff] %vm273, %v304
      %314 = vst.msk [vmem:[%s311 + $0x21] sm:$0xff] %vm273, %v305
      %315 = vst.msk [vmem:[%s311 + $0x31] sm:$0xff] %vm273, %v306
      %316 = vst.msk [vmem:[%s311 + $0x41] sm:$0xff] %vm273, %v307
      %317 = vst.msk [vmem:[%s311 + $0x51] sm:$0xff] %vm273, %v308
      %318 = vst.msk [vmem:[%s311 + $0x61] sm:$0xff] %vm273, %v309
      %319 = vst.msk [vmem:[%s311 + $0x71] sm:$0xff] %vm273, %v310
      %v320 = vld [vmem:[#allocation2] sm:$0xff]
      %v321 = vld [vmem:[#allocation2 + $0x10] sm:$0xff]
      %v322 = vld [vmem:[#allocation2 + $0x20] sm:$0xff]
      %v323 = vld [vmem:[#allocation2 + $0x30] sm:$0xff]
      %v324 = vld [vmem:[#allocation2 + $0x40] sm:$0xff]
      %v325 = vld [vmem:[#allocation2 + $0x50] sm:$0xff]
      %v326 = vld [vmem:[#allocation2 + $0x60] sm:$0xff]
      %v327 = vld [vmem:[#allocation2 + $0x70] sm:$0xff]
      %v328 = vpack.c.bf16 %v321, %v320
      %v329 = vpack.c.bf16 %v323, %v322
      %v330 = vpack.c.bf16 %v325, %v324
      %v331 = vpack.c.bf16 %v327, %v326
      %v332 = vld [vmem:[%s2] sm:$0x3]
      %v333 = vld [vmem:[#allocation2 + $0x1] sm:$0xff]
      %v334 = vld [vmem:[#allocation2 + $0x11] sm:$0xff]
      %v335 = vld [vmem:[#allocation2 + $0x21] sm:$0xff]
      %v336 = vld [vmem:[#allocation2 + $0x31] sm:$0xff]
      %v337 = vld [vmem:[#allocation2 + $0x41] sm:$0xff]
      %v338 = vld [vmem:[#allocation2 + $0x51] sm:$0xff]
      %v339 = vld [vmem:[#allocation2 + $0x61] sm:$0xff]
      %v340 = vld [vmem:[#allocation2 + $0x71] sm:$0xff]
      %v341 = vpack.c.bf16 %v334, %v333
      %v342 = vpack.c.bf16 %v336, %v335
      %v343 = vpack.c.bf16 %v338, %v337
      %v344 = vpack.c.bf16 %v340, %v339
      %s345 = scalar_lea.vmem %s2, 2
      %v346 = vld [vmem:[%s345] sm:$0x3]
      %v348 = vsel %vm273, %v341, 0
      %v351 = vsel %vm273, %v342, 0
      %v354 = vsel %vm273, %v343, 0
      %v357 = vsel %vm273, %v344, 0
      %vm359 = vcmask 1041408
      %v361 = vsel %vm359, %v346, 0
      %363 = vmatprep.subr.bf16.mxu0 0
      %364 = vmatpush1.bf16.msra.mxu0 %v361
      %365 = vmatprep.subr.bf16.mxu0 0
      %366 = vmatpush1.bf16.msra.mxu0 0
      %367 = vmatprep.subr.bf16.mxu0 0
      %368 = vmatpush1.bf16.msra.mxu0 0
      %369 = vmatprep.subr.bf16.mxu0 0
      %370 = vmatpush1.bf16.msra.mxu0 0
      %371 = vmatprep.subr.bf16.mxu0 0
      %372 = vmatpush1.bf16.msra.mxu0 0
      %373 = vmatprep.subr.bf16.mxu0 0
      %374 = vmatpush1.bf16.msra.mxu0 0
      %375 = vmatprep.subr.bf16.mxu0 0
      %376 = vmatpush1.bf16.msra.mxu0 0
      %377 = vmatprep.subr.bf16.mxu0 0
      %378 = vmatpush1.bf16.msra.mxu0 0
      %379 = vmatprep.subr.bf16.mxu0 0
      %380 = vmatpush1.bf16.msra.mxu0 0
      %381 = vmatprep.subr.bf16.mxu0 0
      %382 = vmatpush1.bf16.msra.mxu0 0
      %383 = vmatprep.subr.bf16.mxu0 0
      %384 = vmatpush1.bf16.msra.mxu0 0
      %385 = vmatprep.subr.bf16.mxu0 0
      %386 = vmatpush1.bf16.msra.mxu0 0
      %387 = vmatprep.subr.bf16.mxu0 0
      %388 = vmatpush1.bf16.msra.mxu0 0
      %389 = vmatprep.subr.bf16.mxu0 0
      %390 = vmatpush1.bf16.msra.mxu0 0
      %391 = vmatprep.subr.bf16.mxu0 0
      %392 = vmatpush1.bf16.msra.mxu0 0
      %393 = vmatprep.subr.bf16.mxu0 0
      %394 = vmatpush1.bf16.msra.mxu0 0
      %395 = vmatprep.mubr.bf16.mxu0 0
      %396 = vmatmul.mubr.bf16.gmra.mrb[0].mxu0 %v348
      %v397 = vpop.f32.mrb[0].mxu0
      %v398 = vadd.f32 0.0, %v397
      %v399 = vpop.f32.mrb[0].mxu0
      %v400 = vpop.f32.mrb[0].mxu0
      %v401 = vadd.f32 0.0, %v400
      %v402 = vpop.f32.mrb[0].mxu0
      %403 = vmatprep.mubr.bf16.mxu0 0
      %404 = vmatmul.mubr.bf16.gmra.mrb[0].mxu0 %v351
      %v405 = vpop.f32.mrb[0].mxu0
      %v406 = vadd.f32 0.0, %v405
      %v407 = vpop.f32.mrb[0].mxu0
      %v408 = vpop.f32.mrb[0].mxu0
      %v409 = vadd.f32 0.0, %v408
      %v410 = vpop.f32.mrb[0].mxu0
      %411 = vmatprep.mubr.bf16.mxu0 0
      %412 = vmatmul.mubr.bf16.gmra.mrb[0].mxu0 %v354
      %v413 = vpop.f32.mrb[0].mxu0
      %v414 = vadd.f32 0.0, %v413
      %v415 = vpop.f32.mrb[0].mxu0
      %v416 = vpop.f32.mrb[0].mxu0
      %v417 = vadd.f32 0.0, %v416
      %v418 = vpop.f32.mrb[0].mxu0
      %419 = vmatprep.mubr.bf16.mxu0 0
      %420 = vmatmul.mubr.bf16.gmra.mrb[0].mxu0 %v357
      %v421 = vpop.f32.mrb[0].mxu0
      %v422 = vadd.f32 0.0, %v421
      %v423 = vpop.f32.mrb[0].mxu0
      %v424 = vpop.f32.mrb[0].mxu0
      %v425 = vadd.f32 0.0, %v424
      %v426 = vpop.f32.mrb[0].mxu0
      %427 = vdwg.mxu0
      %v429 = vsel %vm273, %v328, 0
      %v432 = vsel %vm273, %v329, 0
      %v435 = vsel %vm273, %v330, 0
      %v438 = vsel %vm273, %v331, 0
      %v441 = vsel %vm359, %v332, 0
      %443 = vmatprep.subr.bf16.mxu0 0
      %444 = vmatpush1.bf16.msra.mxu0 %v441
      %445 = vmatprep.subr.bf16.mxu0 0
      %446 = vmatpush1.bf16.msra.mxu0 0
      %447 = vmatprep.subr.bf16.mxu0 0
      %448 = vmatpush1.bf16.msra.mxu0 0
      %449 = vmatprep.subr.bf16.mxu0 0
      %450 = vmatpush1.bf16.msra.mxu0 0
      %451 = vmatprep.subr.bf16.mxu0 0
      %452 = vmatpush1.bf16.msra.mxu0 0
      %453 = vmatprep.subr.bf16.mxu0 0
      %454 = vmatpush1.bf16.msra.mxu0 0
      %455 = vmatprep.subr.bf16.mxu0 0
      %456 = vmatpush1.bf16.msra.mxu0 0
      %457 = vmatprep.subr.bf16.mxu0 0
      %458 = vmatpush1.bf16.msra.mxu0 0
      %459 = vmatprep.subr.bf16.mxu0 0
      %460 = vmatpush1.bf16.msra.mxu0 0
      %461 = vmatprep.subr.bf16.mxu0 0
      %462 = vmatpush1.bf16.msra.mxu0 0
      %463 = vmatprep.subr.bf16.mxu0 0
      %464 = vmatpush1.bf16.msra.mxu0 0
      %465 = vmatprep.subr.bf16.mxu0 0
      %466 = vmatpush1.bf16.msra.mxu0 0
      %467 = vmatprep.subr.bf16.mxu0 0
      %468 = vmatpush1.bf16.msra.mxu0 0
      %469 = vmatprep.subr.bf16.mxu0 0
      %470 = vmatpush1.bf16.msra.mxu0 0
      %471 = vmatprep.subr.bf16.mxu0 0
      %472 = vmatpush1.bf16.msra.mxu0 0
      %473 = vmatprep.subr.bf16.mxu0 0
      %474 = vmatpush1.bf16.msra.mxu0 0
      %475 = vmatprep.mubr.bf16.mxu0 0
      %476 = vmatmul.mubr.bf16.gmra.mrb[0].mxu0 %v429
      %v477 = vpop.f32.mrb[0].mxu0
      %v478 = vadd.f32 %v398, %v477
      %v479 = vpop.f32.mrb[0].mxu0
      %v480 = vpop.f32.mrb[0].mxu0
      %v481 = vadd.f32 %v401, %v480
      %v482 = vpop.f32.mrb[0].mxu0
      %483 = vmatprep.mubr.bf16.mxu0 0
      %484 = vmatmul.mubr.bf16.gmra.mrb[0].mxu0 %v432
      %v485 = vpop.f32.mrb[0].mxu0
      %v486 = vadd.f32 %v406, %v485
      %v487 = vpop.f32.mrb[0].mxu0
      %v488 = vpop.f32.mrb[0].mxu0
      %v489 = vadd.f32 %v409, %v488
      %v490 = vpop.f32.mrb[0].mxu0
      %491 = vmatprep.mubr.bf16.mxu0 0
      %492 = vmatmul.mubr.bf16.gmra.mrb[0].mxu0 %v435
      %v493 = vpop.f32.mrb[0].mxu0
      %v494 = vadd.f32 %v414, %v493
      %v495 = vpop.f32.mrb[0].mxu0
      %v496 = vpop.f32.mrb[0].mxu0
      %v497 = vadd.f32 %v417, %v496
      %v498 = vpop.f32.mrb[0].mxu0
      %499 = vmatprep.mubr.bf16.mxu0 0
      %500 = vmatmul.mubr.bf16.gmra.mrb[0].mxu0 %v438
      %v501 = vpop.f32.mrb[0].mxu0
      %v502 = vadd.f32 %v422, %v501
      %v503 = vpop.f32.mrb[0].mxu0
      %v504 = vpop.f32.mrb[0].mxu0
      %v505 = vadd.f32 %v425, %v504
      %v506 = vpop.f32.mrb[0].mxu0
      %507 = vdwg.mxu0
      %v508 = vld [vmem:[#allocation2 + $0x2] sm:$0xff]
      %v509 = vld [vmem:[#allocation2 + $0x12] sm:$0xff]
      %v510 = vld [vmem:[#allocation2 + $0x22] sm:$0xff]
      %v511 = vld [vmem:[#allocation2 + $0x32] sm:$0xff]
      %v512 = vld [vmem:[#allocation2 + $0x42] sm:$0xff]
      %v513 = vld [vmem:[#allocation2 + $0x52] sm:$0xff]
      %v514 = vld [vmem:[#allocation2 + $0x62] sm:$0xff]
      %v515 = vld [vmem:[#allocation2 + $0x72] sm:$0xff]
      %v516 = vpack.c.bf16 %v509, %v508
      %v517 = vpack.c.bf16 %v511, %v510
      %v518 = vpack.c.bf16 %v513, %v512
      %v519 = vpack.c.bf16 %v515, %v514
      %s520 = scalar_lea.vmem %s2, 4
      %v521 = vld [vmem:[%s520] sm:$0x3]
      %v523 = vsel %vm273, %v516, 0
      %v526 = vsel %vm273, %v517, 0
      %v529 = vsel %vm273, %v518, 0
      %v532 = vsel %vm273, %v519, 0
      %v535 = vsel %vm359, %v521, 0
      %537 = vmatprep.subr.bf16.mxu0 0
      %538 = vmatpush1.bf16.msra.mxu0 %v535
      %539 = vmatprep.subr.bf16.mxu0 0
      %540 = vmatpush1.bf16.msra.mxu0 0
      %541 = vmatprep.subr.bf16.mxu0 0
      %542 = vmatpush1.bf16.msra.mxu0 0
      %543 = vmatprep.subr.bf16.mxu0 0
      %544 = vmatpush1.bf16.msra.mxu0 0
      %545 = vmatprep.subr.bf16.mxu0 0
      %546 = vmatpush1.bf16.msra.mxu0 0
      %547 = vmatprep.subr.bf16.mxu0 0
      %548 = vmatpush1.bf16.msra.mxu0 0
      %549 = vmatprep.subr.bf16.mxu0 0
      %550 = vmatpush1.bf16.msra.mxu0 0
      %551 = vmatprep.subr.bf16.mxu0 0
      %552 = vmatpush1.bf16.msra.mxu0 0
      %553 = vmatprep.subr.bf16.mxu0 0
      %554 = vmatpush1.bf16.msra.mxu0 0
      %555 = vmatprep.subr.bf16.mxu0 0
      %556 = vmatpush1.bf16.msra.mxu0 0
      %557 = vmatprep.subr.bf16.mxu0 0
      %558 = vmatpush1.bf16.msra.mxu0 0
      %559 = vmatprep.subr.bf16.mxu0 0
      %560 = vmatpush1.bf16.msra.mxu0 0
      %561 = vmatprep.subr.bf16.mxu0 0
      %562 = vmatpush1.bf16.msra.mxu0 0
      %563 = vmatprep.subr.bf16.mxu0 0
      %564 = vmatpush1.bf16.msra.mxu0 0
      %565 = vmatprep.subr.bf16.mxu0 0
      %566 = vmatpush1.bf16.msra.mxu0 0
      %567 = vmatprep.subr.bf16.mxu0 0
      %568 = vmatpush1.bf16.msra.mxu0 0
      %569 = vmatprep.mubr.bf16.mxu0 0
      %570 = vmatmul.mubr.bf16.gmra.mrb[0].mxu0 %v523
      %v571 = vpop.f32.mrb[0].mxu0
      %v572 = vadd.f32 0.0, %v571
      %v573 = vpop.f32.mrb[0].mxu0
      %v574 = vpop.f32.mrb[0].mxu0
      %v575 = vadd.f32 0.0, %v574
      %v576 = vpop.f32.mrb[0].mxu0
      %577 = vmatprep.mubr.bf16.mxu0 0
      %578 = vmatmul.mubr.bf16.gmra.mrb[0].mxu0 %v526
      %v579 = vpop.f32.mrb[0].mxu0
      %v580 = vadd.f32 0.0, %v579
      %v581 = vpop.f32.mrb[0].mxu0
      %v582 = vpop.f32.mrb[0].mxu0
      %v583 = vadd.f32 0.0, %v582
      %v584 = vpop.f32.mrb[0].mxu0
      %585 = vmatprep.mubr.bf16.mxu0 0
      %586 = vmatmul.mubr.bf16.gmra.mrb[0].mxu0 %v529
      %v587 = vpop.f32.mrb[0].mxu0
      %v588 = vadd.f32 0.0, %v587
      %v589 = vpop.f32.mrb[0].mxu0
      %v590 = vpop.f32.mrb[0].mxu0
      %v591 = vadd.f32 0.0, %v590
      %v592 = vpop.f32.mrb[0].mxu0
      %593 = vmatprep.mubr.bf16.mxu0 0
      %594 = vmatmul.mubr.bf16.gmra.mrb[0].mxu0 %v532
      %v595 = vpop.f32.mrb[0].mxu0
      %v596 = vadd.f32 0.0, %v595
      %v597 = vpop.f32.mrb[0].mxu0
      %v598 = vpop.f32.mrb[0].mxu0
      %v599 = vadd.f32 0.0, %v598
      %v600 = vpop.f32.mrb[0].mxu0
      %601 = vdwg.mxu0
      %v602 = vadd.f32 %v478, %v572
      %v603 = vadd.f32 %v481, %v575
      %v604 = vadd.f32 %v486, %v580
      %v605 = vadd.f32 %v489, %v583
      %v606 = vadd.f32 %v494, %v588
      %v607 = vadd.f32 %v497, %v591
      %v608 = vadd.f32 %v502, %v596
      %v609 = vadd.f32 %v505, %v599
      %v610 = vld [vmem:[%s311] sm:$0xff]
      %v611 = vld [vmem:[%s311 + $0x10] sm:$0xff]
      %v612 = vld [vmem:[%s311 + $0x20] sm:$0xff]
      %v613 = vld [vmem:[%s311 + $0x30] sm:$0xff]
      %v614 = vld [vmem:[%s311 + $0x40] sm:$0xff]
      %v615 = vld [vmem:[%s311 + $0x50] sm:$0xff]
      %v616 = vld [vmem:[%s311 + $0x60] sm:$0xff]
      %v617 = vld [vmem:[%s311 + $0x70] sm:$0xff]
      %v618 = vpack.c.bf16 %v611, %v610
      %v619 = vpack.c.bf16 %v613, %v612
      %v620 = vpack.c.bf16 %v615, %v614
      %v621 = vpack.c.bf16 %v617, %v616
      %s622 = scalar_lea.vmem %s2, 6
      %v623 = vld [vmem:[%s622] sm:$0x3]
      %v625 = vsel %vm273, %v618, 0
      %v628 = vsel %vm273, %v619, 0
      %v631 = vsel %vm273, %v620, 0
      %v634 = vsel %vm273, %v621, 0
      %v637 = vsel %vm359, %v623, 0
      %639 = vmatprep.subr.bf16.mxu0 0
      %640 = vmatpush1.bf16.msra.mxu0 %v637
      %641 = vmatprep.subr.bf16.mxu0 0
      %642 = vmatpush1.bf16.msra.mxu0 0
      %643 = vmatprep.subr.bf16.mxu0 0
      %644 = vmatpush1.bf16.msra.mxu0 0
      %645 = vmatprep.subr.bf16.mxu0 0
      %646 = vmatpush1.bf16.msra.mxu0 0
      %647 = vmatprep.subr.bf16.mxu0 0
      %648 = vmatpush1.bf16.msra.mxu0 0
      %649 = vmatprep.subr.bf16.mxu0 0
      %650 = vmatpush1.bf16.msra.mxu0 0
      %651 = vmatprep.subr.bf16.mxu0 0
      %652 = vmatpush1.bf16.msra.mxu0 0
      %653 = vmatprep.subr.bf16.mxu0 0
      %654 = vmatpush1.bf16.msra.mxu0 0
      %655 = vmatprep.subr.bf16.mxu0 0
      %656 = vmatpush1.bf16.msra.mxu0 0
      %657 = vmatprep.subr.bf16.mxu0 0
      %658 = vmatpush1.bf16.msra.mxu0 0
      %659 = vmatprep.subr.bf16.mxu0 0
      %660 = vmatpush1.bf16.msra.mxu0 0
      %661 = vmatprep.subr.bf16.mxu0 0
      %662 = vmatpush1.bf16.msra.mxu0 0
      %663 = vmatprep.subr.bf16.mxu0 0
      %664 = vmatpush1.bf16.msra.mxu0 0
      %665 = vmatprep.subr.bf16.mxu0 0
      %666 = vmatpush1.bf16.msra.mxu0 0
      %667 = vmatprep.subr.bf16.mxu0 0
      %668 = vmatpush1.bf16.msra.mxu0 0
      %669 = vmatprep.subr.bf16.mxu0 0
      %670 = vmatpush1.bf16.msra.mxu0 0
      %671 = vmatprep.mubr.bf16.mxu0 0
      %672 = vmatmul.mubr.bf16.gmra.mrb[0].mxu0 %v625
      %v673 = vpop.f32.mrb[0].mxu0
      %v674 = vadd.f32 0.0, %v673
      %v675 = vpop.f32.mrb[0].mxu0
      %v676 = vpop.f32.mrb[0].mxu0
      %v677 = vadd.f32 0.0, %v676
      %v678 = vpop.f32.mrb[0].mxu0
      %679 = vmatprep.mubr.bf16.mxu0 0
      %680 = vmatmul.mubr.bf16.gmra.mrb[0].mxu0 %v628
      %v681 = vpop.f32.mrb[0].mxu0
      %v682 = vadd.f32 0.0, %v681
      %v683 = vpop.f32.mrb[0].mxu0
      %v684 = vpop.f32.mrb[0].mxu0
      %v685 = vadd.f32 0.0, %v684
      %v686 = vpop.f32.mrb[0].mxu0
      %687 = vmatprep.mubr.bf16.mxu0 0
      %688 = vmatmul.mubr.bf16.gmra.mrb[0].mxu0 %v631
      %v689 = vpop.f32.mrb[0].mxu0
      %v690 = vadd.f32 0.0, %v689
      %v691 = vpop.f32.mrb[0].mxu0
      %v692 = vpop.f32.mrb[0].mxu0
      %v693 = vadd.f32 0.0, %v692
      %v694 = vpop.f32.mrb[0].mxu0
      %695 = vmatprep.mubr.bf16.mxu0 0
      %696 = vmatmul.mubr.bf16.gmra.mrb[0].mxu0 %v634
      %v697 = vpop.f32.mrb[0].mxu0
      %v698 = vadd.f32 0.0, %v697
      %v699 = vpop.f32.mrb[0].mxu0
      %v700 = vpop.f32.mrb[0].mxu0
      %v701 = vadd.f32 0.0, %v700
      %v702 = vpop.f32.mrb[0].mxu0
      %703 = vdwg.mxu0
      %v704 = vadd.f32 %v602, %v674
      %v705 = vadd.f32 %v603, %v677
      %v706 = vadd.f32 %v604, %v682
      %v707 = vadd.f32 %v605, %v685
      %v708 = vadd.f32 %v606, %v690
      %v709 = vadd.f32 %v607, %v693
      %v710 = vadd.f32 %v608, %v698
      %v711 = vadd.f32 %v609, %v701
      %v712 = vld [vmem:[%s311 + $0x1] sm:$0xff]
      %v713 = vld [vmem:[%s311 + $0x11] sm:$0xff]
      %v714 = vld [vmem:[%s311 + $0x21] sm:$0xff]
      %v715 = vld [vmem:[%s311 + $0x31] sm:$0xff]
      %v716 = vld [vmem:[%s311 + $0x41] sm:$0xff]
      %v717 = vld [vmem:[%s311 + $0x51] sm:$0xff]
      %v718 = vld [vmem:[%s311 + $0x61] sm:$0xff]
      %v719 = vld [vmem:[%s311 + $0x71] sm:$0xff]
      %v720 = vpack.c.bf16 %v713, %v712
      %v721 = vpack.c.bf16 %v715, %v714
      %v722 = vpack.c.bf16 %v717, %v716
      %v723 = vpack.c.bf16 %v719, %v718
      %s724 = scalar_lea.vmem %s2, 8
      %v725 = vld [vmem:[%s724] sm:$0x3]
      %v727 = vsel %vm273, %v720, 0
      %v730 = vsel %vm273, %v721, 0
      %v733 = vsel %vm273, %v722, 0
      %v736 = vsel %vm273, %v723, 0
      %v739 = vsel %vm359, %v725, 0
      %741 = vmatprep.subr.bf16.mxu0 0
      %742 = vmatpush1.bf16.msra.mxu0 %v739
      %743 = vmatprep.subr.bf16.mxu0 0
      %744 = vmatpush1.bf16.msra.mxu0 0
      %745 = vmatprep.subr.bf16.mxu0 0
      %746 = vmatpush1.bf16.msra.mxu0 0
      %747 = vmatprep.subr.bf16.mxu0 0
      %748 = vmatpush1.bf16.msra.mxu0 0
      %749 = vmatprep.subr.bf16.mxu0 0
      %750 = vmatpush1.bf16.msra.mxu0 0
      %751 = vmatprep.subr.bf16.mxu0 0
      %752 = vmatpush1.bf16.msra.mxu0 0
      %753 = vmatprep.subr.bf16.mxu0 0
      %754 = vmatpush1.bf16.msra.mxu0 0
      %755 = vmatprep.subr.bf16.mxu0 0
      %756 = vmatpush1.bf16.msra.mxu0 0
      %757 = vmatprep.subr.bf16.mxu0 0
      %758 = vmatpush1.bf16.msra.mxu0 0
      %759 = vmatprep.subr.bf16.mxu0 0
      %760 = vmatpush1.bf16.msra.mxu0 0
      %761 = vmatprep.subr.bf16.mxu0 0
      %762 = vmatpush1.bf16.msra.mxu0 0
      %763 = vmatprep.subr.bf16.mxu0 0
      %764 = vmatpush1.bf16.msra.mxu0 0
      %765 = vmatprep.subr.bf16.mxu0 0
      %766 = vmatpush1.bf16.msra.mxu0 0
      %767 = vmatprep.subr.bf16.mxu0 0
      %768 = vmatpush1.bf16.msra.mxu0 0
      %769 = vmatprep.subr.bf16.mxu0 0
      %770 = vmatpush1.bf16.msra.mxu0 0
      %771 = vmatprep.subr.bf16.mxu0 0
      %772 = vmatpush1.bf16.msra.mxu0 0
      %773 = vmatprep.mubr.bf16.mxu0 0
      %774 = vmatmul.mubr.bf16.gmra.mrb[0].mxu0 %v727
      %v775 = vpop.f32.mrb[0].mxu0
      %v776 = vadd.f32 0.0, %v775
      %v777 = vpop.f32.mrb[0].mxu0
      %v778 = vpop.f32.mrb[0].mxu0
      %v779 = vadd.f32 0.0, %v778
      %v780 = vpop.f32.mrb[0].mxu0
      %781 = vmatprep.mubr.bf16.mxu0 0
      %782 = vmatmul.mubr.bf16.gmra.mrb[0].mxu0 %v730
      %v783 = vpop.f32.mrb[0].mxu0
      %v784 = vadd.f32 0.0, %v783
      %v785 = vpop.f32.mrb[0].mxu0
      %v786 = vpop.f32.mrb[0].mxu0
      %v787 = vadd.f32 0.0, %v786
      %v788 = vpop.f32.mrb[0].mxu0
      %789 = vmatprep.mubr.bf16.mxu0 0
      %790 = vmatmul.mubr.bf16.gmra.mrb[0].mxu0 %v733
      %v791 = vpop.f32.mrb[0].mxu0
      %v792 = vadd.f32 0.0, %v791
      %v793 = vpop.f32.mrb[0].mxu0
      %v794 = vpop.f32.mrb[0].mxu0
      %v795 = vadd.f32 0.0, %v794
      %v796 = vpop.f32.mrb[0].mxu0
      %797 = vmatprep.mubr.bf16.mxu0 0
      %798 = vmatmul.mubr.bf16.gmra.mrb[0].mxu0 %v736
      %v799 = vpop.f32.mrb[0].mxu0
      %v800 = vadd.f32 0.0, %v799
      %v801 = vpop.f32.mrb[0].mxu0
      %v802 = vpop.f32.mrb[0].mxu0
      %v803 = vadd.f32 0.0, %v802
      %v804 = vpop.f32.mrb[0].mxu0
      %805 = vdwg.mxu0
      %v806 = vadd.f32 %v704, %v776
      %v807 = vadd.f32 %v705, %v779
      %v808 = vadd.f32 %v706, %v784
      %v809 = vadd.f32 %v707, %v787
      %v810 = vadd.f32 %v708, %v792
      %v811 = vadd.f32 %v709, %v795
      %v812 = vadd.f32 %v710, %v800
      %v813 = vadd.f32 %v711, %v803
      %v814 = vld [vmem:[%s311 + $0x2] sm:$0xff]
      %v815 = vld [vmem:[%s311 + $0x12] sm:$0xff]
      %v816 = vld [vmem:[%s311 + $0x22] sm:$0xff]
      %v817 = vld [vmem:[%s311 + $0x32] sm:$0xff]
      %v818 = vld [vmem:[%s311 + $0x42] sm:$0xff]
      %v819 = vld [vmem:[%s311 + $0x52] sm:$0xff]
      %v820 = vld [vmem:[%s311 + $0x62] sm:$0xff]
      %v821 = vld [vmem:[%s311 + $0x72] sm:$0xff]
      %v822 = vpack.c.bf16 %v815, %v814
      %v823 = vpack.c.bf16 %v817, %v816
      %v824 = vpack.c.bf16 %v819, %v818
      %v825 = vpack.c.bf16 %v821, %v820
      %s826 = scalar_lea.vmem %s2, 10
      %v827 = vld [vmem:[%s826] sm:$0x3]
      %v829 = vsel %vm273, %v822, 0
      %v832 = vsel %vm273, %v823, 0
      %v835 = vsel %vm273, %v824, 0
      %v838 = vsel %vm273, %v825, 0
      %v841 = vsel %vm359, %v827, 0
      %843 = vmatprep.subr.bf16.mxu0 0
      %844 = vmatpush1.bf16.msra.mxu0 %v841
      %845 = vmatprep.subr.bf16.mxu0 0
      %846 = vmatpush1.bf16.msra.mxu0 0
      %847 = vmatprep.subr.bf16.mxu0 0
      %848 = vmatpush1.bf16.msra.mxu0 0
      %849 = vmatprep.subr.bf16.mxu0 0
      %850 = vmatpush1.bf16.msra.mxu0 0
      %851 = vmatprep.subr.bf16.mxu0 0
      %852 = vmatpush1.bf16.msra.mxu0 0
      %853 = vmatprep.subr.bf16.mxu0 0
      %854 = vmatpush1.bf16.msra.mxu0 0
      %855 = vmatprep.subr.bf16.mxu0 0
      %856 = vmatpush1.bf16.msra.mxu0 0
      %857 = vmatprep.subr.bf16.mxu0 0
      %858 = vmatpush1.bf16.msra.mxu0 0
      %859 = vmatprep.subr.bf16.mxu0 0
      %860 = vmatpush1.bf16.msra.mxu0 0
      %861 = vmatprep.subr.bf16.mxu0 0
      %862 = vmatpush1.bf16.msra.mxu0 0
      %863 = vmatprep.subr.bf16.mxu0 0
      %864 = vmatpush1.bf16.msra.mxu0 0
      %865 = vmatprep.subr.bf16.mxu0 0
      %866 = vmatpush1.bf16.msra.mxu0 0
      %867 = vmatprep.subr.bf16.mxu0 0
      %868 = vmatpush1.bf16.msra.mxu0 0
      %869 = vmatprep.subr.bf16.mxu0 0
      %870 = vmatpush1.bf16.msra.mxu0 0
      %871 = vmatprep.subr.bf16.mxu0 0
      %872 = vmatpush1.bf16.msra.mxu0 0
      %873 = vmatprep.subr.bf16.mxu0 0
      %874 = vmatpush1.bf16.msra.mxu0 0
      %875 = vmatprep.mubr.bf16.mxu0 0
      %876 = vmatmul.mubr.bf16.gmra.mrb[0].mxu0 %v829
      %v877 = vpop.f32.mrb[0].mxu0
      %v878 = vadd.f32 0.0, %v877
      %v879 = vpop.f32.mrb[0].mxu0
      %v880 = vpop.f32.mrb[0].mxu0
      %v881 = vadd.f32 0.0, %v880
      %v882 = vpop.f32.mrb[0].mxu0
      %883 = vmatprep.mubr.bf16.mxu0 0
      %884 = vmatmul.mubr.bf16.gmra.mrb[0].mxu0 %v832
      %v885 = vpop.f32.mrb[0].mxu0
      %v886 = vadd.f32 0.0, %v885
      %v887 = vpop.f32.mrb[0].mxu0
      %v888 = vpop.f32.mrb[0].mxu0
      %v889 = vadd.f32 0.0, %v888
      %v890 = vpop.f32.mrb[0].mxu0
      %891 = vmatprep.mubr.bf16.mxu0 0
      %892 = vmatmul.mubr.bf16.gmra.mrb[0].mxu0 %v835
      %v893 = vpop.f32.mrb[0].mxu0
      %v894 = vadd.f32 0.0, %v893
      %v895 = vpop.f32.mrb[0].mxu0
      %v896 = vpop.f32.mrb[0].mxu0
      %v897 = vadd.f32 0.0, %v896
      %v898 = vpop.f32.mrb[0].mxu0
      %899 = vmatprep.mubr.bf16.mxu0 0
      %900 = vmatmul.mubr.bf16.gmra.mrb[0].mxu0 %v838
      %v901 = vpop.f32.mrb[0].mxu0
      %v902 = vadd.f32 0.0, %v901
      %v903 = vpop.f32.mrb[0].mxu0
      %v904 = vpop.f32.mrb[0].mxu0
      %v905 = vadd.f32 0.0, %v904
      %v906 = vpop.f32.mrb[0].mxu0
      %907 = vdwg.mxu0
      %v908 = vadd.f32 %v806, %v878
      %v909 = vadd.f32 %v807, %v881
      %v910 = vadd.f32 %v808, %v886
      %v911 = vadd.f32 %v809, %v889
      %v912 = vadd.f32 %v810, %v894
      %v913 = vadd.f32 %v811, %v897
      %v914 = vadd.f32 %v812, %v902
      %v915 = vadd.f32 %v813, %v905
      %s916 = scalar_lea.vmem [#allocation2], 32
      %v917 = vld [vmem:[%s916] sm:$0xff]
      %v918 = vld [vmem:[%s916 + $0x10] sm:$0xff]
      %v919 = vld [vmem:[%s916 + $0x20] sm:$0xff]
      %v920 = vld [vmem:[%s916 + $0x30] sm:$0xff]
      %v921 = vld [vmem:[%s916 + $0x40] sm:$0xff]
      %v922 = vld [vmem:[%s916 + $0x50] sm:$0xff]
      %v923 = vld [vmem:[%s916 + $0x60] sm:$0xff]
      %v924 = vld [vmem:[%s916 + $0x70] sm:$0xff]
      %v925 = vpack.c.bf16 %v918, %v917
      %v926 = vpack.c.bf16 %v920, %v919
      %v927 = vpack.c.bf16 %v922, %v921
      %v928 = vpack.c.bf16 %v924, %v923
      %s929 = scalar_lea.vmem %s2, 12
      %v930 = vld [vmem:[%s929] sm:$0x3]
      %v932 = vsel %vm273, %v925, 0
      %v935 = vsel %vm273, %v926, 0
      %v938 = vsel %vm273, %v927, 0
      %v941 = vsel %vm273, %v928, 0
      %v944 = vsel %vm359, %v930, 0
      %946 = vmatprep.subr.bf16.mxu0 0
      %947 = vmatpush1.bf16.msra.mxu0 %v944
      %948 = vmatprep.subr.bf16.mxu0 0
      %949 = vmatpush1.bf16.msra.mxu0 0
      %950 = vmatprep.subr.bf16.mxu0 0
      %951 = vmatpush1.bf16.msra.mxu0 0
      %952 = vmatprep.subr.bf16.mxu0 0
      %953 = vmatpush1.bf16.msra.mxu0 0
      %954 = vmatprep.subr.bf16.mxu0 0
      %955 = vmatpush1.bf16.msra.mxu0 0
      %956 = vmatprep.subr.bf16.mxu0 0
      %957 = vmatpush1.bf16.msra.mxu0 0
      %958 = vmatprep.subr.bf16.mxu0 0
      %959 = vmatpush1.bf16.msra.mxu0 0
      %960 = vmatprep.subr.bf16.mxu0 0
      %961 = vmatpush1.bf16.msra.mxu0 0
      %962 = vmatprep.subr.bf16.mxu0 0
      %963 = vmatpush1.bf16.msra.mxu0 0
      %964 = vmatprep.subr.bf16.mxu0 0
      %965 = vmatpush1.bf16.msra.mxu0 0
      %966 = vmatprep.subr.bf16.mxu0 0
      %967 = vmatpush1.bf16.msra.mxu0 0
      %968 = vmatprep.subr.bf16.mxu0 0
      %969 = vmatpush1.bf16.msra.mxu0 0
      %970 = vmatprep.subr.bf16.mxu0 0
      %971 = vmatpush1.bf16.msra.mxu0 0
      %972 = vmatprep.subr.bf16.mxu0 0
      %973 = vmatpush1.bf16.msra.mxu0 0
      %974 = vmatprep.subr.bf16.mxu0 0
      %975 = vmatpush1.bf16.msra.mxu0 0
      %976 = vmatprep.subr.bf16.mxu0 0
      %977 = vmatpush1.bf16.msra.mxu0 0
      %978 = vmatprep.mubr.bf16.mxu0 0
      %979 = vmatmul.mubr.bf16.gmra.mrb[0].mxu0 %v932
      %v980 = vpop.f32.mrb[0].mxu0
      %v981 = vadd.f32 0.0, %v980
      %v982 = vpop.f32.mrb[0].mxu0
      %v983 = vpop.f32.mrb[0].mxu0
      %v984 = vadd.f32 0.0, %v983
      %v985 = vpop.f32.mrb[0].mxu0
      %986 = vmatprep.mubr.bf16.mxu0 0
      %987 = vmatmul.mubr.bf16.gmra.mrb[0].mxu0 %v935
      %v988 = vpop.f32.mrb[0].mxu0
      %v989 = vadd.f32 0.0, %v988
      %v990 = vpop.f32.mrb[0].mxu0
      %v991 = vpop.f32.mrb[0].mxu0
      %v992 = vadd.f32 0.0, %v991
      %v993 = vpop.f32.mrb[0].mxu0
      %994 = vmatprep.mubr.bf16.mxu0 0
      %995 = vmatmul.mubr.bf16.gmra.mrb[0].mxu0 %v938
      %v996 = vpop.f32.mrb[0].mxu0
      %v997 = vadd.f32 0.0, %v996
      %v998 = vpop.f32.mrb[0].mxu0
      %v999 = vpop.f32.mrb[0].mxu0
      %v1000 = vadd.f32 0.0, %v999
      %v1001 = vpop.f32.mrb[0].mxu0
      %1002 = vmatprep.mubr.bf16.mxu0 0
      %1003 = vmatmul.mubr.bf16.gmra.mrb[0].mxu0 %v941
      %v1004 = vpop.f32.mrb[0].mxu0
      %v1005 = vadd.f32 0.0, %v1004
      %v1006 = vpop.f32.mrb[0].mxu0
      %v1007 = vpop.f32.mrb[0].mxu0
      %v1008 = vadd.f32 0.0, %v1007
      %v1009 = vpop.f32.mrb[0].mxu0
      %1010 = vdwg.mxu0
      %v1011 = vadd.f32 %v908, %v981
      %v1012 = vadd.f32 %v909, %v984
      %v1013 = vadd.f32 %v910, %v989
      %v1014 = vadd.f32 %v911, %v992
      %v1015 = vadd.f32 %v912, %v997
      %v1016 = vadd.f32 %v913, %v1000
      %v1017 = vadd.f32 %v914, %v1005
      %v1018 = vadd.f32 %v915, %v1008
      %v1019 = vld [vmem:[%s916 + $0x1] sm:$0xff]
      %v1020 = vld [vmem:[%s916 + $0x11] sm:$0xff]
      %v1021 = vld [vmem:[%s916 + $0x21] sm:$0xff]
      %v1022 = vld [vmem:[%s916 + $0x31] sm:$0xff]
      %v1023 = vld [vmem:[%s916 + $0x41] sm:$0xff]
      %v1024 = vld [vmem:[%s916 + $0x51] sm:$0xff]
      %v1025 = vld [vmem:[%s916 + $0x61] sm:$0xff]
      %v1026 = vld [vmem:[%s916 + $0x71] sm:$0xff]
      %v1027 = vpack.c.bf16 %v1020, %v1019
      %v1028 = vpack.c.bf16 %v1022, %v1021
      %v1029 = vpack.c.bf16 %v1024, %v1023
      %v1030 = vpack.c.bf16 %v1026, %v1025
      %s1031 = scalar_lea.vmem %s2, 14
      %v1032 = vld [vmem:[%s1031] sm:$0x3]
      %v1034 = vsel %vm273, %v1027, 0
      %v1037 = vsel %vm273, %v1028, 0
      %v1040 = vsel %vm273, %v1029, 0
      %v1043 = vsel %vm273, %v1030, 0
      %v1046 = vsel %vm359, %v1032, 0
      %1048 = vmatprep.subr.bf16.mxu0 0
      %1049 = vmatpush1.bf16.msra.mxu0 %v1046
      %1050 = vmatprep.subr.bf16.mxu0 0
      %1051 = vmatpush1.bf16.msra.mxu0 0
      %1052 = vmatprep.subr.bf16.mxu0 0
      %1053 = vmatpush1.bf16.msra.mxu0 0
      %1054 = vmatprep.subr.bf16.mxu0 0
      %1055 = vmatpush1.bf16.msra.mxu0 0
      %1056 = vmatprep.subr.bf16.mxu0 0
      %1057 = vmatpush1.bf16.msra.mxu0 0
      %1058 = vmatprep.subr.bf16.mxu0 0
      %1059 = vmatpush1.bf16.msra.mxu0 0
      %1060 = vmatprep.subr.bf16.mxu0 0
      %1061 = vmatpush1.bf16.msra.mxu0 0
      %1062 = vmatprep.subr.bf16.mxu0 0
      %1063 = vmatpush1.bf16.msra.mxu0 0
      %1064 = vmatprep.subr.bf16.mxu0 0
      %1065 = vmatpush1.bf16.msra.mxu0 0
      %1066 = vmatprep.subr.bf16.mxu0 0
      %1067 = vmatpush1.bf16.msra.mxu0 0
      %1068 = vmatprep.subr.bf16.mxu0 0
      %1069 = vmatpush1.bf16.msra.mxu0 0
      %1070 = vmatprep.subr.bf16.mxu0 0
      %1071 = vmatpush1.bf16.msra.mxu0 0
      %1072 = vmatprep.subr.bf16.mxu0 0
      %1073 = vmatpush1.bf16.msra.mxu0 0
      %1074 = vmatprep.subr.bf16.mxu0 0
      %1075 = vmatpush1.bf16.msra.mxu0 0
      %1076 = vmatprep.subr.bf16.mxu0 0
      %1077 = vmatpush1.bf16.msra.mxu0 0
      %1078 = vmatprep.subr.bf16.mxu0 0
      %1079 = vmatpush1.bf16.msra.mxu0 0
      %1080 = vmatprep.mubr.bf16.mxu0 0
      %1081 = vmatmul.mubr.bf16.gmra.mrb[0].mxu0 %v1034
      %v1082 = vpop.f32.mrb[0].mxu0
      %v1083 = vadd.f32 0.0, %v1082
      %v1084 = vpop.f32.mrb[0].mxu0
      %v1085 = vpop.f32.mrb[0].mxu0
      %v1086 = vadd.f32 0.0, %v1085
      %v1087 = vpop.f32.mrb[0].mxu0
      %1088 = vmatprep.mubr.bf16.mxu0 0
      %1089 = vmatmul.mubr.bf16.gmra.mrb[0].mxu0 %v1037
      %v1090 = vpop.f32.mrb[0].mxu0
      %v1091 = vadd.f32 0.0, %v1090
      %v1092 = vpop.f32.mrb[0].mxu0
      %v1093 = vpop.f32.mrb[0].mxu0
      %v1094 = vadd.f32 0.0, %v1093
      %v1095 = vpop.f32.mrb[0].mxu0
      %1096 = vmatprep.mubr.bf16.mxu0 0
      %1097 = vmatmul.mubr.bf16.gmra.mrb[0].mxu0 %v1040
      %v1098 = vpop.f32.mrb[0].mxu0
      %v1099 = vadd.f32 0.0, %v1098
      %v1100 = vpop.f32.mrb[0].mxu0
      %v1101 = vpop.f32.mrb[0].mxu0
      %v1102 = vadd.f32 0.0, %v1101
      %v1103 = vpop.f32.mrb[0].mxu0
      %1104 = vmatprep.mubr.bf16.mxu0 0
      %1105 = vmatmul.mubr.bf16.gmra.mrb[0].mxu0 %v1043
      %v1106 = vpop.f32.mrb[0].mxu0
      %v1107 = vadd.f32 0.0, %v1106
      %v1108 = vpop.f32.mrb[0].mxu0
      %v1109 = vpop.f32.mrb[0].mxu0
      %v1110 = vadd.f32 0.0, %v1109
      %v1111 = vpop.f32.mrb[0].mxu0
      %1112 = vdwg.mxu0
      %v1113 = vadd.f32 %v1011, %v1083
      %v1114 = vadd.f32 %v1012, %v1086
      %v1115 = vadd.f32 %v1013, %v1091
      %v1116 = vadd.f32 %v1014, %v1094
      %v1117 = vadd.f32 %v1015, %v1099
      %v1118 = vadd.f32 %v1016, %v1102
      %v1119 = vadd.f32 %v1017, %v1107
      %v1120 = vadd.f32 %v1018, %v1110
      %v1121 = vld [vmem:[%s916 + $0x2] sm:$0xff]
      %v1122 = vld [vmem:[%s916 + $0x12] sm:$0xff]
      %v1123 = vld [vmem:[%s916 + $0x22] sm:$0xff]
      %v1124 = vld [vmem:[%s916 + $0x32] sm:$0xff]
      %v1125 = vld [vmem:[%s916 + $0x42] sm:$0xff]
      %v1126 = vld [vmem:[%s916 + $0x52] sm:$0xff]
      %v1127 = vld [vmem:[%s916 + $0x62] sm:$0xff]
      %v1128 = vld [vmem:[%s916 + $0x72] sm:$0xff]
      %v1129 = vpack.c.bf16 %v1122, %v1121
      %v1130 = vpack.c.bf16 %v1124, %v1123
      %v1131 = vpack.c.bf16 %v1126, %v1125
      %v1132 = vpack.c.bf16 %v1128, %v1127
      %s1133 = scalar_lea.vmem %s2, 16
      %v1134 = vld [vmem:[%s1133] sm:$0x3]
      %v1136 = vsel %vm273, %v1129, 0
      %v1139 = vsel %vm273, %v1130, 0
      %v1142 = vsel %vm273, %v1131, 0
      %v1145 = vsel %vm273, %v1132, 0
      %v1148 = vsel %vm359, %v1134, 0
      %1150 = vmatprep.subr.bf16.mxu0 0
      %1151 = vmatpush1.bf16.msra.mxu0 %v1148
      %1152 = vmatprep.subr.bf16.mxu0 0
      %1153 = vmatpush1.bf16.msra.mxu0 0
      %1154 = vmatprep.subr.bf16.mxu0 0
      %1155 = vmatpush1.bf16.msra.mxu0 0
      %1156 = vmatprep.subr.bf16.mxu0 0
      %1157 = vmatpush1.bf16.msra.mxu0 0
      %1158 = vmatprep.subr.bf16.mxu0 0
      %1159 = vmatpush1.bf16.msra.mxu0 0
      %1160 = vmatprep.subr.bf16.mxu0 0
      %1161 = vmatpush1.bf16.msra.mxu0 0
      %1162 = vmatprep.subr.bf16.mxu0 0
      %1163 = vmatpush1.bf16.msra.mxu0 0
      %1164 = vmatprep.subr.bf16.mxu0 0
      %1165 = vmatpush1.bf16.msra.mxu0 0
      %1166 = vmatprep.subr.bf16.mxu0 0
      %1167 = vmatpush1.bf16.msra.mxu0 0
      %1168 = vmatprep.subr.bf16.mxu0 0
      %1169 = vmatpush1.bf16.msra.mxu0 0
      %1170 = vmatprep.subr.bf16.mxu0 0
      %1171 = vmatpush1.bf16.msra.mxu0 0
      %1172 = vmatprep.subr.bf16.mxu0 0
      %1173 = vmatpush1.bf16.msra.mxu0 0
      %1174 = vmatprep.subr.bf16.mxu0 0
      %1175 = vmatpush1.bf16.msra.mxu0 0
      %1176 = vmatprep.subr.bf16.mxu0 0
      %1177 = vmatpush1.bf16.msra.mxu0 0
      %1178 = vmatprep.subr.bf16.mxu0 0
      %1179 = vmatpush1.bf16.msra.mxu0 0
      %1180 = vmatprep.subr.bf16.mxu0 0
      %1181 = vmatpush1.bf16.msra.mxu0 0
      %1182 = vmatprep.mubr.bf16.mxu0 0
      %1183 = vmatmul.mubr.bf16.gmra.mrb[0].mxu0 %v1136
      %v1184 = vpop.f32.mrb[0].mxu0
      %v1185 = vadd.f32 0.0, %v1184
      %v1186 = vpop.f32.mrb[0].mxu0
      %v1187 = vpop.f32.mrb[0].mxu0
      %v1188 = vadd.f32 0.0, %v1187
      %v1189 = vpop.f32.mrb[0].mxu0
      %1190 = vmatprep.mubr.bf16.mxu0 0
      %1191 = vmatmul.mubr.bf16.gmra.mrb[0].mxu0 %v1139
      %v1192 = vpop.f32.mrb[0].mxu0
      %v1193 = vadd.f32 0.0, %v1192
      %v1194 = vpop.f32.mrb[0].mxu0
      %v1195 = vpop.f32.mrb[0].mxu0
      %v1196 = vadd.f32 0.0, %v1195
      %v1197 = vpop.f32.mrb[0].mxu0
      %1198 = vmatprep.mubr.bf16.mxu0 0
      %1199 = vmatmul.mubr.bf16.gmra.mrb[0].mxu0 %v1142
      %v1200 = vpop.f32.mrb[0].mxu0
      %v1201 = vadd.f32 0.0, %v1200
      %v1202 = vpop.f32.mrb[0].mxu0
      %v1203 = vpop.f32.mrb[0].mxu0
      %v1204 = vadd.f32 0.0, %v1203
      %v1205 = vpop.f32.mrb[0].mxu0
      %1206 = vmatprep.mubr.bf16.mxu0 0
      %1207 = vmatmul.mubr.bf16.gmra.mrb[0].mxu0 %v1145
      %v1208 = vpop.f32.mrb[0].mxu0
      %v1209 = vadd.f32 0.0, %v1208
      %v1210 = vpop.f32.mrb[0].mxu0
      %v1211 = vpop.f32.mrb[0].mxu0
      %v1212 = vadd.f32 0.0, %v1211
      %v1213 = vpop.f32.mrb[0].mxu0
      %1214 = vdwg.mxu0
      %v1215 = vadd.f32 %v1113, %v1185
      %v1216 = vadd.f32 %v1114, %v1188
      %v1217 = vadd.f32 %v1115, %v1193
      %v1218 = vadd.f32 %v1116, %v1196
      %v1219 = vadd.f32 %v1117, %v1201
      %v1220 = vadd.f32 %v1118, %v1204
      %v1221 = vadd.f32 %v1119, %v1209
      %v1222 = vadd.f32 %v1120, %v1212
      %v1223 = vld [vmem:[%s3] sm:$0x1]
      %v1225 = vlaneseq
      %v1226 = vshrl.u32 %v1225, 7
      %v1227 = vsub.s32 0, %v1226
      %v1228 = vrot.slane %v1223, %v1227
      %v1230 = vadd.f32 %v1215, %v1228
      %v1231 = vadd.f32 %v1216, %v1228
      %v1232 = vadd.f32 %v1217, %v1228
      %v1233 = vadd.f32 %v1218, %v1228
      %v1234 = vadd.f32 %v1219, %v1228
      %v1235 = vadd.f32 %v1220, %v1228
      %v1236 = vadd.f32 %v1221, %v1228
      %v1237 = vadd.f32 %v1222, %v1228
      %v1238 = vld [vmem:[%s266] sm:$0xff]
      %v1239 = vld [vmem:[%s266 + $0x8] sm:$0xff]
      %v1240 = vld [vmem:[%s266 + $0x10] sm:$0xff]
      %v1241 = vld [vmem:[%s266 + $0x18] sm:$0xff]
      %v1242 = vld [vmem:[%s266 + $0x20] sm:$0xff]
      %v1243 = vld [vmem:[%s266 + $0x28] sm:$0xff]
      %v1244 = vld [vmem:[%s266 + $0x30] sm:$0xff]
      %v1245 = vld [vmem:[%s266 + $0x38] sm:$0xff]
      %v1246 = vld [vmem:[%s266 + $0x40] sm:$0xff]
      %v1247 = vld [vmem:[%s266 + $0x48] sm:$0xff]
      %v1248 = vld [vmem:[%s266 + $0x50] sm:$0xff]
      %v1249 = vld [vmem:[%s266 + $0x58] sm:$0xff]
      %v1250 = vld [vmem:[%s266 + $0x60] sm:$0xff]
      %v1251 = vld [vmem:[%s266 + $0x68] sm:$0xff]
      %v1252 = vld [vmem:[%s266 + $0x70] sm:$0xff]
      %v1253 = vld [vmem:[%s266 + $0x78] sm:$0xff]
      %v1254 = vld [vmem:[%s266 + $0x80] sm:$0xff]
      %v1255 = vld [vmem:[%s266 + $0x88] sm:$0xff]
      %v1256 = vld [vmem:[%s266 + $0x90] sm:$0xff]
      %v1257 = vld [vmem:[%s266 + $0x98] sm:$0xff]
      %v1258 = vld [vmem:[%s266 + $0xa0] sm:$0xff]
      %v1259 = vld [vmem:[%s266 + $0xa8] sm:$0xff]
      %v1260 = vld [vmem:[%s266 + $0xb0] sm:$0xff]
      %v1261 = vld [vmem:[%s266 + $0xb8] sm:$0xff]
      %v1262 = vld [vmem:[%s266 + $0xc0] sm:$0xff]
      %v1263 = vld [vmem:[%s266 + $0xc8] sm:$0xff]
      %v1264 = vld [vmem:[%s266 + $0xd0] sm:$0xff]
      %v1265 = vld [vmem:[%s266 + $0xd8] sm:$0xff]
      %v1266 = vld [vmem:[%s266 + $0xe0] sm:$0xff]
      %v1267 = vld [vmem:[%s266 + $0xe8] sm:$0xff]
      %v1268 = vld [vmem:[%s266 + $0xf0] sm:$0xff]
      %v1269 = vld [vmem:[%s266 + $0xf8] sm:$0xff]
      %v1270 = vpack.c.bf16 %v1239, %v1238
      %v1271 = vpack.c.bf16 %v1241, %v1240
      %v1272 = vpack.c.bf16 %v1243, %v1242
      %v1273 = vpack.c.bf16 %v1245, %v1244
      %v1274 = vpack.c.bf16 %v1247, %v1246
      %v1275 = vpack.c.bf16 %v1249, %v1248
      %v1276 = vpack.c.bf16 %v1251, %v1250
      %v1277 = vpack.c.bf16 %v1253, %v1252
      %v1278 = vpack.c.bf16 %v1255, %v1254
      %v1279 = vpack.c.bf16 %v1257, %v1256
      %v1280 = vpack.c.bf16 %v1259, %v1258
      %v1281 = vpack.c.bf16 %v1261, %v1260
      %v1282 = vpack.c.bf16 %v1263, %v1262
      %v1283 = vpack.c.bf16 %v1265, %v1264
      %v1284 = vpack.c.bf16 %v1267, %v1266
      %v1285 = vpack.c.bf16 %v1269, %v1268
      %v1286 = vld [vmem:[%s4] sm:$0x3]
      %v1288 = vsel %vm273, %v1270, 0
      %v1291 = vsel %vm273, %v1271, 0
      %v1294 = vsel %vm273, %v1272, 0
      %v1297 = vsel %vm273, %v1273, 0
      %v1300 = vsel %vm273, %v1274, 0
      %v1303 = vsel %vm273, %v1275, 0
      %v1306 = vsel %vm273, %v1276, 0
      %v1309 = vsel %vm273, %v1277, 0
      %v1312 = vsel %vm273, %v1278, 0
      %v1315 = vsel %vm273, %v1279, 0
      %v1318 = vsel %vm273, %v1280, 0
      %v1321 = vsel %vm273, %v1281, 0
      %v1324 = vsel %vm273, %v1282, 0
      %v1327 = vsel %vm273, %v1283, 0
      %v1330 = vsel %vm273, %v1284, 0
      %v1333 = vsel %vm273, %v1285, 0
      %v1336 = vsel %vm359, %v1286, 0
      %1338 = vmatprep.subr.bf16.mxu0 0
      %1339 = vmatpush1.bf16.msra.mxu0 %v1336
      %1340 = vmatprep.subr.bf16.mxu0 0
      %1341 = vmatpush1.bf16.msra.mxu0 0
      %1342 = vmatprep.subr.bf16.mxu0 0
      %1343 = vmatpush1.bf16.msra.mxu0 0
      %1344 = vmatprep.subr.bf16.mxu0 0
      %1345 = vmatpush1.bf16.msra.mxu0 0
      %1346 = vmatprep.subr.bf16.mxu0 0
      %1347 = vmatpush1.bf16.msra.mxu0 0
      %1348 = vmatprep.subr.bf16.mxu0 0
      %1349 = vmatpush1.bf16.msra.mxu0 0
      %1350 = vmatprep.subr.bf16.mxu0 0
      %1351 = vmatpush1.bf16.msra.mxu0 0
      %1352 = vmatprep.subr.bf16.mxu0 0
      %1353 = vmatpush1.bf16.msra.mxu0 0
      %1354 = vmatprep.subr.bf16.mxu0 0
      %1355 = vmatpush1.bf16.msra.mxu0 0
      %1356 = vmatprep.subr.bf16.mxu0 0
      %1357 = vmatpush1.bf16.msra.mxu0 0
      %1358 = vmatprep.subr.bf16.mxu0 0
      %1359 = vmatpush1.bf16.msra.mxu0 0
      %1360 = vmatprep.subr.bf16.mxu0 0
      %1361 = vmatpush1.bf16.msra.mxu0 0
      %1362 = vmatprep.subr.bf16.mxu0 0
      %1363 = vmatpush1.bf16.msra.mxu0 0
      %1364 = vmatprep.subr.bf16.mxu0 0
      %1365 = vmatpush1.bf16.msra.mxu0 0
      %1366 = vmatprep.subr.bf16.mxu0 0
      %1367 = vmatpush1.bf16.msra.mxu0 0
      %1368 = vmatprep.subr.bf16.mxu0 0
      %1369 = vmatpush1.bf16.msra.mxu0 0
      %1370 = vmatprep.mubr.bf16.mxu0 0
      %1371 = vmatmul.mubr.bf16.gmra.mrb[0].mxu0 %v1288
      %v1372 = vpop.f32.mrb[0].mxu0
      %v1373 = vadd.f32 0.0, %v1372
      %v1374 = vpop.f32.mrb[0].mxu0
      %v1375 = vpop.f32.mrb[0].mxu0
      %v1376 = vadd.f32 0.0, %v1375
      %v1377 = vpop.f32.mrb[0].mxu0
      %1378 = vmatprep.mubr.bf16.mxu0 0
      %1379 = vmatmul.mubr.bf16.gmra.mrb[0].mxu0 %v1291
      %v1380 = vpop.f32.mrb[0].mxu0
      %v1381 = vadd.f32 0.0, %v1380
      %v1382 = vpop.f32.mrb[0].mxu0
      %v1383 = vpop.f32.mrb[0].mxu0
      %v1384 = vadd.f32 0.0, %v1383
      %v1385 = vpop.f32.mrb[0].mxu0
      %1386 = vmatprep.mubr.bf16.mxu0 0
      %1387 = vmatmul.mubr.bf16.gmra.mrb[0].mxu0 %v1294
      %v1388 = vpop.f32.mrb[0].mxu0
      %v1389 = vadd.f32 0.0, %v1388
      %v1390 = vpop.f32.mrb[0].mxu0
      %v1391 = vpop.f32.mrb[0].mxu0
      %v1392 = vadd.f32 0.0, %v1391
      %v1393 = vpop.f32.mrb[0].mxu0
      %1394 = vmatprep.mubr.bf16.mxu0 0
      %1395 = vmatmul.mubr.bf16.gmra.mrb[0].mxu0 %v1297
      %v1396 = vpop.f32.mrb[0].mxu0
      %v1397 = vadd.f32 0.0, %v1396
      %v1398 = vpop.f32.mrb[0].mxu0
      %v1399 = vpop.f32.mrb[0].mxu0
      %v1400 = vadd.f32 0.0, %v1399
      %v1401 = vpop.f32.mrb[0].mxu0
      %1402 = vmatprep.mubr.bf16.mxu0 0
      %1403 = vmatmul.mubr.bf16.gmra.mrb[0].mxu0 %v1300
      %v1404 = vpop.f32.mrb[0].mxu0
      %v1405 = vadd.f32 0.0, %v1404
      %v1406 = vpop.f32.mrb[0].mxu0
      %v1407 = vpop.f32.mrb[0].mxu0
      %v1408 = vadd.f32 0.0, %v1407
      %v1409 = vpop.f32.mrb[0].mxu0
      %1410 = vmatprep.mubr.bf16.mxu0 0
      %1411 = vmatmul.mubr.bf16.gmra.mrb[0].mxu0 %v1303
      %v1412 = vpop.f32.mrb[0].mxu0
      %v1413 = vadd.f32 0.0, %v1412
      %v1414 = vpop.f32.mrb[0].mxu0
      %v1415 = vpop.f32.mrb[0].mxu0
      %v1416 = vadd.f32 0.0, %v1415
      %v1417 = vpop.f32.mrb[0].mxu0
      %1418 = vmatprep.mubr.bf16.mxu0 0
      %1419 = vmatmul.mubr.bf16.gmra.mrb[0].mxu0 %v1306
      %v1420 = vpop.f32.mrb[0].mxu0
      %v1421 = vadd.f32 0.0, %v1420
      %v1422 = vpop.f32.mrb[0].mxu0
      %v1423 = vpop.f32.mrb[0].mxu0
      %v1424 = vadd.f32 0.0, %v1423
      %v1425 = vpop.f32.mrb[0].mxu0
      %1426 = vmatprep.mubr.bf16.mxu0 0
      %1427 = vmatmul.mubr.bf16.gmra.mrb[0].mxu0 %v1309
      %v1428 = vpop.f32.mrb[0].mxu0
      %v1429 = vadd.f32 0.0, %v1428
      %v1430 = vpop.f32.mrb[0].mxu0
      %v1431 = vpop.f32.mrb[0].mxu0
      %v1432 = vadd.f32 0.0, %v1431
      %v1433 = vpop.f32.mrb[0].mxu0
      %1434 = vmatprep.mubr.bf16.mxu0 0
      %1435 = vmatmul.mubr.bf16.gmra.mrb[0].mxu0 %v1312
      %v1436 = vpop.f32.mrb[0].mxu0
      %v1437 = vadd.f32 0.0, %v1436
      %v1438 = vpop.f32.mrb[0].mxu0
      %v1439 = vpop.f32.mrb[0].mxu0
      %v1440 = vadd.f32 0.0, %v1439
      %v1441 = vpop.f32.mrb[0].mxu0
      %1442 = vmatprep.mubr.bf16.mxu0 0
      %1443 = vmatmul.mubr.bf16.gmra.mrb[0].mxu0 %v1315
      %v1444 = vpop.f32.mrb[0].mxu0
      %v1445 = vadd.f32 0.0, %v1444
      %v1446 = vpop.f32.mrb[0].mxu0
      %v1447 = vpop.f32.mrb[0].mxu0
      %v1448 = vadd.f32 0.0, %v1447
      %v1449 = vpop.f32.mrb[0].mxu0
      %1450 = vmatprep.mubr.bf16.mxu0 0
      %1451 = vmatmul.mubr.bf16.gmra.mrb[0].mxu0 %v1318
      %v1452 = vpop.f32.mrb[0].mxu0
      %v1453 = vadd.f32 0.0, %v1452
      %v1454 = vpop.f32.mrb[0].mxu0
      %v1455 = vpop.f32.mrb[0].mxu0
      %v1456 = vadd.f32 0.0, %v1455
      %v1457 = vpop.f32.mrb[0].mxu0
      %1458 = vmatprep.mubr.bf16.mxu0 0
      %1459 = vmatmul.mubr.bf16.gmra.mrb[0].mxu0 %v1321
      %v1460 = vpop.f32.mrb[0].mxu0
      %v1461 = vadd.f32 0.0, %v1460
      %v1462 = vpop.f32.mrb[0].mxu0
      %v1463 = vpop.f32.mrb[0].mxu0
      %v1464 = vadd.f32 0.0, %v1463
      %v1465 = vpop.f32.mrb[0].mxu0
      %1466 = vmatprep.mubr.bf16.mxu0 0
      %1467 = vmatmul.mubr.bf16.gmra.mrb[0].mxu0 %v1324
      %v1468 = vpop.f32.mrb[0].mxu0
      %v1469 = vadd.f32 0.0, %v1468
      %v1470 = vpop.f32.mrb[0].mxu0
      %v1471 = vpop.f32.mrb[0].mxu0
      %v1472 = vadd.f32 0.0, %v1471
      %v1473 = vpop.f32.mrb[0].mxu0
      %1474 = vmatprep.mubr.bf16.mxu0 0
      %1475 = vmatmul.mubr.bf16.gmra.mrb[0].mxu0 %v1327
      %v1476 = vpop.f32.mrb[0].mxu0
      %v1477 = vadd.f32 0.0, %v1476
      %v1478 = vpop.f32.mrb[0].mxu0
      %v1479 = vpop.f32.mrb[0].mxu0
      %v1480 = vadd.f32 0.0, %v1479
      %v1481 = vpop.f32.mrb[0].mxu0
      %1482 = vmatprep.mubr.bf16.mxu0 0
      %1483 = vmatmul.mubr.bf16.gmra.mrb[0].mxu0 %v1330
      %v1484 = vpop.f32.mrb[0].mxu0
      %v1485 = vadd.f32 0.0, %v1484
      %v1486 = vpop.f32.mrb[0].mxu0
      %v1487 = vpop.f32.mrb[0].mxu0
      %v1488 = vadd.f32 0.0, %v1487
      %v1489 = vpop.f32.mrb[0].mxu0
      %1490 = vmatprep.mubr.bf16.mxu0 0
      %1491 = vmatmul.mubr.bf16.gmra.mrb[0].mxu0 %v1333
      %v1492 = vpop.f32.mrb[0].mxu0
      %v1493 = vadd.f32 0.0, %v1492
      %v1494 = vpop.f32.mrb[0].mxu0
      %v1495 = vpop.f32.mrb[0].mxu0
      %v1496 = vadd.f32 0.0, %v1495
      %v1497 = vpop.f32.mrb[0].mxu0
      %1498 = vdwg.mxu0
      %v1499 = vld [vmem:[%s5] sm:$0xff]
      %v1500 = vld [vmem:[%s5 + $0x8] sm:$0xff]
      %v1501 = vld [vmem:[%s5 + $0x10] sm:$0xff]
      %v1502 = vld [vmem:[%s5 + $0x18] sm:$0xff]
      %v1503 = vld [vmem:[%s5 + $0x20] sm:$0xff]
      %v1504 = vld [vmem:[%s5 + $0x28] sm:$0xff]
      %v1505 = vld [vmem:[%s5 + $0x30] sm:$0xff]
      %v1506 = vld [vmem:[%s5 + $0x38] sm:$0xff]
      %v1507 = vpack.c.bf16 %v1376, %v1373
      %v1508 = vpack.c.bf16 %v1384, %v1381
      %v1509 = vpack.c.bf16 %v1392, %v1389
      %v1510 = vpack.c.bf16 %v1400, %v1397
      %v1511 = vpack.c.bf16 %v1408, %v1405
      %v1512 = vpack.c.bf16 %v1416, %v1413
      %v1513 = vpack.c.bf16 %v1424, %v1421
      %v1514 = vpack.c.bf16 %v1432, %v1429
      %v1515 = vpack.c.bf16 %v1440, %v1437
      %v1516 = vpack.c.bf16 %v1448, %v1445
      %v1517 = vpack.c.bf16 %v1456, %v1453
      %v1518 = vpack.c.bf16 %v1464, %v1461
      %v1519 = vpack.c.bf16 %v1472, %v1469
      %v1520 = vpack.c.bf16 %v1480, %v1477
      %v1521 = vpack.c.bf16 %v1488, %v1485
      %v1522 = vpack.c.bf16 %v1496, %v1493
      %v1531 = vunpack.c.l.b16 %v1499
      %v1532 = vunpack.c.h.b16 %v1499
      %v1533 = vunpack.c.l.b16 %v1500
      %v1534 = vunpack.c.h.b16 %v1500
      %v1535 = vunpack.c.l.b16 %v1501
      %v1536 = vunpack.c.h.b16 %v1501
      %v1537 = vunpack.c.l.b16 %v1502
      %v1538 = vunpack.c.h.b16 %v1502
      %v1539 = vunpack.c.l.b16 %v1503
      %v1540 = vunpack.c.h.b16 %v1503
      %v1541 = vunpack.c.l.b16 %v1504
      %v1542 = vunpack.c.h.b16 %v1504
      %v1543 = vunpack.c.l.b16 %v1505
      %v1544 = vunpack.c.h.b16 %v1505
      %v1545 = vunpack.c.l.b16 %v1506
      %v1546 = vunpack.c.h.b16 %v1506
      %v1547 = vpack.c.b16 %v1533, %v1531
      %v1548 = vpack.c.b16 %v1534, %v1532
      %v1549 = vpack.c.b16 %v1537, %v1535
      %v1550 = vpack.c.b16 %v1538, %v1536
      %v1551 = vpack.c.b16 %v1541, %v1539
      %v1552 = vpack.c.b16 %v1542, %v1540
      %v1553 = vpack.c.b16 %v1545, %v1543
      %v1554 = vpack.c.b16 %v1546, %v1544
      %1563 = vmatprep.subr.bf16.mxu0 0
      %1564 = vmatpush1.bf16.msra.mxu0 %v1507
      %1565 = vmatprep.subr.bf16.mxu0 0
      %1566 = vmatpush1.bf16.msra.mxu0 %v1508
      %1567 = vmatprep.subr.bf16.mxu0 0
      %1568 = vmatpush1.bf16.msra.mxu0 %v1509
      %1569 = vmatprep.subr.bf16.mxu0 0
      %1570 = vmatpush1.bf16.msra.mxu0 %v1510
      %1571 = vmatprep.subr.bf16.mxu0 0
      %1572 = vmatpush1.bf16.msra.mxu0 %v1511
      %1573 = vmatprep.subr.bf16.mxu0 0
      %1574 = vmatpush1.bf16.msra.mxu0 %v1512
      %1575 = vmatprep.subr.bf16.mxu0 0
      %1576 = vmatpush1.bf16.msra.mxu0 %v1513
      %1577 = vmatprep.subr.bf16.mxu0 0
      %1578 = vmatpush1.bf16.msra.mxu0 %v1514
      %1579 = vmatprep.subr.bf16.mxu0 0
      %1580 = vmatpush1.bf16.msra.mxu0 %v1515
      %1581 = vmatprep.subr.bf16.mxu0 0
      %1582 = vmatpush1.bf16.msra.mxu0 %v1516
      %1583 = vmatprep.subr.bf16.mxu0 0
      %1584 = vmatpush1.bf16.msra.mxu0 %v1517
      %1585 = vmatprep.subr.bf16.mxu0 0
      %1586 = vmatpush1.bf16.msra.mxu0 %v1518
      %1587 = vmatprep.subr.bf16.mxu0 0
      %1588 = vmatpush1.bf16.msra.mxu0 %v1519
      %1589 = vmatprep.subr.bf16.mxu0 0
      %1590 = vmatpush1.bf16.msra.mxu0 %v1520
      %1591 = vmatprep.subr.bf16.mxu0 0
      %1592 = vmatpush1.bf16.msra.mxu0 %v1521
      %1593 = vmatprep.subr.bf16.mxu0 0
      %1594 = vmatpush1.bf16.msra.mxu0 %v1522
      %1595 = vmatprep.mubr.bf16.mxu0 %v1548
      %1596 = vmatmul.mubr.bf16.gmra.mrb[0].mxu0 %v1547
      %v1597 = vpop.f32.mrb[0].mxu0
      %v1598 = vadd.f32 %v1230, %v1597
      %v1599 = vpop.f32.mrb[0].mxu0
      %v1600 = vpop.f32.mrb[0].mxu0
      %v1601 = vadd.f32 %v1231, %v1600
      %v1602 = vpop.f32.mrb[0].mxu0
      %1603 = vmatprep.mubr.bf16.mxu0 %v1550
      %1604 = vmatmul.mubr.bf16.gmra.mrb[0].mxu0 %v1549
      %v1605 = vpop.f32.mrb[0].mxu0
      %v1606 = vadd.f32 %v1232, %v1605
      %v1607 = vpop.f32.mrb[0].mxu0
      %v1608 = vpop.f32.mrb[0].mxu0
      %v1609 = vadd.f32 %v1233, %v1608
      %v1610 = vpop.f32.mrb[0].mxu0
      %1611 = vmatprep.mubr.bf16.mxu0 %v1552
      %1612 = vmatmul.mubr.bf16.gmra.mrb[0].mxu0 %v1551
      %v1613 = vpop.f32.mrb[0].mxu0
      %v1614 = vadd.f32 %v1234, %v1613
      %v1615 = vpop.f32.mrb[0].mxu0
      %v1616 = vpop.f32.mrb[0].mxu0
      %v1617 = vadd.f32 %v1235, %v1616
      %v1618 = vpop.f32.mrb[0].mxu0
      %1619 = vmatprep.mubr.bf16.mxu0 %v1554
      %1620 = vmatmul.mubr.bf16.gmra.mrb[0].mxu0 %v1553
      %v1621 = vpop.f32.mrb[0].mxu0
      %v1622 = vadd.f32 %v1236, %v1621
      %v1623 = vpop.f32.mrb[0].mxu0
      %v1624 = vpop.f32.mrb[0].mxu0
      %v1625 = vadd.f32 %v1237, %v1624
      %v1626 = vpop.f32.mrb[0].mxu0
      %1627 = vdwg.mxu0
      %v1628 = vmul.f32 %v1598, 0.70710677
      %v1629 = vmul.f32 %v1601, 0.70710677
      %v1630 = vmul.f32 %v1606, 0.70710677
      %v1631 = vmul.f32 %v1609, 0.70710677
      %v1632 = vmul.f32 %v1614, 0.70710677
      %v1633 = vmul.f32 %v1617, 0.70710677
      %v1634 = vmul.f32 %v1622, 0.70710677
      %v1635 = vmul.f32 %v1625, 0.70710677
      %vm1636 = vcmask 64512
      %1637 = vst.msk [vmem:[%s271] sm:$0xff] %vm1636, %v1628
      %1638 = vst.msk [vmem:[%s271 + $0x8] sm:$0xff] %vm1636, %v1629
      %1639 = vst.msk [vmem:[%s271 + $0x10] sm:$0xff] %vm1636, %v1630
      %1640 = vst.msk [vmem:[%s271 + $0x18] sm:$0xff] %vm1636, %v1631
      %1641 = vst.msk [vmem:[%s271 + $0x20] sm:$0xff] %vm1636, %v1632
      %1642 = vst.msk [vmem:[%s271 + $0x28] sm:$0xff] %vm1636, %v1633
      %1643 = vst.msk [vmem:[%s271 + $0x30] sm:$0xff] %vm1636, %v1634
      %1644 = vst.msk [vmem:[%s271 + $0x38] sm:$0xff] %vm1636, %v1635
      %p1645 = scmp.lt.s32.totalorder %s17, 1
      %s1646 = scalar_select %p1645, %s17, 1
      %s1647 = smul.addr %s1646, 8
      %s1648 = smul.addr %s1647, 8
      %s1649 = scalar_lea.vmem %s6, %s1648
      // Predicated region
      $region45: #{res_blk_forward.3} parent=43 // pred_check
        %p1650 = pneg %p171
      $region46: #{res_blk_forward.3} parent=43 // pred_check_branch
        %1652 = sbr.rel (%p1650) target = $region48
      $region47: #{res_blk_forward.3} parent=43 // pred_region
        _
      $region48: #{res_blk_forward.3} parent=43 // pred_fallthru
        _
    $region44: #{res_blk_forward.3} parent=5 // pred_fallthru
      _
    %p1653 = scmp.le.s32.totalorder 2, %s12
    // Predicated region
    $region49: #{res_blk_forward.3} parent=5 // pred_check
      %p1654 = pneg %p1653
    $region50: #{res_blk_forward.3} parent=5 // pred_check_branch
      %1656 = sbr.rel (%p1654) target = $region52
    $region51: #{res_blk_forward.3} parent=5 // pred_region
      %s1657 = ssub.s32 %s12, 2
      // Predicated region
      $region53: #{res_blk_forward.3} parent=51 // pred_check
        %p1658 = pneg %p177
      $region54: #{res_blk_forward.3} parent=51 // pred_check_branch
        %1660 = sbr.rel (%p1658) target = $region56
      $region55: #{res_blk_forward.3} parent=51 // pred_region
        %p1661 = scmp.lt.s32.totalorder %s18, 1
        %s1662 = scalar_select %p1661, %s18, 1
        %s1663 = smul.addr %s1662, 8
        %s1664 = smul.addr %s1663, 8
        %s1665 = scalar_lea.vmem %s6, %s1664
      $region56: #{res_blk_forward.3} parent=51 // pred_fallthru
        _
    $region52: #{res_blk_forward.3} parent=5 // pred_fallthru
      _
  $region6: #{res_blk_forward.3} parent=0 // loop_footer
    %s16 = sadd.s32 1, %s12
  $region7: #{res_blk_forward.3} parent=0 // loop_footer_branch
    %11 = sbr.rel target = $region3
  $region8: #{res_blk_forward.3} parent=0 // loop_exit
    _

// kernel: res_blk_forward.2
$region0: #{res_blk_forward.2}
  #allocation0 [shape = 'u32[]', space=smem, size = 0x4, offset = 0x4, fixed_abs, tag = 'smem constant byte address 0x4 - core index']
  #allocation1 [shape = 'u32[144,128]{1,0:T(1,128)}', space=vmem, size = 0x12000, scoped, tag = 'internal scratch']
  #allocation2 [shape = 'f32[18,18,4]{2,1,0:T(8,128)}', space=vmem, size = 0x36000, scoped, tag = 'scratch operand']
  %s0 = inlined_call_operand.vmem [shape: f32[2,16,16,4], index: 0, kind: input, shape index: {}]
  %s1 = inlined_call_operand.vmem [shape: f32[1,4], index: 1, kind: input, shape index: {}]
  %s2 = inlined_call_operand.vmem [shape: f32[1,4], index: 2, kind: input, shape index: {}]
  %s3 = inlined_call_operand.vmem [shape: f32[1,4], index: 3, kind: input, shape index: {}]
  %s4 = inlined_call_operand.vmem [shape: f32[1,4], index: 4, kind: input, shape index: {}]
  %s5 = inlined_call_operand.vmem [shape: bf16[9,4,4], index: 5, kind: input, shape index: {}]
  %s6 = inlined_call_operand.vmem [shape: f32[1,4], index: 6, kind: input, shape index: {}]
  %s7 = inlined_call_operand.vmem [shape: bf16[64,256], index: 7, kind: input, shape index: {}]
  %s8 = inlined_call_operand.vmem [shape: bf16[2,8,8,4], index: 8, kind: output, shape index: {}]
  %s9 = sld [smem:[#allocation0]]
  $region65: #{res_blk_forward.2} parent=0
    _
  %s11 = ssub.s32 1, %s9
  %s12 = scalar_select 0, %s11, %s9
  loop: start=0, step=1, limit=4
  $region2: #{res_blk_forward.2} parent=0 // loop_pre_header
    _
  $region3: #{res_blk_forward.2} parent=0 // loop_header
    %s14 = sphi 0, %s18
    %p15 = scmp.ge.s32.totalorder %s14, 4
    %s24 = sphi 0, %s26
    %s27 = sphi 0, %s24
    %s28 = sphi 0, %s27
    %s44 = sphi 0, %s28
    %s48 = sphi 0, %s48
    %s50 = sphi 0, %s48
    %s51 = sphi 0, %s50
    %s65 = sphi 0, %s51
    %s69 = sphi 0, %s69
    %s71 = sphi 0, %s69
    %s72 = sphi 0, %s71
    %s86 = sphi 0, %s72
    %s90 = sphi 0, %s90
    %s92 = sphi 0, %s90
    %s93 = sphi 0, %s92
    %s107 = sphi 0, %s93
    %s111 = sphi 0, %s111
    %s113 = sphi 0, %s111
    %s114 = sphi 0, %s113
    %s128 = sphi 0, %s114
    %s132 = sphi 0, %s132
    %s134 = sphi 0, %s132
    %s135 = sphi 0, %s134
    %s149 = sphi 0, %s135
    %s153 = sphi 0, %s153
    %s155 = sphi 0, %s153
    %s156 = sphi 0, %s155
    %s170 = sphi 0, %s156
    %s174 = sphi 0, %s174
    %s176 = sphi 0, %s174
    %s177 = sphi 0, %s176
    %s191 = sphi 0, %s177
    %s197 = sphi 0, %s199
    %s200 = sphi 0, %s197
    %s201 = sphi 0, %s200
    %s217 = sphi 0, %s201
  $region4: #{res_blk_forward.2} parent=0 // loop_header_branch
    %17 = sbr.rel (%p15) target = $region8
  $region5: #{res_blk_forward.2} parent=0 // loop_body
    %s19 = ssub.s32 %s14, 1
    %s20 = ssub.s32 %s14, 2
    %s21 = sadd.s32 %s14, 1
    %s22 = ssub.s32 %s14, %s21
    %p23 = scmp.eq.s32.totalorder %s22, 0
    %s25 = sadd.s32 %s24, 1
    %s26 = scalar_select %p23, %s24, %s25
    %p29 = pneg %p23
    %p30 = scmp.eq.s32.totalorder %s14, 1
    %p31 = por %p29, %p30
    %p32 = scmp.ne.s32.totalorder %s24, %s27
    %p33 = scmp.eq.s32.totalorder %s14, 0
    %p34 = por %p32, %p33
    %p35 = scmp.ne.s32.totalorder %s24, %s27
    %p36 = scmp.eq.s32.totalorder %s19, 1
    %p37 = por %p35, %p36
    %p38 = scmp.ne.s32.totalorder %s27, %s28
    %p39 = scmp.eq.s32.totalorder %s19, 0
    %p40 = por %p38, %p39
    %p41 = scmp.ne.s32.totalorder %s27, %s28
    %p42 = scmp.eq.s32.totalorder %s20, 1
    %p43 = por %p41, %p42
    %p45 = scmp.ne.s32.totalorder %s28, %s44
    %p46 = scmp.eq.s32.totalorder %s20, 0
    %p47 = por %p45, %p46
    %s49 = sadd.s32 %s48, 1
    %p52 = scmp.eq.s32.totalorder %s14, 1
    %p53 = scmp.ne.s32.totalorder %s48, %s50
    %p54 = scmp.eq.s32.totalorder %s14, 0
    %p55 = por %p53, %p54
    %p56 = scmp.ne.s32.totalorder %s48, %s50
    %p57 = scmp.eq.s32.totalorder %s19, 1
    %p58 = por %p56, %p57
    %p59 = scmp.ne.s32.totalorder %s50, %s51
    %p60 = scmp.eq.s32.totalorder %s19, 0
    %p61 = por %p59, %p60
    %p62 = scmp.ne.s32.totalorder %s50, %s51
    %p63 = scmp.eq.s32.totalorder %s20, 1
    %p64 = por %p62, %p63
    %p66 = scmp.ne.s32.totalorder %s51, %s65
    %p67 = scmp.eq.s32.totalorder %s20, 0
    %p68 = por %p66, %p67
    %s70 = sadd.s32 %s69, 1
    %p73 = scmp.eq.s32.totalorder %s14, 1
    %p74 = scmp.ne.s32.totalorder %s69, %s71
    %p75 = scmp.eq.s32.totalorder %s14, 0
    %p76 = por %p74, %p75
    %p77 = scmp.ne.s32.totalorder %s69, %s71
    %p78 = scmp.eq.s32.totalorder %s19, 1
    %p79 = por %p77, %p78
    %p80 = scmp.ne.s32.totalorder %s71, %s72
    %p81 = scmp.eq.s32.totalorder %s19, 0
    %p82 = por %p80, %p81
    %p83 = scmp.ne.s32.totalorder %s71, %s72
    %p84 = scmp.eq.s32.totalorder %s20, 1
    %p85 = por %p83, %p84
    %p87 = scmp.ne.s32.totalorder %s72, %s86
    %p88 = scmp.eq.s32.totalorder %s20, 0
    %p89 = por %p87, %p88
    %s91 = sadd.s32 %s90, 1
    %p94 = scmp.eq.s32.totalorder %s14, 1
    %p95 = scmp.ne.s32.totalorder %s90, %s92
    %p96 = scmp.eq.s32.totalorder %s14, 0
    %p97 = por %p95, %p96
    %p98 = scmp.ne.s32.totalorder %s90, %s92
    %p99 = scmp.eq.s32.totalorder %s19, 1
    %p100 = por %p98, %p99
    %p101 = scmp.ne.s32.totalorder %s92, %s93
    %p102 = scmp.eq.s32.totalorder %s19, 0
    %p103 = por %p101, %p102
    %p104 = scmp.ne.s32.totalorder %s92, %s93
    %p105 = scmp.eq.s32.totalorder %s20, 1
    %p106 = por %p104, %p105
    %p108 = scmp.ne.s32.totalorder %s93, %s107
    %p109 = scmp.eq.s32.totalorder %s20, 0
    %p110 = por %p108, %p109
    %s112 = sadd.s32 %s111, 1
    %p115 = scmp.eq.s32.totalorder %s14, 1
    %p116 = scmp.ne.s32.totalorder %s111, %s113
    %p117 = scmp.eq.s32.totalorder %s14, 0
    %p118 = por %p116, %p117
    %p119 = scmp.ne.s32.totalorder %s111, %s113
    %p120 = scmp.eq.s32.totalorder %s19, 1
    %p121 = por %p119, %p120
    %p122 = scmp.ne.s32.totalorder %s113, %s114
    %p123 = scmp.eq.s32.totalorder %s19, 0
    %p124 = por %p122, %p123
    %p125 = scmp.ne.s32.totalorder %s113, %s114
    %p126 = scmp.eq.s32.totalorder %s20, 1
    %p127 = por %p125, %p126
    %p129 = scmp.ne.s32.totalorder %s114, %s128
    %p130 = scmp.eq.s32.totalorder %s20, 0
    %p131 = por %p129, %p130
    %s133 = sadd.s32 %s132, 1
    %p136 = scmp.eq.s32.totalorder %s14, 1
    %p137 = scmp.ne.s32.totalorder %s132, %s134
    %p138 = scmp.eq.s32.totalorder %s14, 0
    %p139 = por %p137, %p138
    %p140 = scmp.ne.s32.totalorder %s132, %s134
    %p141 = scmp.eq.s32.totalorder %s19, 1
    %p142 = por %p140, %p141
    %p143 = scmp.ne.s32.totalorder %s134, %s135
    %p144 = scmp.eq.s32.totalorder %s19, 0
    %p145 = por %p143, %p144
    %p146 = scmp.ne.s32.totalorder %s134, %s135
    %p147 = scmp.eq.s32.totalorder %s20, 1
    %p148 = por %p146, %p147
    %p150 = scmp.ne.s32.totalorder %s135, %s149
    %p151 = scmp.eq.s32.totalorder %s20, 0
    %p152 = por %p150, %p151
    %s154 = sadd.s32 %s153, 1
    %p157 = scmp.eq.s32.totalorder %s14, 1
    %p158 = scmp.ne.s32.totalorder %s153, %s155
    %p159 = scmp.eq.s32.totalorder %s14, 0
    %p160 = por %p158, %p159
    %p161 = scmp.ne.s32.totalorder %s153, %s155
    %p162 = scmp.eq.s32.totalorder %s19, 1
    %p163 = por %p161, %p162
    %p164 = scmp.ne.s32.totalorder %s155, %s156
    %p165 = scmp.eq.s32.totalorder %s19, 0
    %p166 = por %p164, %p165
    %p167 = scmp.ne.s32.totalorder %s155, %s156
    %p168 = scmp.eq.s32.totalorder %s20, 1
    %p169 = por %p167, %p168
    %p171 = scmp.ne.s32.totalorder %s156, %s170
    %p172 = scmp.eq.s32.totalorder %s20, 0
    %p173 = por %p171, %p172
    %s175 = sadd.s32 %s174, 1
    %p178 = scmp.eq.s32.totalorder %s14, 1
    %p179 = scmp.ne.s32.totalorder %s174, %s176
    %p180 = scmp.eq.s32.totalorder %s14, 0
    %p181 = por %p179, %p180
    %p182 = scmp.ne.s32.totalorder %s174, %s176
    %p183 = scmp.eq.s32.totalorder %s19, 1
    %p184 = por %p182, %p183
    %p185 = scmp.ne.s32.totalorder %s176, %s177
    %p186 = scmp.eq.s32.totalorder %s19, 0
    %p187 = por %p185, %p186
    %p188 = scmp.ne.s32.totalorder %s176, %s177
    %p189 = scmp.eq.s32.totalorder %s20, 1
    %p190 = por %p188, %p189
    %p192 = scmp.ne.s32.totalorder %s177, %s191
    %p193 = scmp.eq.s32.totalorder %s20, 0
    %p194 = por %p192, %p193
    %s195 = ssub.s32 %s14, %s21
    %p196 = scmp.eq.s32.totalorder %s195, 0
    %s198 = sadd.s32 %s197, 1
    %s199 = scalar_select %p196, %s197, %s198
    %p202 = pneg %p196
    %p203 = scmp.eq.s32.totalorder %s14, 1
    %p204 = por %p202, %p203
    %p205 = scmp.ne.s32.totalorder %s197, %s200
    %p206 = scmp.eq.s32.totalorder %s14, 0
    %p207 = por %p205, %p206
    %p208 = scmp.ne.s32.totalorder %s197, %s200
    %p209 = scmp.eq.s32.totalorder %s19, 1
    %p210 = por %p208, %p209
    %p211 = scmp.ne.s32.totalorder %s200, %s201
    %p212 = scmp.eq.s32.totalorder %s19, 0
    %p213 = por %p211, %p212
    %p214 = scmp.ne.s32.totalorder %s200, %s201
    %p215 = scmp.eq.s32.totalorder %s20, 1
    %p216 = por %p214, %p215
    %p218 = scmp.ne.s32.totalorder %s201, %s217
    %p219 = scmp.eq.s32.totalorder %s20, 0
    %p220 = por %p218, %p219
    %p221 = scmp.le.s32.totalorder 1, %s14
    %p222 = scmp.lt.s32.totalorder %s14, 3
    %p223 = pnand %p221, %p222
    %p224 = pneg %p223
    // Predicated region
    $region9: #{res_blk_forward.2} parent=5 // pred_check
      _
    $region10: #{res_blk_forward.2} parent=5 // pred_check_branch
      %226 = sbr.rel (%p223) target = $region12
    $region11: #{res_blk_forward.2} parent=5 // pred_region
      %s227 = ssub.s32 %s14, 1
      // Predicated region
      $region13: #{res_blk_forward.2} parent=11 // pred_check
        %p228 = pneg %p61
      $region14: #{res_blk_forward.2} parent=11 // pred_check_branch
        %230 = sbr.rel (%p228) target = $region16
      $region15: #{res_blk_forward.2} parent=11 // pred_region
        _
      $region16: #{res_blk_forward.2} parent=11 // pred_fallthru
        _
      // Predicated region
      $region17: #{res_blk_forward.2} parent=11 // pred_check
        %p231 = pneg %p82
      $region18: #{res_blk_forward.2} parent=11 // pred_check_branch
        %233 = sbr.rel (%p231) target = $region20
      $region19: #{res_blk_forward.2} parent=11 // pred_region
        _
      $region20: #{res_blk_forward.2} parent=11 // pred_fallthru
        _
      // Predicated region
      $region21: #{res_blk_forward.2} parent=11 // pred_check
        %p234 = pneg %p103
      $region22: #{res_blk_forward.2} parent=11 // pred_check_branch
        %236 = sbr.rel (%p234) target = $region24
      $region23: #{res_blk_forward.2} parent=11 // pred_region
        _
      $region24: #{res_blk_forward.2} parent=11 // pred_fallthru
        _
      // Predicated region
      $region25: #{res_blk_forward.2} parent=11 // pred_check
        %p237 = pneg %p124
      $region26: #{res_blk_forward.2} parent=11 // pred_check_branch
        %239 = sbr.rel (%p237) target = $region28
      $region27: #{res_blk_forward.2} parent=11 // pred_region
        _
      $region28: #{res_blk_forward.2} parent=11 // pred_fallthru
        _
      // Predicated region
      $region29: #{res_blk_forward.2} parent=11 // pred_check
        %p240 = pneg %p145
      $region30: #{res_blk_forward.2} parent=11 // pred_check_branch
        %242 = sbr.rel (%p240) target = $region32
      $region31: #{res_blk_forward.2} parent=11 // pred_region
        _
      $region32: #{res_blk_forward.2} parent=11 // pred_fallthru
        _
      // Predicated region
      $region33: #{res_blk_forward.2} parent=11 // pred_check
        %p243 = pneg %p166
      $region34: #{res_blk_forward.2} parent=11 // pred_check_branch
        %245 = sbr.rel (%p243) target = $region36
      $region35: #{res_blk_forward.2} parent=11 // pred_region
        _
      $region36: #{res_blk_forward.2} parent=11 // pred_fallthru
        _
      // Predicated region
      $region37: #{res_blk_forward.2} parent=11 // pred_check
        %p246 = pneg %p187
      $region38: #{res_blk_forward.2} parent=11 // pred_check_branch
        %248 = sbr.rel (%p246) target = $region40
      $region39: #{res_blk_forward.2} parent=11 // pred_region
        _
      $region40: #{res_blk_forward.2} parent=11 // pred_fallthru
        _
    $region12: #{res_blk_forward.2} parent=5 // pred_fallthru
      _
    %p249 = scmp.lt.s32.totalorder %s14, 2
    // Predicated region
    $region41: #{res_blk_forward.2} parent=5 // pred_check
      %p250 = pneg %p249
    $region42: #{res_blk_forward.2} parent=5 // pred_check_branch
      %252 = sbr.rel (%p250) target = $region44
    $region43: #{res_blk_forward.2} parent=5 // pred_region
      // Predicated region
      $region45: #{res_blk_forward.2} parent=43 // pred_check
        %p253 = pneg %p34
      $region46: #{res_blk_forward.2} parent=43 // pred_check_branch
        %255 = sbr.rel (%p253) target = $region48
      $region47: #{res_blk_forward.2} parent=43 // pred_region
        %p256 = scmp.lt.s32.totalorder %s14, 1
        %s257 = scalar_select %p256, %s14, 1
        %s258 = smul.addr %s257, 32
        %s259 = smul.addr %s258, 8
        %s260 = scalar_lea.vmem %s0, %s259
      $region48: #{res_blk_forward.2} parent=43 // pred_fallthru
        _
    $region44: #{res_blk_forward.2} parent=5 // pred_fallthru
      _
    %p261 = scmp.le.s32.totalorder 1, %s14
    %p262 = scmp.lt.s32.totalorder %s14, 3
    %p263 = pnand %p261, %p262
    %p264 = pneg %p263
    // Predicated region
    $region49: #{res_blk_forward.2} parent=5 // pred_check
      _
    $region50: #{res_blk_forward.2} parent=5 // pred_check_branch
      %266 = sbr.rel (%p263) target = $region52
    $region51: #{res_blk_forward.2} parent=5 // pred_region
      %s267 = ssub.s32 %s14, 1
      %p268 = scmp.lt.s32.totalorder %s19, 1
      %s269 = scalar_select %p268, %s19, 1
      %s270 = smul.addr %s269, 32
      %s271 = smul.addr %s270, 8
      %s272 = scalar_lea.vmem %s0, %s271
      %p273 = pneg %p40
      %p274 = pneg %p37
      %p275 = pneg %p61
      %p276 = pneg %p58
      %p277 = pneg %p82
      %p278 = pneg %p79
      %p279 = pneg %p103
      %p280 = pneg %p100
      %p281 = pneg %p124
      %p282 = pneg %p121
      %p283 = pneg %p145
      %p284 = pneg %p142
      %p285 = pneg %p166
      %p286 = pneg %p163
      %p287 = pneg %p187
      %p288 = pneg %p184
      %p289 = pneg %p213
      %p290 = pneg %p210
      %p291 = scmp.lt.s32.totalorder %s19, 1
      %s292 = scalar_select %p291, %s19, 1
      %s293 = smul.addr %s292, 8
      %s294 = smul.addr %s293, 4
      %s295 = scalar_lea.vmem %s8, %s294
      %p296 = scmp.lt.s32.totalorder %s19, 1
      %s297 = scalar_select %p296, %s19, 1
      %s298 = smul.addr %s297, 32
      %s299 = smul.addr %s298, 8
      %s300 = scalar_lea.vmem %s0, %s299
      %p301 = scmp.lt.s32.totalorder %s19, 1
      %s302 = scalar_select %p301, %s19, 1
      %s303 = smul.addr %s302, 8
      %s304 = smul.addr %s303, 4
      %s305 = scalar_lea.vmem %s8, %s304
      %v307 = vld [vmem:[%s300] sm:$0xff]
      %v308 = vld [vmem:[%s300 + $0x8] sm:$0xff]
      %v309 = vld [vmem:[%s300 + $0x10] sm:$0xff]
      %v310 = vld [vmem:[%s300 + $0x18] sm:$0xff]
      %v311 = vld [vmem:[%s300 + $0x20] sm:$0xff]
      %v312 = vld [vmem:[%s300 + $0x28] sm:$0xff]
      %v313 = vld [vmem:[%s300 + $0x30] sm:$0xff]
      %v314 = vld [vmem:[%s300 + $0x38] sm:$0xff]
      %v315 = vld [vmem:[%s300 + $0x40] sm:$0xff]
      %v316 = vld [vmem:[%s300 + $0x48] sm:$0xff]
      %v317 = vld [vmem:[%s300 + $0x50] sm:$0xff]
      %v318 = vld [vmem:[%s300 + $0x58] sm:$0xff]
      %v319 = vld [vmem:[%s300 + $0x60] sm:$0xff]
      %v320 = vld [vmem:[%s300 + $0x68] sm:$0xff]
      %v321 = vld [vmem:[%s300 + $0x70] sm:$0xff]
      %v322 = vld [vmem:[%s300 + $0x78] sm:$0xff]
      %v323 = vld [vmem:[%s300 + $0x80] sm:$0xff]
      %v324 = vld [vmem:[%s300 + $0x88] sm:$0xff]
      %v325 = vld [vmem:[%s300 + $0x90] sm:$0xff]
      %v326 = vld [vmem:[%s300 + $0x98] sm:$0xff]
      %v327 = vld [vmem:[%s300 + $0xa0] sm:$0xff]
      %v328 = vld [vmem:[%s300 + $0xa8] sm:$0xff]
      %v329 = vld [vmem:[%s300 + $0xb0] sm:$0xff]
      %v330 = vld [vmem:[%s300 + $0xb8] sm:$0xff]
      %v331 = vld [vmem:[%s300 + $0xc0] sm:$0xff]
      %v332 = vld [vmem:[%s300 + $0xc8] sm:$0xff]
      %v333 = vld [vmem:[%s300 + $0xd0] sm:$0xff]
      %v334 = vld [vmem:[%s300 + $0xd8] sm:$0xff]
      %v335 = vld [vmem:[%s300 + $0xe0] sm:$0xff]
      %v336 = vld [vmem:[%s300 + $0xe8] sm:$0xff]
      %v337 = vld [vmem:[%s300 + $0xf0] sm:$0xff]
      %v338 = vld [vmem:[%s300 + $0xf8] sm:$0xff]
      %vm339 = vcmask 31744
      %v340 = vsel %vm339, %v307, 0.0
      %v341 = vsel %vm339, %v308, 0.0
      %v342 = vadd.f32 %v340, %v341
      %v343 = vsel %vm339, %v309, 0.0
      %v344 = vadd.f32 %v342, %v343
      %v345 = vsel %vm339, %v310, 0.0
      %v346 = vadd.f32 %v344, %v345
      %v347 = vsel %vm339, %v311, 0.0
      %v348 = vadd.f32 %v346, %v347
      %v349 = vsel %vm339, %v312, 0.0
      %v350 = vadd.f32 %v348, %v349
      %v351 = vsel %vm339, %v313, 0.0
      %v352 = vadd.f32 %v350, %v351
      %v353 = vsel %vm339, %v314, 0.0
      %v354 = vadd.f32 %v352, %v353
      %v355 = vsel %vm339, %v315, 0.0
      %v356 = vadd.f32 %v354, %v355
      %v357 = vsel %vm339, %v316, 0.0
      %v358 = vadd.f32 %v356, %v357
      %v359 = vsel %vm339, %v317, 0.0
      %v360 = vadd.f32 %v358, %v359
      %v361 = vsel %vm339, %v318, 0.0
      %v362 = vadd.f32 %v360, %v361
      %v363 = vsel %vm339, %v319, 0.0
      %v364 = vadd.f32 %v362, %v363
      %v365 = vsel %vm339, %v320, 0.0
      %v366 = vadd.f32 %v364, %v365
      %v367 = vsel %vm339, %v321, 0.0
      %v368 = vadd.f32 %v366, %v367
      %v369 = vsel %vm339, %v322, 0.0
      %v370 = vadd.f32 %v368, %v369
      %v371 = vsel %vm339, %v323, 0.0
      %v372 = vadd.f32 %v370, %v371
      %v373 = vsel %vm339, %v324, 0.0
      %v374 = vadd.f32 %v372, %v373
      %v375 = vsel %vm339, %v325, 0.0
      %v376 = vadd.f32 %v374, %v375
      %v377 = vsel %vm339, %v326, 0.0
      %v378 = vadd.f32 %v376, %v377
      %v379 = vsel %vm339, %v327, 0.0
      %v380 = vadd.f32 %v378, %v379
      %v381 = vsel %vm339, %v328, 0.0
      %v382 = vadd.f32 %v380, %v381
      %v383 = vsel %vm339, %v329, 0.0
      %v384 = vadd.f32 %v382, %v383
      %v385 = vsel %vm339, %v330, 0.0
      %v386 = vadd.f32 %v384, %v385
      %v387 = vsel %vm339, %v331, 0.0
      %v388 = vadd.f32 %v386, %v387
      %v389 = vsel %vm339, %v332, 0.0
      %v390 = vadd.f32 %v388, %v389
      %v391 = vsel %vm339, %v333, 0.0
      %v392 = vadd.f32 %v390, %v391
      %v393 = vsel %vm339, %v334, 0.0
      %v394 = vadd.f32 %v392, %v393
      %v395 = vsel %vm339, %v335, 0.0
      %v396 = vadd.f32 %v394, %v395
      %v397 = vsel %vm339, %v336, 0.0
      %v398 = vadd.f32 %v396, %v397
      %v399 = vsel %vm339, %v337, 0.0
      %v400 = vadd.f32 %v398, %v399
      %v401 = vsel %vm339, %v338, 0.0
      %v402 = vadd.f32 %v400, %v401
      %v403 = vrot.slane %v402, 4
      %v404 = vadd.f32 %v402, %v403
      %v405 = vrot.slane %v404, 2
      %v406 = vadd.f32 %v404, %v405
      %v407 = vrot.slane %v406, 1
      %v408 = vadd.f32 %v406, %v407
      %v409 = vrcp.pop 256.0
      %v410 = vmul.f32 %v408, %v409
      %v411 = vsub.f32 %v307, %v410
      %v412 = vsub.f32 %v308, %v410
      %v413 = vsub.f32 %v309, %v410
      %v414 = vsub.f32 %v310, %v410
      %v415 = vsub.f32 %v311, %v410
      %v416 = vsub.f32 %v312, %v410
      %v417 = vsub.f32 %v313, %v410
      %v418 = vsub.f32 %v314, %v410
      %v419 = vsub.f32 %v315, %v410
      %v420 = vsub.f32 %v316, %v410
      %v421 = vsub.f32 %v317, %v410
      %v422 = vsub.f32 %v318, %v410
      %v423 = vsub.f32 %v319, %v410
      %v424 = vsub.f32 %v320, %v410
      %v425 = vsub.f32 %v321, %v410
      %v426 = vsub.f32 %v322, %v410
      %v427 = vsub.f32 %v323, %v410
      %v428 = vsub.f32 %v324, %v410
      %v429 = vsub.f32 %v325, %v410
      %v430 = vsub.f32 %v326, %v410
      %v431 = vsub.f32 %v327, %v410
      %v432 = vsub.f32 %v328, %v410
      %v433 = vsub.f32 %v329, %v410
      %v434 = vsub.f32 %v330, %v410
      %v435 = vsub.f32 %v331, %v410
      %v436 = vsub.f32 %v332, %v410
      %v437 = vsub.f32 %v333, %v410
      %v438 = vsub.f32 %v334, %v410
      %v439 = vsub.f32 %v335, %v410
      %v440 = vsub.f32 %v336, %v410
      %v441 = vsub.f32 %v337, %v410
      %v442 = vsub.f32 %v338, %v410
      %v443 = vmul.f32 %v411, %v411
      %v444 = vmul.f32 %v412, %v412
      %v445 = vmul.f32 %v413, %v413
      %v446 = vmul.f32 %v414, %v414
      %v447 = vmul.f32 %v415, %v415
      %v448 = vmul.f32 %v416, %v416
      %v449 = vmul.f32 %v417, %v417
      %v450 = vmul.f32 %v418, %v418
      %v451 = vmul.f32 %v419, %v419
      %v452 = vmul.f32 %v420, %v420
      %v453 = vmul.f32 %v421, %v421
      %v454 = vmul.f32 %v422, %v422
      %v455 = vmul.f32 %v423, %v423
      %v456 = vmul.f32 %v424, %v424
      %v457 = vmul.f32 %v425, %v425
      %v458 = vmul.f32 %v426, %v426
      %v459 = vmul.f32 %v427, %v427
      %v460 = vmul.f32 %v428, %v428
      %v461 = vmul.f32 %v429, %v429
      %v462 = vmul.f32 %v430, %v430
      %v463 = vmul.f32 %v431, %v431
      %v464 = vmul.f32 %v432, %v432
      %v465 = vmul.f32 %v433, %v433
      %v466 = vmul.f32 %v434, %v434
      %v467 = vmul.f32 %v435, %v435
      %v468 = vmul.f32 %v436, %v436
      %v469 = vmul.f32 %v437, %v437
      %v470 = vmul.f32 %v438, %v438
      %v471 = vmul.f32 %v439, %v439
      %v472 = vmul.f32 %v440, %v440
      %v473 = vmul.f32 %v441, %v441
      %v474 = vmul.f32 %v442, %v442
      %v475 = vsel %vm339, %v443, 0.0
      %v476 = vsel %vm339, %v444, 0.0
      %v477 = vadd.f32 %v475, %v476
      %v478 = vsel %vm339, %v445, 0.0
      %v479 = vadd.f32 %v477, %v478
      %v480 = vsel %vm339, %v446, 0.0
      %v481 = vadd.f32 %v479, %v480
      %v482 = vsel %vm339, %v447, 0.0
      %v483 = vadd.f32 %v481, %v482
      %v484 = vsel %vm339, %v448, 0.0
      %v485 = vadd.f32 %v483, %v484
      %v486 = vsel %vm339, %v449, 0.0
      %v487 = vadd.f32 %v485, %v486
      %v488 = vsel %vm339, %v450, 0.0
      %v489 = vadd.f32 %v487, %v488
      %v490 = vsel %vm339, %v451, 0.0
      %v491 = vadd.f32 %v489, %v490
      %v492 = vsel %vm339, %v452, 0.0
      %v493 = vadd.f32 %v491, %v492
      %v494 = vsel %vm339, %v453, 0.0
      %v495 = vadd.f32 %v493, %v494
      %v496 = vsel %vm339, %v454, 0.0
      %v497 = vadd.f32 %v495, %v496
      %v498 = vsel %vm339, %v455, 0.0
      %v499 = vadd.f32 %v497, %v498
      %v500 = vsel %vm339, %v456, 0.0
      %v501 = vadd.f32 %v499, %v500
      %v502 = vsel %vm339, %v457, 0.0
      %v503 = vadd.f32 %v501, %v502
      %v504 = vsel %vm339, %v458, 0.0
      %v505 = vadd.f32 %v503, %v504
      %v506 = vsel %vm339, %v459, 0.0
      %v507 = vadd.f32 %v505, %v506
      %v508 = vsel %vm339, %v460, 0.0
      %v509 = vadd.f32 %v507, %v508
      %v510 = vsel %vm339, %v461, 0.0
      %v511 = vadd.f32 %v509, %v510
      %v512 = vsel %vm339, %v462, 0.0
      %v513 = vadd.f32 %v511, %v512
      %v514 = vsel %vm339, %v463, 0.0
      %v515 = vadd.f32 %v513, %v514
      %v516 = vsel %vm339, %v464, 0.0
      %v517 = vadd.f32 %v515, %v516
      %v518 = vsel %vm339, %v465, 0.0
      %v519 = vadd.f32 %v517, %v518
      %v520 = vsel %vm339, %v466, 0.0
      %v521 = vadd.f32 %v519, %v520
      %v522 = vsel %vm339, %v467, 0.0
      %v523 = vadd.f32 %v521, %v522
      %v524 = vsel %vm339, %v468, 0.0
      %v525 = vadd.f32 %v523, %v524
      %v526 = vsel %vm339, %v469, 0.0
      %v527 = vadd.f32 %v525, %v526
      %v528 = vsel %vm339, %v470, 0.0
      %v529 = vadd.f32 %v527, %v528
      %v530 = vsel %vm339, %v471, 0.0
      %v531 = vadd.f32 %v529, %v530
      %v532 = vsel %vm339, %v472, 0.0
      %v533 = vadd.f32 %v531, %v532
      %v534 = vsel %vm339, %v473, 0.0
      %v535 = vadd.f32 %v533, %v534
      %v536 = vsel %vm339, %v474, 0.0
      %v537 = vadd.f32 %v535, %v536
      %v538 = vrot.slane %v537, 4
      %v539 = vadd.f32 %v537, %v538
      %v540 = vrot.slane %v539, 2
      %v541 = vadd.f32 %v539, %v540
      %v542 = vrot.slane %v541, 1
      %v543 = vadd.f32 %v541, %v542
      %v544 = vmul.f32 %v543, %v409
      %v545 = vadd.f32 %v544, 1e-05
      %v546 = vrsqrt.pop %v545
      %v547 = vmul.f32 %v411, %v546
      %v548 = vmul.f32 %v412, %v546
      %v549 = vmul.f32 %v413, %v546
      %v550 = vmul.f32 %v414, %v546
      %v551 = vmul.f32 %v415, %v546
      %v552 = vmul.f32 %v416, %v546
      %v553 = vmul.f32 %v417, %v546
      %v554 = vmul.f32 %v418, %v546
      %v555 = vmul.f32 %v419, %v546
      %v556 = vmul.f32 %v420, %v546
      %v557 = vmul.f32 %v421, %v546
      %v558 = vmul.f32 %v422, %v546
      %v559 = vmul.f32 %v423, %v546
      %v560 = vmul.f32 %v424, %v546
      %v561 = vmul.f32 %v425, %v546
      %v562 = vmul.f32 %v426, %v546
      %v563 = vmul.f32 %v427, %v546
      %v564 = vmul.f32 %v428, %v546
      %v565 = vmul.f32 %v429, %v546
      %v566 = vmul.f32 %v430, %v546
      %v567 = vmul.f32 %v431, %v546
      %v568 = vmul.f32 %v432, %v546
      %v569 = vmul.f32 %v433, %v546
      %v570 = vmul.f32 %v434, %v546
      %v571 = vmul.f32 %v435, %v546
      %v572 = vmul.f32 %v436, %v546
      %v573 = vmul.f32 %v437, %v546
      %v574 = vmul.f32 %v438, %v546
      %v575 = vmul.f32 %v439, %v546
      %v576 = vmul.f32 %v440, %v546
      %v577 = vmul.f32 %v441, %v546
      %v578 = vmul.f32 %v442, %v546
      %v579 = vld [vmem:[%s1] sm:$0x1]
      %v581 = vlaneseq
      %v582 = vshrl.u32 %v581, 7
      %v583 = vsub.s32 0, %v582
      %v584 = vrot.slane %v579, %v583
      %v586 = vmul.f32 %v547, %v584
      %v587 = vmul.f32 %v548, %v584
      %v588 = vmul.f32 %v549, %v584
      %v589 = vmul.f32 %v550, %v584
      %v590 = vmul.f32 %v551, %v584
      %v591 = vmul.f32 %v552, %v584
      %v592 = vmul.f32 %v553, %v584
      %v593 = vmul.f32 %v554, %v584
      %v594 = vmul.f32 %v555, %v584
      %v595 = vmul.f32 %v556, %v584
      %v596 = vmul.f32 %v557, %v584
      %v597 = vmul.f32 %v558, %v584
      %v598 = vmul.f32 %v559, %v584
      %v599 = vmul.f32 %v560, %v584
      %v600 = vmul.f32 %v561, %v584
      %v601 = vmul.f32 %v562, %v584
      %v602 = vmul.f32 %v563, %v584
      %v603 = vmul.f32 %v564, %v584
      %v604 = vmul.f32 %v565, %v584
      %v605 = vmul.f32 %v566, %v584
      %v606 = vmul.f32 %v567, %v584
      %v607 = vmul.f32 %v568, %v584
      %v608 = vmul.f32 %v569, %v584
      %v609 = vmul.f32 %v570, %v584
      %v610 = vmul.f32 %v571, %v584
      %v611 = vmul.f32 %v572, %v584
      %v612 = vmul.f32 %v573, %v584
      %v613 = vmul.f32 %v574, %v584
      %v614 = vmul.f32 %v575, %v584
      %v615 = vmul.f32 %v576, %v584
      %v616 = vmul.f32 %v577, %v584
      %v617 = vmul.f32 %v578, %v584
      %v618 = vld [vmem:[%s2] sm:$0x1]
      %v620 = vlaneseq
      %v621 = vshrl.u32 %v620, 7
      %v622 = vsub.s32 0, %v621
      %v623 = vrot.slane %v618, %v622
      %v625 = vadd.f32 %v586, %v623
      %v626 = vadd.f32 %v587, %v623
      %v627 = vadd.f32 %v588, %v623
      %v628 = vadd.f32 %v589, %v623
      %v629 = vadd.f32 %v590, %v623
      %v630 = vadd.f32 %v591, %v623
      %v631 = vadd.f32 %v592, %v623
      %v632 = vadd.f32 %v593, %v623
      %v633 = vadd.f32 %v594, %v623
      %v634 = vadd.f32 %v595, %v623
      %v635 = vadd.f32 %v596, %v623
      %v636 = vadd.f32 %v597, %v623
      %v637 = vadd.f32 %v598, %v623
      %v638 = vadd.f32 %v599, %v623
      %v639 = vadd.f32 %v600, %v623
      %v640 = vadd.f32 %v601, %v623
      %v641 = vadd.f32 %v602, %v623
      %v642 = vadd.f32 %v603, %v623
      %v643 = vadd.f32 %v604, %v623
      %v644 = vadd.f32 %v605, %v623
      %v645 = vadd.f32 %v606, %v623
      %v646 = vadd.f32 %v607, %v623
      %v647 = vadd.f32 %v608, %v623
      %v648 = vadd.f32 %v609, %v623
      %v649 = vadd.f32 %v610, %v623
      %v650 = vadd.f32 %v611, %v623
      %v651 = vadd.f32 %v612, %v623
      %v652 = vadd.f32 %v613, %v623
      %v653 = vadd.f32 %v614, %v623
      %v654 = vadd.f32 %v615, %v623
      %v655 = vadd.f32 %v616, %v623
      %v656 = vadd.f32 %v617, %v623
      %vm657 = vcmp.ge.f32.partialorder %v625, 0.0
      %vm658 = vcmp.ge.f32.partialorder %v626, 0.0
      %vm659 = vcmp.ge.f32.partialorder %v627, 0.0
      %vm660 = vcmp.ge.f32.partialorder %v628, 0.0
      %vm661 = vcmp.ge.f32.partialorder %v629, 0.0
      %vm662 = vcmp.ge.f32.partialorder %v630, 0.0
      %vm663 = vcmp.ge.f32.partialorder %v631, 0.0
      %vm664 = vcmp.ge.f32.partialorder %v632, 0.0
      %vm665 = vcmp.ge.f32.partialorder %v633, 0.0
      %vm666 = vcmp.ge.f32.partialorder %v634, 0.0
      %vm667 = vcmp.ge.f32.partialorder %v635, 0.0
      %vm668 = vcmp.ge.f32.partialorder %v636, 0.0
      %vm669 = vcmp.ge.f32.partialorder %v637, 0.0
      %vm670 = vcmp.ge.f32.partialorder %v638, 0.0
      %vm671 = vcmp.ge.f32.partialorder %v639, 0.0
      %vm672 = vcmp.ge.f32.partialorder %v640, 0.0
      %vm673 = vcmp.ge.f32.partialorder %v641, 0.0
      %vm674 = vcmp.ge.f32.partialorder %v642, 0.0
      %vm675 = vcmp.ge.f32.partialorder %v643, 0.0
      %vm676 = vcmp.ge.f32.partialorder %v644, 0.0
      %vm677 = vcmp.ge.f32.partialorder %v645, 0.0
      %vm678 = vcmp.ge.f32.partialorder %v646, 0.0
      %vm679 = vcmp.ge.f32.partialorder %v647, 0.0
      %vm680 = vcmp.ge.f32.partialorder %v648, 0.0
      %vm681 = vcmp.ge.f32.partialorder %v649, 0.0
      %vm682 = vcmp.ge.f32.partialorder %v650, 0.0
      %vm683 = vcmp.ge.f32.partialorder %v651, 0.0
      %vm684 = vcmp.ge.f32.partialorder %v652, 0.0
      %vm685 = vcmp.ge.f32.partialorder %v653, 0.0
      %vm686 = vcmp.ge.f32.partialorder %v654, 0.0
      %vm687 = vcmp.ge.f32.partialorder %v655, 0.0
      %vm688 = vcmp.ge.f32.partialorder %v656, 0.0
      %v689 = vmul.f32 %v625, 0.2
      %v690 = vmul.f32 %v626, 0.2
      %v691 = vmul.f32 %v627, 0.2
      %v692 = vmul.f32 %v628, 0.2
      %v693 = vmul.f32 %v629, 0.2
      %v694 = vmul.f32 %v630, 0.2
      %v695 = vmul.f32 %v631, 0.2
      %v696 = vmul.f32 %v632, 0.2
      %v697 = vmul.f32 %v633, 0.2
      %v698 = vmul.f32 %v634, 0.2
      %v699 = vmul.f32 %v635, 0.2
      %v700 = vmul.f32 %v636, 0.2
      %v701 = vmul.f32 %v637, 0.2
      %v702 = vmul.f32 %v638, 0.2
      %v703 = vmul.f32 %v639, 0.2
      %v704 = vmul.f32 %v640, 0.2
      %v705 = vmul.f32 %v641, 0.2
      %v706 = vmul.f32 %v642, 0.2
      %v707 = vmul.f32 %v643, 0.2
      %v708 = vmul.f32 %v644, 0.2
      %v709 = vmul.f32 %v645, 0.2
      %v710 = vmul.f32 %v646, 0.2
      %v711 = vmul.f32 %v647, 0.2
      %v712 = vmul.f32 %v648, 0.2
      %v713 = vmul.f32 %v649, 0.2
      %v714 = vmul.f32 %v650, 0.2
      %v715 = vmul.f32 %v651, 0.2
      %v716 = vmul.f32 %v652, 0.2
      %v717 = vmul.f32 %v653, 0.2
      %v718 = vmul.f32 %v654, 0.2
      %v719 = vmul.f32 %v655, 0.2
      %v720 = vmul.f32 %v656, 0.2
      %v721 = vsel %vm657, %v625, %v689
      %v722 = vsel %vm658, %v626, %v690
      %v723 = vsel %vm659, %v627, %v691
      %v724 = vsel %vm660, %v628, %v692
      %v725 = vsel %vm661, %v629, %v693
      %v726 = vsel %vm662, %v630, %v694
      %v727 = vsel %vm663, %v631, %v695
      %v728 = vsel %vm664, %v632, %v696
      %v729 = vsel %vm665, %v633, %v697
      %v730 = vsel %vm666, %v634, %v698
      %v731 = vsel %vm667, %v635, %v699
      %v732 = vsel %vm668, %v636, %v700
      %v733 = vsel %vm669, %v637, %v701
      %v734 = vsel %vm670, %v638, %v702
      %v735 = vsel %vm671, %v639, %v703
      %v736 = vsel %vm672, %v640, %v704
      %v737 = vsel %vm673, %v641, %v705
      %v738 = vsel %vm674, %v642, %v706
      %v739 = vsel %vm675, %v643, %v707
      %v740 = vsel %vm676, %v644, %v708
      %v741 = vsel %vm677, %v645, %v709
      %v742 = vsel %vm678, %v646, %v710
      %v743 = vsel %vm679, %v647, %v711
      %v744 = vsel %vm680, %v648, %v712
      %v745 = vsel %vm681, %v649, %v713
      %v746 = vsel %vm682, %v650, %v714
      %v747 = vsel %vm683, %v651, %v715
      %v748 = vsel %vm684, %v652, %v716
      %v749 = vsel %vm685, %v653, %v717
      %v750 = vsel %vm686, %v654, %v718
      %v751 = vsel %vm687, %v655, %v719
      %v752 = vsel %vm688, %v656, %v720
      %753 = vst.msk [vmem:[#allocation2] sm:$0xff] %vm339, 0.0
      %754 = vst.msk [vmem:[#allocation2 + $0x8] sm:$0xff] %vm339, 0.0
      %vm755 = vcmask 25600
      %756 = vst.msk [vmem:[#allocation2 + $0x10] sm:$0x3] %vm755, 0.0
      %757 = vst.msk [vmem:[#allocation2 + $0x18] sm:$0xff] %vm339, 0.0
      %758 = vst.msk [vmem:[#allocation2 + $0x20] sm:$0xff] %vm339, 0.0
      %759 = vst.msk [vmem:[#allocation2 + $0x28] sm:$0x3] %vm755, 0.0
      %760 = vst.msk [vmem:[#allocation2 + $0x30] sm:$0xff] %vm339, 0.0
      %761 = vst.msk [vmem:[#allocation2 + $0x38] sm:$0xff] %vm339, 0.0
      %762 = vst.msk [vmem:[#allocation2 + $0x40] sm:$0x3] %vm755, 0.0
      %763 = vst.msk [vmem:[#allocation2 + $0x48] sm:$0xff] %vm339, 0.0
      %764 = vst.msk [vmem:[#allocation2 + $0x50] sm:$0xff] %vm339, 0.0
      %765 = vst.msk [vmem:[#allocation2 + $0x58] sm:$0x3] %vm755, 0.0
      %766 = vst.msk [vmem:[#allocation2 + $0x60] sm:$0xff] %vm339, 0.0
      %767 = vst.msk [vmem:[#allocation2 + $0x68] sm:$0xff] %vm339, 0.0
      %768 = vst.msk [vmem:[#allocation2 + $0x70] sm:$0x3] %vm755, 0.0
      %769 = vst.msk [vmem:[#allocation2 + $0x78] sm:$0xff] %vm339, 0.0
      %770 = vst.msk [vmem:[#allocation2 + $0x80] sm:$0xff] %vm339, 0.0
      %771 = vst.msk [vmem:[#allocation2 + $0x88] sm:$0x3] %vm755, 0.0
      %772 = vst.msk [vmem:[#allocation2 + $0x90] sm:$0xff] %vm339, 0.0
      %773 = vst.msk [vmem:[#allocation2 + $0x98] sm:$0xff] %vm339, 0.0
      %774 = vst.msk [vmem:[#allocation2 + $0xa0] sm:$0x3] %vm755, 0.0
      %775 = vst.msk [vmem:[#allocation2 + $0xa8] sm:$0xff] %vm339, 0.0
      %776 = vst.msk [vmem:[#allocation2 + $0xb0] sm:$0xff] %vm339, 0.0
      %777 = vst.msk [vmem:[#allocation2 + $0xb8] sm:$0x3] %vm755, 0.0
      %778 = vst.msk [vmem:[#allocation2 + $0xc0] sm:$0xff] %vm339, 0.0
      %779 = vst.msk [vmem:[#allocation2 + $0xc8] sm:$0xff] %vm339, 0.0
      %780 = vst.msk [vmem:[#allocation2 + $0xd0] sm:$0x3] %vm755, 0.0
      %781 = vst.msk [vmem:[#allocation2 + $0xd8] sm:$0xff] %vm339, 0.0
      %782 = vst.msk [vmem:[#allocation2 + $0xe0] sm:$0xff] %vm339, 0.0
      %783 = vst.msk [vmem:[#allocation2 + $0xe8] sm:$0x3] %vm755, 0.0
      %784 = vst.msk [vmem:[#allocation2 + $0xf0] sm:$0xff] %vm339, 0.0
      %785 = vst.msk [vmem:[#allocation2 + $0xf8] sm:$0xff] %vm339, 0.0
      %786 = vst.msk [vmem:[#allocation2 + $0x100] sm:$0x3] %vm755, 0.0
      %787 = vst.msk [vmem:[#allocation2 + $0x108] sm:$0xff] %vm339, 0.0
      %788 = vst.msk [vmem:[#allocation2 + $0x110] sm:$0xff] %vm339, 0.0
      %789 = vst.msk [vmem:[#allocation2 + $0x118] sm:$0x3] %vm755, 0.0
      %790 = vst.msk [vmem:[#allocation2 + $0x120] sm:$0xff] %vm339, 0.0
      %791 = vst.msk [vmem:[#allocation2 + $0x128] sm:$0xff] %vm339, 0.0
      %792 = vst.msk [vmem:[#allocation2 + $0x130] sm:$0x3] %vm755, 0.0
      %793 = vst.msk [vmem:[#allocation2 + $0x138] sm:$0xff] %vm339, 0.0
      %794 = vst.msk [vmem:[#allocation2 + $0x140] sm:$0xff] %vm339, 0.0
      %795 = vst.msk [vmem:[#allocation2 + $0x148] sm:$0x3] %vm755, 0.0
      %796 = vst.msk [vmem:[#allocation2 + $0x150] sm:$0xff] %vm339, 0.0
      %797 = vst.msk [vmem:[#allocation2 + $0x158] sm:$0xff] %vm339, 0.0
      %798 = vst.msk [vmem:[#allocation2 + $0x160] sm:$0x3] %vm755, 0.0
      %799 = vst.msk [vmem:[#allocation2 + $0x168] sm:$0xff] %vm339, 0.0
      %800 = vst.msk [vmem:[#allocation2 + $0x170] sm:$0xff] %vm339, 0.0
      %801 = vst.msk [vmem:[#allocation2 + $0x178] sm:$0x3] %vm755, 0.0
      %802 = vst.msk [vmem:[#allocation2 + $0x180] sm:$0xff] %vm339, 0.0
      %803 = vst.msk [vmem:[#allocation2 + $0x188] sm:$0xff] %vm339, 0.0
      %804 = vst.msk [vmem:[#allocation2 + $0x190] sm:$0x3] %vm755, 0.0
      %805 = vst.msk [vmem:[#allocation2 + $0x198] sm:$0xff] %vm339, 0.0
      %806 = vst.msk [vmem:[#allocation2 + $0x1a0] sm:$0xff] %vm339, 0.0
      %807 = vst.msk [vmem:[#allocation2 + $0x1a8] sm:$0x3] %vm755, 0.0
      %s808 = scalar_lea.vmem [#allocation2], 24
      %809 = vst.msk [vmem:[%s808 + $0x1] sm:$0xff] %vm339, %v721
      %810 = vst.msk [vmem:[%s808 + $0x9] sm:$0xff] %vm339, %v722
      %811 = vst.msk [vmem:[%s808 + $0x19] sm:$0xff] %vm339, %v723
      %812 = vst.msk [vmem:[%s808 + $0x21] sm:$0xff] %vm339, %v724
      %813 = vst.msk [vmem:[%s808 + $0x31] sm:$0xff] %vm339, %v725
      %814 = vst.msk [vmem:[%s808 + $0x39] sm:$0xff] %vm339, %v726
      %815 = vst.msk [vmem:[%s808 + $0x49] sm:$0xff] %vm339, %v727
      %816 = vst.msk [vmem:[%s808 + $0x51] sm:$0xff] %vm339, %v728
      %817 = vst.msk [vmem:[%s808 + $0x61] sm:$0xff] %vm339, %v729
      %818 = vst.msk [vmem:[%s808 + $0x69] sm:$0xff] %vm339, %v730
      %819 = vst.msk [vmem:[%s808 + $0x79] sm:$0xff] %vm339, %v731
      %820 = vst.msk [vmem:[%s808 + $0x81] sm:$0xff] %vm339, %v732
      %821 = vst.msk [vmem:[%s808 + $0x91] sm:$0xff] %vm339, %v733
      %822 = vst.msk [vmem:[%s808 + $0x99] sm:$0xff] %vm339, %v734
      %823 = vst.msk [vmem:[%s808 + $0xa9] sm:$0xff] %vm339, %v735
      %824 = vst.msk [vmem:[%s808 + $0xb1] sm:$0xff] %vm339, %v736
      %825 = vst.msk [vmem:[%s808 + $0xc1] sm:$0xff] %vm339, %v737
      %826 = vst.msk [vmem:[%s808 + $0xc9] sm:$0xff] %vm339, %v738
      %827 = vst.msk [vmem:[%s808 + $0xd9] sm:$0xff] %vm339, %v739
      %828 = vst.msk [vmem:[%s808 + $0xe1] sm:$0xff] %vm339, %v740
      %829 = vst.msk [vmem:[%s808 + $0xf1] sm:$0xff] %vm339, %v741
      %830 = vst.msk [vmem:[%s808 + $0xf9] sm:$0xff] %vm339, %v742
      %831 = vst.msk [vmem:[%s808 + $0x109] sm:$0xff] %vm339, %v743
      %832 = vst.msk [vmem:[%s808 + $0x111] sm:$0xff] %vm339, %v744
      %833 = vst.msk [vmem:[%s808 + $0x121] sm:$0xff] %vm339, %v745
      %834 = vst.msk [vmem:[%s808 + $0x129] sm:$0xff] %vm339, %v746
      %835 = vst.msk [vmem:[%s808 + $0x139] sm:$0xff] %vm339, %v747
      %836 = vst.msk [vmem:[%s808 + $0x141] sm:$0xff] %vm339, %v748
      %837 = vst.msk [vmem:[%s808 + $0x151] sm:$0xff] %vm339, %v749
      %838 = vst.msk [vmem:[%s808 + $0x159] sm:$0xff] %vm339, %v750
      %839 = vst.msk [vmem:[%s808 + $0x169] sm:$0xff] %vm339, %v751
      %840 = vst.msk [vmem:[%s808 + $0x171] sm:$0xff] %vm339, %v752
      %v841 = vld [vmem:[#allocation2] sm:$0xff]
      %v842 = vld [vmem:[#allocation2 + $0x8] sm:$0xff]
      %v843 = vld [vmem:[#allocation2 + $0x18] sm:$0xff]
      %v844 = vld [vmem:[#allocation2 + $0x20] sm:$0xff]
      %v845 = vld [vmem:[#allocation2 + $0x30] sm:$0xff]
      %v846 = vld [vmem:[#allocation2 + $0x38] sm:$0xff]
      %v847 = vld [vmem:[#allocation2 + $0x48] sm:$0xff]
      %v848 = vld [vmem:[#allocation2 + $0x50] sm:$0xff]
      %v849 = vld [vmem:[#allocation2 + $0x60] sm:$0xff]
      %v850 = vld [vmem:[#allocation2 + $0x68] sm:$0xff]
      %v851 = vld [vmem:[#allocation2 + $0x78] sm:$0xff]
      %v852 = vld [vmem:[#allocation2 + $0x80] sm:$0xff]
      %v853 = vld [vmem:[#allocation2 + $0x90] sm:$0xff]
      %v854 = vld [vmem:[#allocation2 + $0x98] sm:$0xff]
      %v855 = vld [vmem:[#allocation2 + $0xa8] sm:$0xff]
      %v856 = vld [vmem:[#allocation2 + $0xb0] sm:$0xff]
      %v857 = vld [vmem:[#allocation2 + $0xc0] sm:$0xff]
      %v858 = vld [vmem:[#allocation2 + $0xc8] sm:$0xff]
      %v859 = vld [vmem:[#allocation2 + $0xd8] sm:$0xff]
      %v860 = vld [vmem:[#allocation2 + $0xe0] sm:$0xff]
      %v861 = vld [vmem:[#allocation2 + $0xf0] sm:$0xff]
      %v862 = vld [vmem:[#allocation2 + $0xf8] sm:$0xff]
      %v863 = vld [vmem:[#allocation2 + $0x108] sm:$0xff]
      %v864 = vld [vmem:[#allocation2 + $0x110] sm:$0xff]
      %v865 = vld [vmem:[#allocation2 + $0x120] sm:$0xff]
      %v866 = vld [vmem:[#allocation2 + $0x128] sm:$0xff]
      %v867 = vld [vmem:[#allocation2 + $0x138] sm:$0xff]
      %v868 = vld [vmem:[#allocation2 + $0x140] sm:$0xff]
      %v869 = vld [vmem:[#allocation2 + $0x150] sm:$0xff]
      %v870 = vld [vmem:[#allocation2 + $0x158] sm:$0xff]
      %v871 = vld [vmem:[#allocation2 + $0x168] sm:$0xff]
      %v872 = vld [vmem:[#allocation2 + $0x170] sm:$0xff]
      %v873 = vpack.c.bf16 %v842, %v841
      %v874 = vpack.c.bf16 %v844, %v843
      %v875 = vpack.c.bf16 %v846, %v845
      %v876 = vpack.c.bf16 %v848, %v847
      %v877 = vpack.c.bf16 %v850, %v849
      %v878 = vpack.c.bf16 %v852, %v851
      %v879 = vpack.c.bf16 %v854, %v853
      %v880 = vpack.c.bf16 %v856, %v855
      %v881 = vpack.c.bf16 %v858, %v857
      %v882 = vpack.c.bf16 %v860, %v859
      %v883 = vpack.c.bf16 %v862, %v861
      %v884 = vpack.c.bf16 %v864, %v863
      %v885 = vpack.c.bf16 %v866, %v865
      %v886 = vpack.c.bf16 %v868, %v867
      %v887 = vpack.c.bf16 %v870, %v869
      %v888 = vpack.c.bf16 %v872, %v871
      %v889 = vld [vmem:[%s5] sm:$0x3]
      %v890 = vld [vmem:[#allocation2 + $0x1] sm:$0xff]
      %v891 = vld [vmem:[#allocation2 + $0x9] sm:$0xff]
      %v892 = vld [vmem:[#allocation2 + $0x19] sm:$0xff]
      %v893 = vld [vmem:[#allocation2 + $0x21] sm:$0xff]
      %v894 = vld [vmem:[#allocation2 + $0x31] sm:$0xff]
      %v895 = vld [vmem:[#allocation2 + $0x39] sm:$0xff]
      %v896 = vld [vmem:[#allocation2 + $0x49] sm:$0xff]
      %v897 = vld [vmem:[#allocation2 + $0x51] sm:$0xff]
      %v898 = vld [vmem:[#allocation2 + $0x61] sm:$0xff]
      %v899 = vld [vmem:[#allocation2 + $0x69] sm:$0xff]
      %v900 = vld [vmem:[#allocation2 + $0x79] sm:$0xff]
      %v901 = vld [vmem:[#allocation2 + $0x81] sm:$0xff]
      %v902 = vld [vmem:[#allocation2 + $0x91] sm:$0xff]
      %v903 = vld [vmem:[#allocation2 + $0x99] sm:$0xff]
      %v904 = vld [vmem:[#allocation2 + $0xa9] sm:$0xff]
      %v905 = vld [vmem:[#allocation2 + $0xb1] sm:$0xff]
      %v906 = vld [vmem:[#allocation2 + $0xc1] sm:$0xff]
      %v907 = vld [vmem:[#allocation2 + $0xc9] sm:$0xff]
      %v908 = vld [vmem:[#allocation2 + $0xd9] sm:$0xff]
      %v909 = vld [vmem:[#allocation2 + $0xe1] sm:$0xff]
      %v910 = vld [vmem:[#allocation2 + $0xf1] sm:$0xff]
      %v911 = vld [vmem:[#allocation2 + $0xf9] sm:$0xff]
      %v912 = vld [vmem:[#allocation2 + $0x109] sm:$0xff]
      %v913 = vld [vmem:[#allocation2 + $0x111] sm:$0xff]
      %v914 = vld [vmem:[#allocation2 + $0x121] sm:$0xff]
      %v915 = vld [vmem:[#allocation2 + $0x129] sm:$0xff]
      %v916 = vld [vmem:[#allocation2 + $0x139] sm:$0xff]
      %v917 = vld [vmem:[#allocation2 + $0x141] sm:$0xff]
      %v918 = vld [vmem:[#allocation2 + $0x151] sm:$0xff]
      %v919 = vld [vmem:[#allocation2 + $0x159] sm:$0xff]
      %v920 = vld [vmem:[#allocation2 + $0x169] sm:$0xff]
      %v921 = vld [vmem:[#allocation2 + $0x171] sm:$0xff]
      %v922 = vpack.c.bf16 %v891, %v890
      %v923 = vpack.c.bf16 %v893, %v892
      %v924 = vpack.c.bf16 %v895, %v894
      %v925 = vpack.c.bf16 %v897, %v896
      %v926 = vpack.c.bf16 %v899, %v898
      %v927 = vpack.c.bf16 %v901, %v900
      %v928 = vpack.c.bf16 %v903, %v902
      %v929 = vpack.c.bf16 %v905, %v904
      %v930 = vpack.c.bf16 %v907, %v906
      %v931 = vpack.c.bf16 %v909, %v908
      %v932 = vpack.c.bf16 %v911, %v910
      %v933 = vpack.c.bf16 %v913, %v912
      %v934 = vpack.c.bf16 %v915, %v914
      %v935 = vpack.c.bf16 %v917, %v916
      %v936 = vpack.c.bf16 %v919, %v918
      %v937 = vpack.c.bf16 %v921, %v920
      %s938 = scalar_lea.vmem %s5, 2
      %v939 = vld [vmem:[%s938] sm:$0x3]
      %v941 = vsel %vm339, %v922, 0
      %v944 = vsel %vm339, %v923, 0
      %v947 = vsel %vm339, %v924, 0
      %v950 = vsel %vm339, %v925, 0
      %v953 = vsel %vm339, %v926, 0
      %v956 = vsel %vm339, %v927, 0
      %v959 = vsel %vm339, %v928, 0
      %v962 = vsel %vm339, %v929, 0
      %v965 = vsel %vm339, %v930, 0
      %v968 = vsel %vm339, %v931, 0
      %v971 = vsel %vm339, %v932, 0
      %v974 = vsel %vm339, %v933, 0
      %v977 = vsel %vm339, %v934, 0
      %v980 = vsel %vm339, %v935, 0
      %v983 = vsel %vm339, %v936, 0
      %v986 = vsel %vm339, %v937, 0
      %vm988 = vcmask 1041408
      %v990 = vsel %vm988, %v939, 0
      %992 = vmatprep.subr.bf16.mxu0 0
      %993 = vmatpush1.bf16.msra.mxu0 %v990
      %994 = vmatprep.subr.bf16.mxu0 0
      %995 = vmatpush1.bf16.msra.mxu0 0
      %996 = vmatprep.subr.bf16.mxu0 0
      %997 = vmatpush1.bf16.msra.mxu0 0
      %998 = vmatprep.subr.bf16.mxu0 0
      %999 = vmatpush1.bf16.msra.mxu0 0
      %1000 = vmatprep.subr.bf16.mxu0 0
      %1001 = vmatpush1.bf16.msra.mxu0 0
      %1002 = vmatprep.subr.bf16.mxu0 0
      %1003 = vmatpush1.bf16.msra.mxu0 0
      %1004 = vmatprep.subr.bf16.mxu0 0
      %1005 = vmatpush1.bf16.msra.mxu0 0
      %1006 = vmatprep.subr.bf16.mxu0 0
      %1007 = vmatpush1.bf16.msra.mxu0 0
      %1008 = vmatprep.subr.bf16.mxu0 0
      %1009 = vmatpush1.bf16.msra.mxu0 0
      %1010 = vmatprep.subr.bf16.mxu0 0
      %1011 = vmatpush1.bf16.msra.mxu0 0
      %1012 = vmatprep.subr.bf16.mxu0 0
      %1013 = vmatpush1.bf16.msra.mxu0 0
      %1014 = vmatprep.subr.bf16.mxu0 0
      %1015 = vmatpush1.bf16.msra.mxu0 0
      %1016 = vmatprep.subr.bf16.mxu0 0
      %1017 = vmatpush1.bf16.msra.mxu0 0
      %1018 = vmatprep.subr.bf16.mxu0 0
      %1019 = vmatpush1.bf16.msra.mxu0 0
      %1020 = vmatprep.subr.bf16.mxu0 0
      %1021 = vmatpush1.bf16.msra.mxu0 0
      %1022 = vmatprep.subr.bf16.mxu0 0
      %1023 = vmatpush1.bf16.msra.mxu0 0
      %1024 = vmatprep.mubr.bf16.mxu0 0
      %1025 = vmatmul.mubr.bf16.gmra.mrb[0].mxu0 %v941
      %v1026 = vpop.f32.mrb[0].mxu0
      %v1027 = vadd.f32 0.0, %v1026
      %v1028 = vpop.f32.mrb[0].mxu0
      %v1029 = vpop.f32.mrb[0].mxu0
      %v1030 = vadd.f32 0.0, %v1029
      %v1031 = vpop.f32.mrb[0].mxu0
      %1032 = vmatprep.mubr.bf16.mxu0 0
      %1033 = vmatmul.mubr.bf16.gmra.mrb[0].mxu0 %v944
      %v1034 = vpop.f32.mrb[0].mxu0
      %v1035 = vadd.f32 0.0, %v1034
      %v1036 = vpop.f32.mrb[0].mxu0
      %v1037 = vpop.f32.mrb[0].mxu0
      %v1038 = vadd.f32 0.0, %v1037
      %v1039 = vpop.f32.mrb[0].mxu0
      %1040 = vmatprep.mubr.bf16.mxu0 0
      %1041 = vmatmul.mubr.bf16.gmra.mrb[0].mxu0 %v947
      %v1042 = vpop.f32.mrb[0].mxu0
      %v1043 = vadd.f32 0.0, %v1042
      %v1044 = vpop.f32.mrb[0].mxu0
      %v1045 = vpop.f32.mrb[0].mxu0
      %v1046 = vadd.f32 0.0, %v1045
      %v1047 = vpop.f32.mrb[0].mxu0
      %1048 = vmatprep.mubr.bf16.mxu0 0
      %1049 = vmatmul.mubr.bf16.gmra.mrb[0].mxu0 %v950
      %v1050 = vpop.f32.mrb[0].mxu0
      %v1051 = vadd.f32 0.0, %v1050
      %v1052 = vpop.f32.mrb[0].mxu0
      %v1053 = vpop.f32.mrb[0].mxu0
      %v1054 = vadd.f32 0.0, %v1053
      %v1055 = vpop.f32.mrb[0].mxu0
      %1056 = vmatprep.mubr.bf16.mxu0 0
      %1057 = vmatmul.mubr.bf16.gmra.mrb[0].mxu0 %v953
      %v1058 = vpop.f32.mrb[0].mxu0
      %v1059 = vadd.f32 0.0, %v1058
      %v1060 = vpop.f32.mrb[0].mxu0
      %v1061 = vpop.f32.mrb[0].mxu0
      %v1062 = vadd.f32 0.0, %v1061
      %v1063 = vpop.f32.mrb[0].mxu0
      %1064 = vmatprep.mubr.bf16.mxu0 0
      %1065 = vmatmul.mubr.bf16.gmra.mrb[0].mxu0 %v956
      %v1066 = vpop.f32.mrb[0].mxu0
      %v1067 = vadd.f32 0.0, %v1066
      %v1068 = vpop.f32.mrb[0].mxu0
      %v1069 = vpop.f32.mrb[0].mxu0
      %v1070 = vadd.f32 0.0, %v1069
      %v1071 = vpop.f32.mrb[0].mxu0
      %1072 = vmatprep.mubr.bf16.mxu0 0
      %1073 = vmatmul.mubr.bf16.gmra.mrb[0].mxu0 %v959
      %v1074 = vpop.f32.mrb[0].mxu0
      %v1075 = vadd.f32 0.0, %v1074
      %v1076 = vpop.f32.mrb[0].mxu0
      %v1077 = vpop.f32.mrb[0].mxu0
      %v1078 = vadd.f32 0.0, %v1077
      %v1079 = vpop.f32.mrb[0].mxu0
      %1080 = vmatprep.mubr.bf16.mxu0 0
      %1081 = vmatmul.mubr.bf16.gmra.mrb[0].mxu0 %v962
      %v1082 = vpop.f32.mrb[0].mxu0
      %v1083 = vadd.f32 0.0, %v1082
      %v1084 = vpop.f32.mrb[0].mxu0
      %v1085 = vpop.f32.mrb[0].mxu0
      %v1086 = vadd.f32 0.0, %v1085
      %v1087 = vpop.f32.mrb[0].mxu0
      %1088 = vmatprep.mubr.bf16.mxu0 0
      %1089 = vmatmul.mubr.bf16.gmra.mrb[0].mxu0 %v965
      %v1090 = vpop.f32.mrb[0].mxu0
      %v1091 = vadd.f32 0.0, %v1090
      %v1092 = vpop.f32.mrb[0].mxu0
      %v1093 = vpop.f32.mrb[0].mxu0
      %v1094 = vadd.f32 0.0, %v1093
      %v1095 = vpop.f32.mrb[0].mxu0
      %1096 = vmatprep.mubr.bf16.mxu0 0
      %1097 = vmatmul.mubr.bf16.gmra.mrb[0].mxu0 %v968
      %v1098 = vpop.f32.mrb[0].mxu0
      %v1099 = vadd.f32 0.0, %v1098
      %v1100 = vpop.f32.mrb[0].mxu0
      %v1101 = vpop.f32.mrb[0].mxu0
      %v1102 = vadd.f32 0.0, %v1101
      %v1103 = vpop.f32.mrb[0].mxu0
      %1104 = vmatprep.mubr.bf16.mxu0 0
      %1105 = vmatmul.mubr.bf16.gmra.mrb[0].mxu0 %v971
      %v1106 = vpop.f32.mrb[0].mxu0
      %v1107 = vadd.f32 0.0, %v1106
      %v1108 = vpop.f32.mrb[0].mxu0
      %v1109 = vpop.f32.mrb[0].mxu0
      %v1110 = vadd.f32 0.0, %v1109
      %v1111 = vpop.f32.mrb[0].mxu0
      %1112 = vmatprep.mubr.bf16.mxu0 0
      %1113 = vmatmul.mubr.bf16.gmra.mrb[0].mxu0 %v974
      %v1114 = vpop.f32.mrb[0].mxu0
      %v1115 = vadd.f32 0.0, %v1114
      %v1116 = vpop.f32.mrb[0].mxu0
      %v1117 = vpop.f32.mrb[0].mxu0
      %v1118 = vadd.f32 0.0, %v1117
      %v1119 = vpop.f32.mrb[0].mxu0
      %1120 = vmatprep.mubr.bf16.mxu0 0
      %1121 = vmatmul.mubr.bf16.gmra.mrb[0].mxu0 %v977
      %v1122 = vpop.f32.mrb[0].mxu0
      %v1123 = vadd.f32 0.0, %v1122
      %v1124 = vpop.f32.mrb[0].mxu0
      %v1125 = vpop.f32.mrb[0].mxu0
      %v1126 = vadd.f32 0.0, %v1125
      %v1127 = vpop.f32.mrb[0].mxu0
      %1128 = vmatprep.mubr.bf16.mxu0 0
      %1129 = vmatmul.mubr.bf16.gmra.mrb[0].mxu0 %v980
      %v1130 = vpop.f32.mrb[0].mxu0
      %v1131 = vadd.f32 0.0, %v1130
      %v1132 = vpop.f32.mrb[0].mxu0
      %v1133 = vpop.f32.mrb[0].mxu0
      %v1134 = vadd.f32 0.0, %v1133
      %v1135 = vpop.f32.mrb[0].mxu0
      %1136 = vmatprep.mubr.bf16.mxu0 0
      %1137 = vmatmul.mubr.bf16.gmra.mrb[0].mxu0 %v983
      %v1138 = vpop.f32.mrb[0].mxu0
      %v1139 = vadd.f32 0.0, %v1138
      %v1140 = vpop.f32.mrb[0].mxu0
      %v1141 = vpop.f32.mrb[0].mxu0
      %v1142 = vadd.f32 0.0, %v1141
      %v1143 = vpop.f32.mrb[0].mxu0
      %1144 = vmatprep.mubr.bf16.mxu0 0
      %1145 = vmatmul.mubr.bf16.gmra.mrb[0].mxu0 %v986
      %v1146 = vpop.f32.mrb[0].mxu0
      %v1147 = vadd.f32 0.0, %v1146
      %v1148 = vpop.f32.mrb[0].mxu0
      %v1149 = vpop.f32.mrb[0].mxu0
      %v1150 = vadd.f32 0.0, %v1149
      %v1151 = vpop.f32.mrb[0].mxu0
      %1152 = vdwg.mxu0
      %v1154 = vsel %vm339, %v873, 0
      %v1157 = vsel %vm339, %v874, 0
      %v1160 = vsel %vm339, %v875, 0
      %v1163 = vsel %vm339, %v876, 0
      %v1166 = vsel %vm339, %v877, 0
      %v1169 = vsel %vm339, %v878, 0
      %v1172 = vsel %vm339, %v879, 0
      %v1175 = vsel %vm339, %v880, 0
      %v1178 = vsel %vm339, %v881, 0
      %v1181 = vsel %vm339, %v882, 0
      %v1184 = vsel %vm339, %v883, 0
      %v1187 = vsel %vm339, %v884, 0
      %v1190 = vsel %vm339, %v885, 0
      %v1193 = vsel %vm339, %v886, 0
      %v1196 = vsel %vm339, %v887, 0
      %v1199 = vsel %vm339, %v888, 0
      %v1202 = vsel %vm988, %v889, 0
      %1204 = vmatprep.subr.bf16.mxu0 0
      %1205 = vmatpush1.bf16.msra.mxu0 %v1202
      %1206 = vmatprep.subr.bf16.mxu0 0
      %1207 = vmatpush1.bf16.msra.mxu0 0
      %1208 = vmatprep.subr.bf16.mxu0 0
      %1209 = vmatpush1.bf16.msra.mxu0 0
      %1210 = vmatprep.subr.bf16.mxu0 0
      %1211 = vmatpush1.bf16.msra.mxu0 0
      %1212 = vmatprep.subr.bf16.mxu0 0
      %1213 = vmatpush1.bf16.msra.mxu0 0
      %1214 = vmatprep.subr.bf16.mxu0 0
      %1215 = vmatpush1.bf16.msra.mxu0 0
      %1216 = vmatprep.subr.bf16.mxu0 0
      %1217 = vmatpush1.bf16.msra.mxu0 0
      %1218 = vmatprep.subr.bf16.mxu0 0
      %1219 = vmatpush1.bf16.msra.mxu0 0
      %1220 = vmatprep.subr.bf16.mxu0 0
      %1221 = vmatpush1.bf16.msra.mxu0 0
      %1222 = vmatprep.subr.bf16.mxu0 0
      %1223 = vmatpush1.bf16.msra.mxu0 0
      %1224 = vmatprep.subr.bf16.mxu0 0
      %1225 = vmatpush1.bf16.msra.mxu0 0
      %1226 = vmatprep.subr.bf16.mxu0 0
      %1227 = vmatpush1.bf16.msra.mxu0 0
      %1228 = vmatprep.subr.bf16.mxu0 0
      %1229 = vmatpush1.bf16.msra.mxu0 0
      %1230 = vmatprep.subr.bf16.mxu0 0
      %1231 = vmatpush1.bf16.msra.mxu0 0
      %1232 = vmatprep.subr.bf16.mxu0 0
      %1233 = vmatpush1.bf16.msra.mxu0 0
      %1234 = vmatprep.subr.bf16.mxu0 0
      %1235 = vmatpush1.bf16.msra.mxu0 0
      %1236 = vmatprep.mubr.bf16.mxu0 0
      %1237 = vmatmul.mubr.bf16.gmra.mrb[0].mxu0 %v1154
      %v1238 = vpop.f32.mrb[0].mxu0
      %v1239 = vadd.f32 %v1027, %v1238
      %v1240 = vpop.f32.mrb[0].mxu0
      %v1241 = vpop.f32.mrb[0].mxu0
      %v1242 = vadd.f32 %v1030, %v1241
      %v1243 = vpop.f32.mrb[0].mxu0
      %1244 = vmatprep.mubr.bf16.mxu0 0
      %1245 = vmatmul.mubr.bf16.gmra.mrb[0].mxu0 %v1157
      %v1246 = vpop.f32.mrb[0].mxu0
      %v1247 = vadd.f32 %v1035, %v1246
      %v1248 = vpop.f32.mrb[0].mxu0
      %v1249 = vpop.f32.mrb[0].mxu0
      %v1250 = vadd.f32 %v1038, %v1249
      %v1251 = vpop.f32.mrb[0].mxu0
      %1252 = vmatprep.mubr.bf16.mxu0 0
      %1253 = vmatmul.mubr.bf16.gmra.mrb[0].mxu0 %v1160
      %v1254 = vpop.f32.mrb[0].mxu0
      %v1255 = vadd.f32 %v1043, %v1254
      %v1256 = vpop.f32.mrb[0].mxu0
      %v1257 = vpop.f32.mrb[0].mxu0
      %v1258 = vadd.f32 %v1046, %v1257
      %v1259 = vpop.f32.mrb[0].mxu0
      %1260 = vmatprep.mubr.bf16.mxu0 0
      %1261 = vmatmul.mubr.bf16.gmra.mrb[0].mxu0 %v1163
      %v1262 = vpop.f32.mrb[0].mxu0
      %v1263 = vadd.f32 %v1051, %v1262
      %v1264 = vpop.f32.mrb[0].mxu0
      %v1265 = vpop.f32.mrb[0].mxu0
      %v1266 = vadd.f32 %v1054, %v1265
      %v1267 = vpop.f32.mrb[0].mxu0
      %1268 = vmatprep.mubr.bf16.mxu0 0
      %1269 = vmatmul.mubr.bf16.gmra.mrb[0].mxu0 %v1166
      %v1270 = vpop.f32.mrb[0].mxu0
      %v1271 = vadd.f32 %v1059, %v1270
      %v1272 = vpop.f32.mrb[0].mxu0
      %v1273 = vpop.f32.mrb[0].mxu0
      %v1274 = vadd.f32 %v1062, %v1273
      %v1275 = vpop.f32.mrb[0].mxu0
      %1276 = vmatprep.mubr.bf16.mxu0 0
      %1277 = vmatmul.mubr.bf16.gmra.mrb[0].mxu0 %v1169
      %v1278 = vpop.f32.mrb[0].mxu0
      %v1279 = vadd.f32 %v1067, %v1278
      %v1280 = vpop.f32.mrb[0].mxu0
      %v1281 = vpop.f32.mrb[0].mxu0
      %v1282 = vadd.f32 %v1070, %v1281
      %v1283 = vpop.f32.mrb[0].mxu0
      %1284 = vmatprep.mubr.bf16.mxu0 0
      %1285 = vmatmul.mubr.bf16.gmra.mrb[0].mxu0 %v1172
      %v1286 = vpop.f32.mrb[0].mxu0
      %v1287 = vadd.f32 %v1075, %v1286
      %v1288 = vpop.f32.mrb[0].mxu0
      %v1289 = vpop.f32.mrb[0].mxu0
      %v1290 = vadd.f32 %v1078, %v1289
      %v1291 = vpop.f32.mrb[0].mxu0
      %1292 = vmatprep.mubr.bf16.mxu0 0
      %1293 = vmatmul.mubr.bf16.gmra.mrb[0].mxu0 %v1175
      %v1294 = vpop.f32.mrb[0].mxu0
      %v1295 = vadd.f32 %v1083, %v1294
      %v1296 = vpop.f32.mrb[0].mxu0
      %v1297 = vpop.f32.mrb[0].mxu0
      %v1298 = vadd.f32 %v1086, %v1297
      %v1299 = vpop.f32.mrb[0].mxu0
      %1300 = vmatprep.mubr.bf16.mxu0 0
      %1301 = vmatmul.mubr.bf16.gmra.mrb[0].mxu0 %v1178
      %v1302 = vpop.f32.mrb[0].mxu0
      %v1303 = vadd.f32 %v1091, %v1302
      %v1304 = vpop.f32.mrb[0].mxu0
      %v1305 = vpop.f32.mrb[0].mxu0
      %v1306 = vadd.f32 %v1094, %v1305
      %v1307 = vpop.f32.mrb[0].mxu0
      %1308 = vmatprep.mubr.bf16.mxu0 0
      %1309 = vmatmul.mubr.bf16.gmra.mrb[0].mxu0 %v1181
      %v1310 = vpop.f32.mrb[0].mxu0
      %v1311 = vadd.f32 %v1099, %v1310
      %v1312 = vpop.f32.mrb[0].mxu0
      %v1313 = vpop.f32.mrb[0].mxu0
      %v1314 = vadd.f32 %v1102, %v1313
      %v1315 = vpop.f32.mrb[0].mxu0
      %1316 = vmatprep.mubr.bf16.mxu0 0
      %1317 = vmatmul.mubr.bf16.gmra.mrb[0].mxu0 %v1184
      %v1318 = vpop.f32.mrb[0].mxu0
      %v1319 = vadd.f32 %v1107, %v1318
      %v1320 = vpop.f32.mrb[0].mxu0
      %v1321 = vpop.f32.mrb[0].mxu0
      %v1322 = vadd.f32 %v1110, %v1321
      %v1323 = vpop.f32.mrb[0].mxu0
      %1324 = vmatprep.mubr.bf16.mxu0 0
      %1325 = vmatmul.mubr.bf16.gmra.mrb[0].mxu0 %v1187
      %v1326 = vpop.f32.mrb[0].mxu0
      %v1327 = vadd.f32 %v1115, %v1326
      %v1328 = vpop.f32.mrb[0].mxu0
      %v1329 = vpop.f32.mrb[0].mxu0
      %v1330 = vadd.f32 %v1118, %v1329
      %v1331 = vpop.f32.mrb[0].mxu0
      %1332 = vmatprep.mubr.bf16.mxu0 0
      %1333 = vmatmul.mubr.bf16.gmra.mrb[0].mxu0 %v1190
      %v1334 = vpop.f32.mrb[0].mxu0
      %v1335 = vadd.f32 %v1123, %v1334
      %v1336 = vpop.f32.mrb[0].mxu0
      %v1337 = vpop.f32.mrb[0].mxu0
      %v1338 = vadd.f32 %v1126, %v1337
      %v1339 = vpop.f32.mrb[0].mxu0
      %1340 = vmatprep.mubr.bf16.mxu0 0
      %1341 = vmatmul.mubr.bf16.gmra.mrb[0].mxu0 %v1193
      %v1342 = vpop.f32.mrb[0].mxu0
      %v1343 = vadd.f32 %v1131, %v1342
      %v1344 = vpop.f32.mrb[0].mxu0
      %v1345 = vpop.f32.mrb[0].mxu0
      %v1346 = vadd.f32 %v1134, %v1345
      %v1347 = vpop.f32.mrb[0].mxu0
      %1348 = vmatprep.mubr.bf16.mxu0 0
      %1349 = vmatmul.mubr.bf16.gmra.mrb[0].mxu0 %v1196
      %v1350 = vpop.f32.mrb[0].mxu0
      %v1351 = vadd.f32 %v1139, %v1350
      %v1352 = vpop.f32.mrb[0].mxu0
      %v1353 = vpop.f32.mrb[0].mxu0
      %v1354 = vadd.f32 %v1142, %v1353
      %v1355 = vpop.f32.mrb[0].mxu0
      %1356 = vmatprep.mubr.bf16.mxu0 0
      %1357 = vmatmul.mubr.bf16.gmra.mrb[0].mxu0 %v1199
      %v1358 = vpop.f32.mrb[0].mxu0
      %v1359 = vadd.f32 %v1147, %v1358
      %v1360 = vpop.f32.mrb[0].mxu0
      %v1361 = vpop.f32.mrb[0].mxu0
      %v1362 = vadd.f32 %v1150, %v1361
      %v1363 = vpop.f32.mrb[0].mxu0
      %1364 = vdwg.mxu0
      %v1365 = vld [vmem:[#allocation2 + $0x2] sm:$0xff]
      %v1366 = vld [vmem:[#allocation2 + $0xa] sm:$0xff]
      %v1367 = vld [vmem:[#allocation2 + $0x1a] sm:$0xff]
      %v1368 = vld [vmem:[#allocation2 + $0x22] sm:$0xff]
      %v1369 = vld [vmem:[#allocation2 + $0x32] sm:$0xff]
      %v1370 = vld [vmem:[#allocation2 + $0x3a] sm:$0xff]
      %v1371 = vld [vmem:[#allocation2 + $0x4a] sm:$0xff]
      %v1372 = vld [vmem:[#allocation2 + $0x52] sm:$0xff]
      %v1373 = vld [vmem:[#allocation2 + $0x62] sm:$0xff]
      %v1374 = vld [vmem:[#allocation2 + $0x6a] sm:$0xff]
      %v1375 = vld [vmem:[#allocation2 + $0x7a] sm:$0xff]
      %v1376 = vld [vmem:[#allocation2 + $0x82] sm:$0xff]
      %v1377 = vld [vmem:[#allocation2 + $0x92] sm:$0xff]
      %v1378 = vld [vmem:[#allocation2 + $0x9a] sm:$0xff]
      %v1379 = vld [vmem:[#allocation2 + $0xaa] sm:$0xff]
      %v1380 = vld [vmem:[#allocation2 + $0xb2] sm:$0xff]
      %v1381 = vld [vmem:[#allocation2 + $0xc2] sm:$0xff]
      %v1382 = vld [vmem:[#allocation2 + $0xca] sm:$0xff]
      %v1383 = vld [vmem:[#allocation2 + $0xda] sm:$0xff]
      %v1384 = vld [vmem:[#allocation2 + $0xe2] sm:$0xff]
      %v1385 = vld [vmem:[#allocation2 + $0xf2] sm:$0xff]
      %v1386 = vld [vmem:[#allocation2 + $0xfa] sm:$0xff]
      %v1387 = vld [vmem:[#allocation2 + $0x10a] sm:$0xff]
      %v1388 = vld [vmem:[#allocation2 + $0x112] sm:$0xff]
      %v1389 = vld [vmem:[#allocation2 + $0x122] sm:$0xff]
      %v1390 = vld [vmem:[#allocation2 + $0x12a] sm:$0xff]
      %v1391 = vld [vmem:[#allocation2 + $0x13a] sm:$0xff]
      %v1392 = vld [vmem:[#allocation2 + $0x142] sm:$0xff]
      %v1393 = vld [vmem:[#allocation2 + $0x152] sm:$0xff]
      %v1394 = vld [vmem:[#allocation2 + $0x15a] sm:$0xff]
      %v1395 = vld [vmem:[#allocation2 + $0x16a] sm:$0xff]
      %v1396 = vld [vmem:[#allocation2 + $0x172] sm:$0xff]
      %v1397 = vpack.c.bf16 %v1366, %v1365
      %v1398 = vpack.c.bf16 %v1368, %v1367
      %v1399 = vpack.c.bf16 %v1370, %v1369
      %v1400 = vpack.c.bf16 %v1372, %v1371
      %v1401 = vpack.c.bf16 %v1374, %v1373
      %v1402 = vpack.c.bf16 %v1376, %v1375
      %v1403 = vpack.c.bf16 %v1378, %v1377
      %v1404 = vpack.c.bf16 %v1380, %v1379
      %v1405 = vpack.c.bf16 %v1382, %v1381
      %v1406 = vpack.c.bf16 %v1384, %v1383
      %v1407 = vpack.c.bf16 %v1386, %v1385
      %v1408 = vpack.c.bf16 %v1388, %v1387
      %v1409 = vpack.c.bf16 %v1390, %v1389
      %v1410 = vpack.c.bf16 %v1392, %v1391
      %v1411 = vpack.c.bf16 %v1394, %v1393
      %v1412 = vpack.c.bf16 %v1396, %v1395
      %s1413 = scalar_lea.vmem %s5, 4
      %v1414 = vld [vmem:[%s1413] sm:$0x3]
      %v1416 = vsel %vm339, %v1397, 0
      %v1419 = vsel %vm339, %v1398, 0
      %v1422 = vsel %vm339, %v1399, 0
      %v1425 = vsel %vm339, %v1400, 0
      %v1428 = vsel %vm339, %v1401, 0
      %v1431 = vsel %vm339, %v1402, 0
      %v1434 = vsel %vm339, %v1403, 0
      %v1437 = vsel %vm339, %v1404, 0
      %v1440 = vsel %vm339, %v1405, 0
      %v1443 = vsel %vm339, %v1406, 0
      %v1446 = vsel %vm339, %v1407, 0
      %v1449 = vsel %vm339, %v1408, 0
      %v1452 = vsel %vm339, %v1409, 0
      %v1455 = vsel %vm339, %v1410, 0
      %v1458 = vsel %vm339, %v1411, 0
      %v1461 = vsel %vm339, %v1412, 0
      %v1464 = vsel %vm988, %v1414, 0
      %1466 = vmatprep.subr.bf16.mxu0 0
      %1467 = vmatpush1.bf16.msra.mxu0 %v1464
      %1468 = vmatprep.subr.bf16.mxu0 0
      %1469 = vmatpush1.bf16.msra.mxu0 0
      %1470 = vmatprep.subr.bf16.mxu0 0
      %1471 = vmatpush1.bf16.msra.mxu0 0
      %1472 = vmatprep.subr.bf16.mxu0 0
      %1473 = vmatpush1.bf16.msra.mxu0 0
      %1474 = vmatprep.subr.bf16.mxu0 0
      %1475 = vmatpush1.bf16.msra.mxu0 0
      %1476 = vmatprep.subr.bf16.mxu0 0
      %1477 = vmatpush1.bf16.msra.mxu0 0
      %1478 = vmatprep.subr.bf16.mxu0 0
      %1479 = vmatpush1.bf16.msra.mxu0 0
      %1480 = vmatprep.subr.bf16.mxu0 0
      %1481 = vmatpush1.bf16.msra.mxu0 0
      %1482 = vmatprep.subr.bf16.mxu0 0
      %1483 = vmatpush1.bf16.msra.mxu0 0
      %1484 = vmatprep.subr.bf16.mxu0 0
      %1485 = vmatpush1.bf16.msra.mxu0 0
      %1486 = vmatprep.subr.bf16.mxu0 0
      %1487 = vmatpush1.bf16.msra.mxu0 0
      %1488 = vmatprep.subr.bf16.mxu0 0
      %1489 = vmatpush1.bf16.msra.mxu0 0
      %1490 = vmatprep.subr.bf16.mxu0 0
      %1491 = vmatpush1.bf16.msra.mxu0 0
      %1492 = vmatprep.subr.bf16.mxu0 0
      %1493 = vmatpush1.bf16.msra.mxu0 0
      %1494 = vmatprep.subr.bf16.mxu0 0
      %1495 = vmatpush1.bf16.msra.mxu0 0
      %1496 = vmatprep.subr.bf16.mxu0 0
      %1497 = vmatpush1.bf16.msra.mxu0 0
      %1498 = vmatprep.mubr.bf16.mxu0 0
      %1499 = vmatmul.mubr.bf16.gmra.mrb[0].mxu0 %v1416
      %v1500 = vpop.f32.mrb[0].mxu0
      %v1501 = vadd.f32 0.0, %v1500
      %v1502 = vpop.f32.mrb[0].mxu0
      %v1503 = vpop.f32.mrb[0].mxu0
      %v1504 = vadd.f32 0.0, %v1503
      %v1505 = vpop.f32.mrb[0].mxu0
      %1506 = vmatprep.mubr.bf16.mxu0 0
      %1507 = vmatmul.mubr.bf16.gmra.mrb[0].mxu0 %v1419
      %v1508 = vpop.f32.mrb[0].mxu0
      %v1509 = vadd.f32 0.0, %v1508
      %v1510 = vpop.f32.mrb[0].mxu0
      %v1511 = vpop.f32.mrb[0].mxu0
      %v1512 = vadd.f32 0.0, %v1511
      %v1513 = vpop.f32.mrb[0].mxu0
      %1514 = vmatprep.mubr.bf16.mxu0 0
      %1515 = vmatmul.mubr.bf16.gmra.mrb[0].mxu0 %v1422
      %v1516 = vpop.f32.mrb[0].mxu0
      %v1517 = vadd.f32 0.0, %v1516
      %v1518 = vpop.f32.mrb[0].mxu0
      %v1519 = vpop.f32.mrb[0].mxu0
      %v1520 = vadd.f32 0.0, %v1519
      %v1521 = vpop.f32.mrb[0].mxu0
      %1522 = vmatprep.mubr.bf16.mxu0 0
      %1523 = vmatmul.mubr.bf16.gmra.mrb[0].mxu0 %v1425
      %v1524 = vpop.f32.mrb[0].mxu0
      %v1525 = vadd.f32 0.0, %v1524
      %v1526 = vpop.f32.mrb[0].mxu0
      %v1527 = vpop.f32.mrb[0].mxu0
      %v1528 = vadd.f32 0.0, %v1527
      %v1529 = vpop.f32.mrb[0].mxu0
      %1530 = vmatprep.mubr.bf16.mxu0 0
      %1531 = vmatmul.mubr.bf16.gmra.mrb[0].mxu0 %v1428
      %v1532 = vpop.f32.mrb[0].mxu0
      %v1533 = vadd.f32 0.0, %v1532
      %v1534 = vpop.f32.mrb[0].mxu0
      %v1535 = vpop.f32.mrb[0].mxu0
      %v1536 = vadd.f32 0.0, %v1535
      %v1537 = vpop.f32.mrb[0].mxu0
      %1538 = vmatprep.mubr.bf16.mxu0 0
      %1539 = vmatmul.mubr.bf16.gmra.mrb[0].mxu0 %v1431
      %v1540 = vpop.f32.mrb[0].mxu0
      %v1541 = vadd.f32 0.0, %v1540
      %v1542 = vpop.f32.mrb[0].mxu0
      %v1543 = vpop.f32.mrb[0].mxu0
      %v1544 = vadd.f32 0.0, %v1543
      %v1545 = vpop.f32.mrb[0].mxu0
      %1546 = vmatprep.mubr.bf16.mxu0 0
      %1547 = vmatmul.mubr.bf16.gmra.mrb[0].mxu0 %v1434
      %v1548 = vpop.f32.mrb[0].mxu0
      %v1549 = vadd.f32 0.0, %v1548
      %v1550 = vpop.f32.mrb[0].mxu0
      %v1551 = vpop.f32.mrb[0].mxu0
      %v1552 = vadd.f32 0.0, %v1551
      %v1553 = vpop.f32.mrb[0].mxu0
      %1554 = vmatprep.mubr.bf16.mxu0 0
      %1555 = vmatmul.mubr.bf16.gmra.mrb[0].mxu0 %v1437
      %v1556 = vpop.f32.mrb[0].mxu0
      %v1557 = vadd.f32 0.0, %v1556
      %v1558 = vpop.f32.mrb[0].mxu0
      %v1559 = vpop.f32.mrb[0].mxu0
      %v1560 = vadd.f32 0.0, %v1559
      %v1561 = vpop.f32.mrb[0].mxu0
      %1562 = vmatprep.mubr.bf16.mxu0 0
      %1563 = vmatmul.mubr.bf16.gmra.mrb[0].mxu0 %v1440
      %v1564 = vpop.f32.mrb[0].mxu0
      %v1565 = vadd.f32 0.0, %v1564
      %v1566 = vpop.f32.mrb[0].mxu0
      %v1567 = vpop.f32.mrb[0].mxu0
      %v1568 = vadd.f32 0.0, %v1567
      %v1569 = vpop.f32.mrb[0].mxu0
      %1570 = vmatprep.mubr.bf16.mxu0 0
      %1571 = vmatmul.mubr.bf16.gmra.mrb[0].mxu0 %v1443
      %v1572 = vpop.f32.mrb[0].mxu0
      %v1573 = vadd.f32 0.0, %v1572
      %v1574 = vpop.f32.mrb[0].mxu0
      %v1575 = vpop.f32.mrb[0].mxu0
      %v1576 = vadd.f32 0.0, %v1575
      %v1577 = vpop.f32.mrb[0].mxu0
      %1578 = vmatprep.mubr.bf16.mxu0 0
      %1579 = vmatmul.mubr.bf16.gmra.mrb[0].mxu0 %v1446
      %v1580 = vpop.f32.mrb[0].mxu0
      %v1581 = vadd.f32 0.0, %v1580
      %v1582 = vpop.f32.mrb[0].mxu0
      %v1583 = vpop.f32.mrb[0].mxu0
      %v1584 = vadd.f32 0.0, %v1583
      %v1585 = vpop.f32.mrb[0].mxu0
      %1586 = vmatprep.mubr.bf16.mxu0 0
      %1587 = vmatmul.mubr.bf16.gmra.mrb[0].mxu0 %v1449
      %v1588 = vpop.f32.mrb[0].mxu0
      %v1589 = vadd.f32 0.0, %v1588
      %v1590 = vpop.f32.mrb[0].mxu0
      %v1591 = vpop.f32.mrb[0].mxu0
      %v1592 = vadd.f32 0.0, %v1591
      %v1593 = vpop.f32.mrb[0].mxu0
      %1594 = vmatprep.mubr.bf16.mxu0 0
      %1595 = vmatmul.mubr.bf16.gmra.mrb[0].mxu0 %v1452
      %v1596 = vpop.f32.mrb[0].mxu0
      %v1597 = vadd.f32 0.0, %v1596
      %v1598 = vpop.f32.mrb[0].mxu0
      %v1599 = vpop.f32.mrb[0].mxu0
      %v1600 = vadd.f32 0.0, %v1599
      %v1601 = vpop.f32.mrb[0].mxu0
      %1602 = vmatprep.mubr.bf16.mxu0 0
      %1603 = vmatmul.mubr.bf16.gmra.mrb[0].mxu0 %v1455
      %v1604 = vpop.f32.mrb[0].mxu0
      %v1605 = vadd.f32 0.0, %v1604
      %v1606 = vpop.f32.mrb[0].mxu0
      %v1607 = vpop.f32.mrb[0].mxu0
      %v1608 = vadd.f32 0.0, %v1607
      %v1609 = vpop.f32.mrb[0].mxu0
      %1610 = vmatprep.mubr.bf16.mxu0 0
      %1611 = vmatmul.mubr.bf16.gmra.mrb[0].mxu0 %v1458
      %v1612 = vpop.f32.mrb[0].mxu0
      %v1613 = vadd.f32 0.0, %v1612
      %v1614 = vpop.f32.mrb[0].mxu0
      %v1615 = vpop.f32.mrb[0].mxu0
      %v1616 = vadd.f32 0.0, %v1615
      %v1617 = vpop.f32.mrb[0].mxu0
      %1618 = vmatprep.mubr.bf16.mxu0 0
      %1619 = vmatmul.mubr.bf16.gmra.mrb[0].mxu0 %v1461
      %v1620 = vpop.f32.mrb[0].mxu0
      %v1621 = vadd.f32 0.0, %v1620
      %v1622 = vpop.f32.mrb[0].mxu0
      %v1623 = vpop.f32.mrb[0].mxu0
      %v1624 = vadd.f32 0.0, %v1623
      %v1625 = vpop.f32.mrb[0].mxu0
      %1626 = vdwg.mxu0
      %v1627 = vadd.f32 %v1239, %v1501
      %v1628 = vadd.f32 %v1242, %v1504
      %v1629 = vadd.f32 %v1247, %v1509
      %v1630 = vadd.f32 %v1250, %v1512
      %v1631 = vadd.f32 %v1255, %v1517
      %v1632 = vadd.f32 %v1258, %v1520
      %v1633 = vadd.f32 %v1263, %v1525
      %v1634 = vadd.f32 %v1266, %v1528
      %v1635 = vadd.f32 %v1271, %v1533
      %v1636 = vadd.f32 %v1274, %v1536
      %v1637 = vadd.f32 %v1279, %v1541
      %v1638 = vadd.f32 %v1282, %v1544
      %v1639 = vadd.f32 %v1287, %v1549
      %v1640 = vadd.f32 %v1290, %v1552
      %v1641 = vadd.f32 %v1295, %v1557
      %v1642 = vadd.f32 %v1298, %v1560
      %v1643 = vadd.f32 %v1303, %v1565
      %v1644 = vadd.f32 %v1306, %v1568
      %v1645 = vadd.f32 %v1311, %v1573
      %v1646 = vadd.f32 %v1314, %v1576
      %v1647 = vadd.f32 %v1319, %v1581
      %v1648 = vadd.f32 %v1322, %v1584
      %v1649 = vadd.f32 %v1327, %v1589
      %v1650 = vadd.f32 %v1330, %v1592
      %v1651 = vadd.f32 %v1335, %v1597
      %v1652 = vadd.f32 %v1338, %v1600
      %v1653 = vadd.f32 %v1343, %v1605
      %v1654 = vadd.f32 %v1346, %v1608
      %v1655 = vadd.f32 %v1351, %v1613
      %v1656 = vadd.f32 %v1354, %v1616
      %v1657 = vadd.f32 %v1359, %v1621
      %v1658 = vadd.f32 %v1362, %v1624
      %v1659 = vld [vmem:[%s808] sm:$0xff]
      %v1660 = vld [vmem:[%s808 + $0x8] sm:$0xff]
      %v1661 = vld [vmem:[%s808 + $0x18] sm:$0xff]
      %v1662 = vld [vmem:[%s808 + $0x20] sm:$0xff]
      %v1663 = vld [vmem:[%s808 + $0x30] sm:$0xff]
      %v1664 = vld [vmem:[%s808 + $0x38] sm:$0xff]
      %v1665 = vld [vmem:[%s808 + $0x48] sm:$0xff]
      %v1666 = vld [vmem:[%s808 + $0x50] sm:$0xff]
      %v1667 = vld [vmem:[%s808 + $0x60] sm:$0xff]
      %v1668 = vld [vmem:[%s808 + $0x68] sm:$0xff]
      %v1669 = vld [vmem:[%s808 + $0x78] sm:$0xff]
      %v1670 = vld [vmem:[%s808 + $0x80] sm:$0xff]
      %v1671 = vld [vmem:[%s808 + $0x90] sm:$0xff]
      %v1672 = vld [vmem:[%s808 + $0x98] sm:$0xff]
      %v1673 = vld [vmem:[%s808 + $0xa8] sm:$0xff]
      %v1674 = vld [vmem:[%s808 + $0xb0] sm:$0xff]
      %v1675 = vld [vmem:[%s808 + $0xc0] sm:$0xff]
      %v1676 = vld [vmem:[%s808 + $0xc8] sm:$0xff]
      %v1677 = vld [vmem:[%s808 + $0xd8] sm:$0xff]
      %v1678 = vld [vmem:[%s808 + $0xe0] sm:$0xff]
      %v1679 = vld [vmem:[%s808 + $0xf0] sm:$0xff]
      %v1680 = vld [vmem:[%s808 + $0xf8] sm:$0xff]
      %v1681 = vld [vmem:[%s808 + $0x108] sm:$0xff]
      %v1682 = vld [vmem:[%s808 + $0x110] sm:$0xff]
      %v1683 = vld [vmem:[%s808 + $0x120] sm:$0xff]
      %v1684 = vld [vmem:[%s808 + $0x128] sm:$0xff]
      %v1685 = vld [vmem:[%s808 + $0x138] sm:$0xff]
      %v1686 = vld [vmem:[%s808 + $0x140] sm:$0xff]
      %v1687 = vld [vmem:[%s808 + $0x150] sm:$0xff]
      %v1688 = vld [vmem:[%s808 + $0x158] sm:$0xff]
      %v1689 = vld [vmem:[%s808 + $0x168] sm:$0xff]
      %v1690 = vld [vmem:[%s808 + $0x170] sm:$0xff]
      %v1691 = vpack.c.bf16 %v1660, %v1659
      %v1692 = vpack.c.bf16 %v1662, %v1661
      %v1693 = vpack.c.bf16 %v1664, %v1663
      %v1694 = vpack.c.bf16 %v1666, %v1665
      %v1695 = vpack.c.bf16 %v1668, %v1667
      %v1696 = vpack.c.bf16 %v1670, %v1669
      %v1697 = vpack.c.bf16 %v1672, %v1671
      %v1698 = vpack.c.bf16 %v1674, %v1673
      %v1699 = vpack.c.bf16 %v1676, %v1675
      %v1700 = vpack.c.bf16 %v1678, %v1677
      %v1701 = vpack.c.bf16 %v1680, %v1679
      %v1702 = vpack.c.bf16 %v1682, %v1681
      %v1703 = vpack.c.bf16 %v1684, %v1683
      %v1704 = vpack.c.bf16 %v1686, %v1685
      %v1705 = vpack.c.bf16 %v1688, %v1687
      %v1706 = vpack.c.bf16 %v1690, %v1689
      %s1707 = scalar_lea.vmem %s5, 6
      %v1708 = vld [vmem:[%s1707] sm:$0x3]
      %v1710 = vsel %vm339, %v1691, 0
      %v1713 = vsel %vm339, %v1692, 0
      %v1716 = vsel %vm339, %v1693, 0
      %v1719 = vsel %vm339, %v1694, 0
      %v1722 = vsel %vm339, %v1695, 0
      %v1725 = vsel %vm339, %v1696, 0
      %v1728 = vsel %vm339, %v1697, 0
      %v1731 = vsel %vm339, %v1698, 0
      %v1734 = vsel %vm339, %v1699, 0
      %v1737 = vsel %vm339, %v1700, 0
      %v1740 = vsel %vm339, %v1701, 0
      %v1743 = vsel %vm339, %v1702, 0
      %v1746 = vsel %vm339, %v1703, 0
      %v1749 = vsel %vm339, %v1704, 0
      %v1752 = vsel %vm339, %v1705, 0
      %v1755 = vsel %vm339, %v1706, 0
      %v1758 = vsel %vm988, %v1708, 0
      %1760 = vmatprep.subr.bf16.mxu0 0
      %1761 = vmatpush1.bf16.msra.mxu0 %v1758
      %1762 = vmatprep.subr.bf16.mxu0 0
      %1763 = vmatpush1.bf16.msra.mxu0 0
      %1764 = vmatprep.subr.bf16.mxu0 0
      %1765 = vmatpush1.bf16.msra.mxu0 0
      %1766 = vmatprep.subr.bf16.mxu0 0
      %1767 = vmatpush1.bf16.msra.mxu0 0
      %1768 = vmatprep.subr.bf16.mxu0 0
      %1769 = vmatpush1.bf16.msra.mxu0 0
      %1770 = vmatprep.subr.bf16.mxu0 0
      %1771 = vmatpush1.bf16.msra.mxu0 0
      %1772 = vmatprep.subr.bf16.mxu0 0
      %1773 = vmatpush1.bf16.msra.mxu0 0
      %1774 = vmatprep.subr.bf16.mxu0 0
      %1775 = vmatpush1.bf16.msra.mxu0 0
      %1776 = vmatprep.subr.bf16.mxu0 0
      %1777 = vmatpush1.bf16.msra.mxu0 0
      %1778 = vmatprep.subr.bf16.mxu0 0
      %1779 = vmatpush1.bf16.msra.mxu0 0
      %1780 = vmatprep.subr.bf16.mxu0 0
      %1781 = vmatpush1.bf16.msra.mxu0 0
      %1782 = vmatprep.subr.bf16.mxu0 0
      %1783 = vmatpush1.bf16.msra.mxu0 0
      %1784 = vmatprep.subr.bf16.mxu0 0
      %1785 = vmatpush1.bf16.msra.mxu0 0
      %1786 = vmatprep.subr.bf16.mxu0 0
      %1787 = vmatpush1.bf16.msra.mxu0 0
      %1788 = vmatprep.subr.bf16.mxu0 0
      %1789 = vmatpush1.bf16.msra.mxu0 0
      %1790 = vmatprep.subr.bf16.mxu0 0
      %1791 = vmatpush1.bf16.msra.mxu0 0
      %1792 = vmatprep.mubr.bf16.mxu0 0
      %1793 = vmatmul.mubr.bf16.gmra.mrb[0].mxu0 %v1710
      %v1794 = vpop.f32.mrb[0].mxu0
      %v1795 = vadd.f32 0.0, %v1794
      %v1796 = vpop.f32.mrb[0].mxu0
      %v1797 = vpop.f32.mrb[0].mxu0
      %v1798 = vadd.f32 0.0, %v1797
      %v1799 = vpop.f32.mrb[0].mxu0
      %1800 = vmatprep.mubr.bf16.mxu0 0
      %1801 = vmatmul.mubr.bf16.gmra.mrb[0].mxu0 %v1713
      %v1802 = vpop.f32.mrb[0].mxu0
      %v1803 = vadd.f32 0.0, %v1802
      %v1804 = vpop.f32.mrb[0].mxu0
      %v1805 = vpop.f32.mrb[0].mxu0
      %v1806 = vadd.f32 0.0, %v1805
      %v1807 = vpop.f32.mrb[0].mxu0
      %1808 = vmatprep.mubr.bf16.mxu0 0
      %1809 = vmatmul.mubr.bf16.gmra.mrb[0].mxu0 %v1716
      %v1810 = vpop.f32.mrb[0].mxu0
      %v1811 = vadd.f32 0.0, %v1810
      %v1812 = vpop.f32.mrb[0].mxu0
      %v1813 = vpop.f32.mrb[0].mxu0
      %v1814 = vadd.f32 0.0, %v1813
      %v1815 = vpop.f32.mrb[0].mxu0
      %1816 = vmatprep.mubr.bf16.mxu0 0
      %1817 = vmatmul.mubr.bf16.gmra.mrb[0].mxu0 %v1719
      %v1818 = vpop.f32.mrb[0].mxu0
      %v1819 = vadd.f32 0.0, %v1818
      %v1820 = vpop.f32.mrb[0].mxu0
      %v1821 = vpop.f32.mrb[0].mxu0
      %v1822 = vadd.f32 0.0, %v1821
      %v1823 = vpop.f32.mrb[0].mxu0
      %1824 = vmatprep.mubr.bf16.mxu0 0
      %1825 = vmatmul.mubr.bf16.gmra.mrb[0].mxu0 %v1722
      %v1826 = vpop.f32.mrb[0].mxu0
      %v1827 = vadd.f32 0.0, %v1826
      %v1828 = vpop.f32.mrb[0].mxu0
      %v1829 = vpop.f32.mrb[0].mxu0
      %v1830 = vadd.f32 0.0, %v1829
      %v1831 = vpop.f32.mrb[0].mxu0
      %1832 = vmatprep.mubr.bf16.mxu0 0
      %1833 = vmatmul.mubr.bf16.gmra.mrb[0].mxu0 %v1725
      %v1834 = vpop.f32.mrb[0].mxu0
      %v1835 = vadd.f32 0.0, %v1834
      %v1836 = vpop.f32.mrb[0].mxu0
      %v1837 = vpop.f32.mrb[0].mxu0
      %v1838 = vadd.f32 0.0, %v1837
      %v1839 = vpop.f32.mrb[0].mxu0
      %1840 = vmatprep.mubr.bf16.mxu0 0
      %1841 = vmatmul.mubr.bf16.gmra.mrb[0].mxu0 %v1728
      %v1842 = vpop.f32.mrb[0].mxu0
      %v1843 = vadd.f32 0.0, %v1842
      %v1844 = vpop.f32.mrb[0].mxu0
      %v1845 = vpop.f32.mrb[0].mxu0
      %v1846 = vadd.f32 0.0, %v1845
      %v1847 = vpop.f32.mrb[0].mxu0
      %1848 = vmatprep.mubr.bf16.mxu0 0
      %1849 = vmatmul.mubr.bf16.gmra.mrb[0].mxu0 %v1731
      %v1850 = vpop.f32.mrb[0].mxu0
      %v1851 = vadd.f32 0.0, %v1850
      %v1852 = vpop.f32.mrb[0].mxu0
      %v1853 = vpop.f32.mrb[0].mxu0
      %v1854 = vadd.f32 0.0, %v1853
      %v1855 = vpop.f32.mrb[0].mxu0
      %1856 = vmatprep.mubr.bf16.mxu0 0
      %1857 = vmatmul.mubr.bf16.gmra.mrb[0].mxu0 %v1734
      %v1858 = vpop.f32.mrb[0].mxu0
      %v1859 = vadd.f32 0.0, %v1858
      %v1860 = vpop.f32.mrb[0].mxu0
      %v1861 = vpop.f32.mrb[0].mxu0
      %v1862 = vadd.f32 0.0, %v1861
      %v1863 = vpop.f32.mrb[0].mxu0
      %1864 = vmatprep.mubr.bf16.mxu0 0
      %1865 = vmatmul.mubr.bf16.gmra.mrb[0].mxu0 %v1737
      %v1866 = vpop.f32.mrb[0].mxu0
      %v1867 = vadd.f32 0.0, %v1866
      %v1868 = vpop.f32.mrb[0].mxu0
      %v1869 = vpop.f32.mrb[0].mxu0
      %v1870 = vadd.f32 0.0, %v1869
      %v1871 = vpop.f32.mrb[0].mxu0
      %1872 = vmatprep.mubr.bf16.mxu0 0
      %1873 = vmatmul.mubr.bf16.gmra.mrb[0].mxu0 %v1740
      %v1874 = vpop.f32.mrb[0].mxu0
      %v1875 = vadd.f32 0.0, %v1874
      %v1876 = vpop.f32.mrb[0].mxu0
      %v1877 = vpop.f32.mrb[0].mxu0
      %v1878 = vadd.f32 0.0, %v1877
      %v1879 = vpop.f32.mrb[0].mxu0
      %1880 = vmatprep.mubr.bf16.mxu0 0
      %1881 = vmatmul.mubr.bf16.gmra.mrb[0].mxu0 %v1743
      %v1882 = vpop.f32.mrb[0].mxu0
      %v1883 = vadd.f32 0.0, %v1882
      %v1884 = vpop.f32.mrb[0].mxu0
      %v1885 = vpop.f32.mrb[0].mxu0
      %v1886 = vadd.f32 0.0, %v1885
      %v1887 = vpop.f32.mrb[0].mxu0
      %1888 = vmatprep.mubr.bf16.mxu0 0
      %1889 = vmatmul.mubr.bf16.gmra.mrb[0].mxu0 %v1746
      %v1890 = vpop.f32.mrb[0].mxu0
      %v1891 = vadd.f32 0.0, %v1890
      %v1892 = vpop.f32.mrb[0].mxu0
      %v1893 = vpop.f32.mrb[0].mxu0
      %v1894 = vadd.f32 0.0, %v1893
      %v1895 = vpop.f32.mrb[0].mxu0
      %1896 = vmatprep.mubr.bf16.mxu0 0
      %1897 = vmatmul.mubr.bf16.gmra.mrb[0].mxu0 %v1749
      %v1898 = vpop.f32.mrb[0].mxu0
      %v1899 = vadd.f32 0.0, %v1898
      %v1900 = vpop.f32.mrb[0].mxu0
      %v1901 = vpop.f32.mrb[0].mxu0
      %v1902 = vadd.f32 0.0, %v1901
      %v1903 = vpop.f32.mrb[0].mxu0
      %1904 = vmatprep.mubr.bf16.mxu0 0
      %1905 = vmatmul.mubr.bf16.gmra.mrb[0].mxu0 %v1752
      %v1906 = vpop.f32.mrb[0].mxu0
      %v1907 = vadd.f32 0.0, %v1906
      %v1908 = vpop.f32.mrb[0].mxu0
      %v1909 = vpop.f32.mrb[0].mxu0
      %v1910 = vadd.f32 0.0, %v1909
      %v1911 = vpop.f32.mrb[0].mxu0
      %1912 = vmatprep.mubr.bf16.mxu0 0
      %1913 = vmatmul.mubr.bf16.gmra.mrb[0].mxu0 %v1755
      %v1914 = vpop.f32.mrb[0].mxu0
      %v1915 = vadd.f32 0.0, %v1914
      %v1916 = vpop.f32.mrb[0].mxu0
      %v1917 = vpop.f32.mrb[0].mxu0
      %v1918 = vadd.f32 0.0, %v1917
      %v1919 = vpop.f32.mrb[0].mxu0
      %1920 = vdwg.mxu0
      %v1921 = vadd.f32 %v1627, %v1795
      %v1922 = vadd.f32 %v1628, %v1798
      %v1923 = vadd.f32 %v1629, %v1803
      %v1924 = vadd.f32 %v1630, %v1806
      %v1925 = vadd.f32 %v1631, %v1811
      %v1926 = vadd.f32 %v1632, %v1814
      %v1927 = vadd.f32 %v1633, %v1819
      %v1928 = vadd.f32 %v1634, %v1822
      %v1929 = vadd.f32 %v1635, %v1827
      %v1930 = vadd.f32 %v1636, %v1830
      %v1931 = vadd.f32 %v1637, %v1835
      %v1932 = vadd.f32 %v1638, %v1838
      %v1933 = vadd.f32 %v1639, %v1843
      %v1934 = vadd.f32 %v1640, %v1846
      %v1935 = vadd.f32 %v1641, %v1851
      %v1936 = vadd.f32 %v1642, %v1854
      %v1937 = vadd.f32 %v1643, %v1859
      %v1938 = vadd.f32 %v1644, %v1862
      %v1939 = vadd.f32 %v1645, %v1867
      %v1940 = vadd.f32 %v1646, %v1870
      %v1941 = vadd.f32 %v1647, %v1875
      %v1942 = vadd.f32 %v1648, %v1878
      %v1943 = vadd.f32 %v1649, %v1883
      %v1944 = vadd.f32 %v1650, %v1886
      %v1945 = vadd.f32 %v1651, %v1891
      %v1946 = vadd.f32 %v1652, %v1894
      %v1947 = vadd.f32 %v1653, %v1899
      %v1948 = vadd.f32 %v1654, %v1902
      %v1949 = vadd.f32 %v1655, %v1907
      %v1950 = vadd.f32 %v1656, %v1910
      %v1951 = vadd.f32 %v1657, %v1915
      %v1952 = vadd.f32 %v1658, %v1918
      %v1953 = vld [vmem:[%s808 + $0x1] sm:$0xff]
      %v1954 = vld [vmem:[%s808 + $0x9] sm:$0xff]
      %v1955 = vld [vmem:[%s808 + $0x19] sm:$0xff]
      %v1956 = vld [vmem:[%s808 + $0x21] sm:$0xff]
      %v1957 = vld [vmem:[%s808 + $0x31] sm:$0xff]
      %v1958 = vld [vmem:[%s808 + $0x39] sm:$0xff]
      %v1959 = vld [vmem:[%s808 + $0x49] sm:$0xff]
      %v1960 = vld [vmem:[%s808 + $0x51] sm:$0xff]
      %v1961 = vld [vmem:[%s808 + $0x61] sm:$0xff]
      %v1962 = vld [vmem:[%s808 + $0x69] sm:$0xff]
      %v1963 = vld [vmem:[%s808 + $0x79] sm:$0xff]
      %v1964 = vld [vmem:[%s808 + $0x81] sm:$0xff]
      %v1965 = vld [vmem:[%s808 + $0x91] sm:$0xff]
      %v1966 = vld [vmem:[%s808 + $0x99] sm:$0xff]
      %v1967 = vld [vmem:[%s808 + $0xa9] sm:$0xff]
      %v1968 = vld [vmem:[%s808 + $0xb1] sm:$0xff]
      %v1969 = vld [vmem:[%s808 + $0xc1] sm:$0xff]
      %v1970 = vld [vmem:[%s808 + $0xc9] sm:$0xff]
      %v1971 = vld [vmem:[%s808 + $0xd9] sm:$0xff]
      %v1972 = vld [vmem:[%s808 + $0xe1] sm:$0xff]
      %v1973 = vld [vmem:[%s808 + $0xf1] sm:$0xff]
      %v1974 = vld [vmem:[%s808 + $0xf9] sm:$0xff]
      %v1975 = vld [vmem:[%s808 + $0x109] sm:$0xff]
      %v1976 = vld [vmem:[%s808 + $0x111] sm:$0xff]
      %v1977 = vld [vmem:[%s808 + $0x121] sm:$0xff]
      %v1978 = vld [vmem:[%s808 + $0x129] sm:$0xff]
      %v1979 = vld [vmem:[%s808 + $0x139] sm:$0xff]
      %v1980 = vld [vmem:[%s808 + $0x141] sm:$0xff]
      %v1981 = vld [vmem:[%s808 + $0x151] sm:$0xff]
      %v1982 = vld [vmem:[%s808 + $0x159] sm:$0xff]
      %v1983 = vld [vmem:[%s808 + $0x169] sm:$0xff]
      %v1984 = vld [vmem:[%s808 + $0x171] sm:$0xff]
      %v1985 = vpack.c.bf16 %v1954, %v1953
      %v1986 = vpack.c.bf16 %v1956, %v1955
      %v1987 = vpack.c.bf16 %v1958, %v1957
      %v1988 = vpack.c.bf16 %v1960, %v1959
      %v1989 = vpack.c.bf16 %v1962, %v1961
      %v1990 = vpack.c.bf16 %v1964, %v1963
      %v1991 = vpack.c.bf16 %v1966, %v1965
      %v1992 = vpack.c.bf16 %v1968, %v1967
      %v1993 = vpack.c.bf16 %v1970, %v1969
      %v1994 = vpack.c.bf16 %v1972, %v1971
      %v1995 = vpack.c.bf16 %v1974, %v1973
      %v1996 = vpack.c.bf16 %v1976, %v1975
      %v1997 = vpack.c.bf16 %v1978, %v1977
      %v1998 = vpack.c.bf16 %v1980, %v1979
      %v1999 = vpack.c.bf16 %v1982, %v1981
      %v2000 = vpack.c.bf16 %v1984, %v1983
      %s2001 = scalar_lea.vmem %s5, 8
      %v2002 = vld [vmem:[%s2001] sm:$0x3]
      %v2004 = vsel %vm339, %v1985, 0
      %v2007 = vsel %vm339, %v1986, 0
      %v2010 = vsel %vm339, %v1987, 0
      %v2013 = vsel %vm339, %v1988, 0
      %v2016 = vsel %vm339, %v1989, 0
      %v2019 = vsel %vm339, %v1990, 0
      %v2022 = vsel %vm339, %v1991, 0
      %v2025 = vsel %vm339, %v1992, 0
      %v2028 = vsel %vm339, %v1993, 0
      %v2031 = vsel %vm339, %v1994, 0
      %v2034 = vsel %vm339, %v1995, 0
      %v2037 = vsel %vm339, %v1996, 0
      %v2040 = vsel %vm339, %v1997, 0
      %v2043 = vsel %vm339, %v1998, 0
      %v2046 = vsel %vm339, %v1999, 0
      %v2049 = vsel %vm339, %v2000, 0
      %v2052 = vsel %vm988, %v2002, 0
      %2054 = vmatprep.subr.bf16.mxu0 0
      %2055 = vmatpush1.bf16.msra.mxu0 %v2052
      %2056 = vmatprep.subr.bf16.mxu0 0
      %2057 = vmatpush1.bf16.msra.mxu0 0
      %2058 = vmatprep.subr.bf16.mxu0 0
      %2059 = vmatpush1.bf16.msra.mxu0 0
      %2060 = vmatprep.subr.bf16.mxu0 0
      %2061 = vmatpush1.bf16.msra.mxu0 0
      %2062 = vmatprep.subr.bf16.mxu0 0
      %2063 = vmatpush1.bf16.msra.mxu0 0
      %2064 = vmatprep.subr.bf16.mxu0 0
      %2065 = vmatpush1.bf16.msra.mxu0 0
      %2066 = vmatprep.subr.bf16.mxu0 0
      %2067 = vmatpush1.bf16.msra.mxu0 0
      %2068 = vmatprep.subr.bf16.mxu0 0
      %2069 = vmatpush1.bf16.msra.mxu0 0
      %2070 = vmatprep.subr.bf16.mxu0 0
      %2071 = vmatpush1.bf16.msra.mxu0 0
      %2072 = vmatprep.subr.bf16.mxu0 0
      %2073 = vmatpush1.bf16.msra.mxu0 0
      %2074 = vmatprep.subr.bf16.mxu0 0
      %2075 = vmatpush1.bf16.msra.mxu0 0
      %2076 = vmatprep.subr.bf16.mxu0 0
      %2077 = vmatpush1.bf16.msra.mxu0 0
      %2078 = vmatprep.subr.bf16.mxu0 0
      %2079 = vmatpush1.bf16.msra.mxu0 0
      %2080 = vmatprep.subr.bf16.mxu0 0
      %2081 = vmatpush1.bf16.msra.mxu0 0
      %2082 = vmatprep.subr.bf16.mxu0 0
      %2083 = vmatpush1.bf16.msra.mxu0 0
      %2084 = vmatprep.subr.bf16.mxu0 0
      %2085 = vmatpush1.bf16.msra.mxu0 0
      %2086 = vmatprep.mubr.bf16.mxu0 0
      %2087 = vmatmul.mubr.bf16.gmra.mrb[0].mxu0 %v2004
      %v2088 = vpop.f32.mrb[0].mxu0
      %v2089 = vadd.f32 0.0, %v2088
      %v2090 = vpop.f32.mrb[0].mxu0
      %v2091 = vpop.f32.mrb[0].mxu0
      %v2092 = vadd.f32 0.0, %v2091
      %v2093 = vpop.f32.mrb[0].mxu0
      %2094 = vmatprep.mubr.bf16.mxu0 0
      %2095 = vmatmul.mubr.bf16.gmra.mrb[0].mxu0 %v2007
      %v2096 = vpop.f32.mrb[0].mxu0
      %v2097 = vadd.f32 0.0, %v2096
      %v2098 = vpop.f32.mrb[0].mxu0
      %v2099 = vpop.f32.mrb[0].mxu0
      %v2100 = vadd.f32 0.0, %v2099
      %v2101 = vpop.f32.mrb[0].mxu0
      %2102 = vmatprep.mubr.bf16.mxu0 0
      %2103 = vmatmul.mubr.bf16.gmra.mrb[0].mxu0 %v2010
      %v2104 = vpop.f32.mrb[0].mxu0
      %v2105 = vadd.f32 0.0, %v2104
      %v2106 = vpop.f32.mrb[0].mxu0
      %v2107 = vpop.f32.mrb[0].mxu0
      %v2108 = vadd.f32 0.0, %v2107
      %v2109 = vpop.f32.mrb[0].mxu0
      %2110 = vmatprep.mubr.bf16.mxu0 0
      %2111 = vmatmul.mubr.bf16.gmra.mrb[0].mxu0 %v2013
      %v2112 = vpop.f32.mrb[0].mxu0
      %v2113 = vadd.f32 0.0, %v2112
      %v2114 = vpop.f32.mrb[0].mxu0
      %v2115 = vpop.f32.mrb[0].mxu0
      %v2116 = vadd.f32 0.0, %v2115
      %v2117 = vpop.f32.mrb[0].mxu0
      %2118 = vmatprep.mubr.bf16.mxu0 0
      %2119 = vmatmul.mubr.bf16.gmra.mrb[0].mxu0 %v2016
      %v2120 = vpop.f32.mrb[0].mxu0
      %v2121 = vadd.f32 0.0, %v2120
      %v2122 = vpop.f32.mrb[0].mxu0
      %v2123 = vpop.f32.mrb[0].mxu0
      %v2124 = vadd.f32 0.0, %v2123
      %v2125 = vpop.f32.mrb[0].mxu0
      %2126 = vmatprep.mubr.bf16.mxu0 0
      %2127 = vmatmul.mubr.bf16.gmra.mrb[0].mxu0 %v2019
      %v2128 = vpop.f32.mrb[0].mxu0
      %v2129 = vadd.f32 0.0, %v2128
      %v2130 = vpop.f32.mrb[0].mxu0
      %v2131 = vpop.f32.mrb[0].mxu0
      %v2132 = vadd.f32 0.0, %v2131
      %v2133 = vpop.f32.mrb[0].mxu0
      %2134 = vmatprep.mubr.bf16.mxu0 0
      %2135 = vmatmul.mubr.bf16.gmra.mrb[0].mxu0 %v2022
      %v2136 = vpop.f32.mrb[0].mxu0
      %v2137 = vadd.f32 0.0, %v2136
      %v2138 = vpop.f32.mrb[0].mxu0
      %v2139 = vpop.f32.mrb[0].mxu0
      %v2140 = vadd.f32 0.0, %v2139
      %v2141 = vpop.f32.mrb[0].mxu0
      %2142 = vmatprep.mubr.bf16.mxu0 0
      %2143 = vmatmul.mubr.bf16.gmra.mrb[0].mxu0 %v2025
      %v2144 = vpop.f32.mrb[0].mxu0
      %v2145 = vadd.f32 0.0, %v2144
      %v2146 = vpop.f32.mrb[0].mxu0
      %v2147 = vpop.f32.mrb[0].mxu0
      %v2148 = vadd.f32 0.0, %v2147
      %v2149 = vpop.f32.mrb[0].mxu0
      %2150 = vmatprep.mubr.bf16.mxu0 0
      %2151 = vmatmul.mubr.bf16.gmra.mrb[0].mxu0 %v2028
      %v2152 = vpop.f32.mrb[0].mxu0
      %v2153 = vadd.f32 0.0, %v2152
      %v2154 = vpop.f32.mrb[0].mxu0
      %v2155 = vpop.f32.mrb[0].mxu0
      %v2156 = vadd.f32 0.0, %v2155
      %v2157 = vpop.f32.mrb[0].mxu0
      %2158 = vmatprep.mubr.bf16.mxu0 0
      %2159 = vmatmul.mubr.bf16.gmra.mrb[0].mxu0 %v2031
      %v2160 = vpop.f32.mrb[0].mxu0
      %v2161 = vadd.f32 0.0, %v2160
      %v2162 = vpop.f32.mrb[0].mxu0
      %v2163 = vpop.f32.mrb[0].mxu0
      %v2164 = vadd.f32 0.0, %v2163
      %v2165 = vpop.f32.mrb[0].mxu0
      %2166 = vmatprep.mubr.bf16.mxu0 0
      %2167 = vmatmul.mubr.bf16.gmra.mrb[0].mxu0 %v2034
      %v2168 = vpop.f32.mrb[0].mxu0
      %v2169 = vadd.f32 0.0, %v2168
      %v2170 = vpop.f32.mrb[0].mxu0
      %v2171 = vpop.f32.mrb[0].mxu0
      %v2172 = vadd.f32 0.0, %v2171
      %v2173 = vpop.f32.mrb[0].mxu0
      %2174 = vmatprep.mubr.bf16.mxu0 0
      %2175 = vmatmul.mubr.bf16.gmra.mrb[0].mxu0 %v2037
      %v2176 = vpop.f32.mrb[0].mxu0
      %v2177 = vadd.f32 0.0, %v2176
      %v2178 = vpop.f32.mrb[0].mxu0
      %v2179 = vpop.f32.mrb[0].mxu0
      %v2180 = vadd.f32 0.0, %v2179
      %v2181 = vpop.f32.mrb[0].mxu0
      %2182 = vmatprep.mubr.bf16.mxu0 0
      %2183 = vmatmul.mubr.bf16.gmra.mrb[0].mxu0 %v2040
      %v2184 = vpop.f32.mrb[0].mxu0
      %v2185 = vadd.f32 0.0, %v2184
      %v2186 = vpop.f32.mrb[0].mxu0
      %v2187 = vpop.f32.mrb[0].mxu0
      %v2188 = vadd.f32 0.0, %v2187
      %v2189 = vpop.f32.mrb[0].mxu0
      %2190 = vmatprep.mubr.bf16.mxu0 0
      %2191 = vmatmul.mubr.bf16.gmra.mrb[0].mxu0 %v2043
      %v2192 = vpop.f32.mrb[0].mxu0
      %v2193 = vadd.f32 0.0, %v2192
      %v2194 = vpop.f32.mrb[0].mxu0
      %v2195 = vpop.f32.mrb[0].mxu0
      %v2196 = vadd.f32 0.0, %v2195
      %v2197 = vpop.f32.mrb[0].mxu0
      %2198 = vmatprep.mubr.bf16.mxu0 0
      %2199 = vmatmul.mubr.bf16.gmra.mrb[0].mxu0 %v2046
      %v2200 = vpop.f32.mrb[0].mxu0
      %v2201 = vadd.f32 0.0, %v2200
      %v2202 = vpop.f32.mrb[0].mxu0
      %v2203 = vpop.f32.mrb[0].mxu0
      %v2204 = vadd.f32 0.0, %v2203
      %v2205 = vpop.f32.mrb[0].mxu0
      %2206 = vmatprep.mubr.bf16.mxu0 0
      %2207 = vmatmul.mubr.bf16.gmra.mrb[0].mxu0 %v2049
      %v2208 = vpop.f32.mrb[0].mxu0
      %v2209 = vadd.f32 0.0, %v2208
      %v2210 = vpop.f32.mrb[0].mxu0
      %v2211 = vpop.f32.mrb[0].mxu0
      %v2212 = vadd.f32 0.0, %v2211
      %v2213 = vpop.f32.mrb[0].mxu0
      %2214 = vdwg.mxu0
      %v2215 = vadd.f32 %v1921, %v2089
      %v2216 = vadd.f32 %v1922, %v2092
      %v2217 = vadd.f32 %v1923, %v2097
      %v2218 = vadd.f32 %v1924, %v2100
      %v2219 = vadd.f32 %v1925, %v2105
      %v2220 = vadd.f32 %v1926, %v2108
      %v2221 = vadd.f32 %v1927, %v2113
      %v2222 = vadd.f32 %v1928, %v2116
      %v2223 = vadd.f32 %v1929, %v2121
      %v2224 = vadd.f32 %v1930, %v2124
      %v2225 = vadd.f32 %v1931, %v2129
      %v2226 = vadd.f32 %v1932, %v2132
      %v2227 = vadd.f32 %v1933, %v2137
      %v2228 = vadd.f32 %v1934, %v2140
      %v2229 = vadd.f32 %v1935, %v2145
      %v2230 = vadd.f32 %v1936, %v2148
      %v2231 = vadd.f32 %v1937, %v2153
      %v2232 = vadd.f32 %v1938, %v2156
      %v2233 = vadd.f32 %v1939, %v2161
      %v2234 = vadd.f32 %v1940, %v2164
      %v2235 = vadd.f32 %v1941, %v2169
      %v2236 = vadd.f32 %v1942, %v2172
      %v2237 = vadd.f32 %v1943, %v2177
      %v2238 = vadd.f32 %v1944, %v2180
      %v2239 = vadd.f32 %v1945, %v2185
      %v2240 = vadd.f32 %v1946, %v2188
      %v2241 = vadd.f32 %v1947, %v2193
      %v2242 = vadd.f32 %v1948, %v2196
      %v2243 = vadd.f32 %v1949, %v2201
      %v2244 = vadd.f32 %v1950, %v2204
      %v2245 = vadd.f32 %v1951, %v2209
      %v2246 = vadd.f32 %v1952, %v2212
      %v2247 = vld [vmem:[%s808 + $0x2] sm:$0xff]
      %v2248 = vld [vmem:[%s808 + $0xa] sm:$0xff]
      %v2249 = vld [vmem:[%s808 + $0x1a] sm:$0xff]
      %v2250 = vld [vmem:[%s808 + $0x22] sm:$0xff]
      %v2251 = vld [vmem:[%s808 + $0x32] sm:$0xff]
      %v2252 = vld [vmem:[%s808 + $0x3a] sm:$0xff]
      %v2253 = vld [vmem:[%s808 + $0x4a] sm:$0xff]
      %v2254 = vld [vmem:[%s808 + $0x52] sm:$0xff]
      %v2255 = vld [vmem:[%s808 + $0x62] sm:$0xff]
      %v2256 = vld [vmem:[%s808 + $0x6a] sm:$0xff]
      %v2257 = vld [vmem:[%s808 + $0x7a] sm:$0xff]
      %v2258 = vld [vmem:[%s808 + $0x82] sm:$0xff]
      %v2259 = vld [vmem:[%s808 + $0x92] sm:$0xff]
      %v2260 = vld [vmem:[%s808 + $0x9a] sm:$0xff]
      %v2261 = vld [vmem:[%s808 + $0xaa] sm:$0xff]
      %v2262 = vld [vmem:[%s808 + $0xb2] sm:$0xff]
      %v2263 = vld [vmem:[%s808 + $0xc2] sm:$0xff]
      %v2264 = vld [vmem:[%s808 + $0xca] sm:$0xff]
      %v2265 = vld [vmem:[%s808 + $0xda] sm:$0xff]
      %v2266 = vld [vmem:[%s808 + $0xe2] sm:$0xff]
      %v2267 = vld [vmem:[%s808 + $0xf2] sm:$0xff]
      %v2268 = vld [vmem:[%s808 + $0xfa] sm:$0xff]
      %v2269 = vld [vmem:[%s808 + $0x10a] sm:$0xff]
      %v2270 = vld [vmem:[%s808 + $0x112] sm:$0xff]
      %v2271 = vld [vmem:[%s808 + $0x122] sm:$0xff]
      %v2272 = vld [vmem:[%s808 + $0x12a] sm:$0xff]
      %v2273 = vld [vmem:[%s808 + $0x13a] sm:$0xff]
      %v2274 = vld [vmem:[%s808 + $0x142] sm:$0xff]
      %v2275 = vld [vmem:[%s808 + $0x152] sm:$0xff]
      %v2276 = vld [vmem:[%s808 + $0x15a] sm:$0xff]
      %v2277 = vld [vmem:[%s808 + $0x16a] sm:$0xff]
      %v2278 = vld [vmem:[%s808 + $0x172] sm:$0xff]
      %v2279 = vpack.c.bf16 %v2248, %v2247
      %v2280 = vpack.c.bf16 %v2250, %v2249
      %v2281 = vpack.c.bf16 %v2252, %v2251
      %v2282 = vpack.c.bf16 %v2254, %v2253
      %v2283 = vpack.c.bf16 %v2256, %v2255
      %v2284 = vpack.c.bf16 %v2258, %v2257
      %v2285 = vpack.c.bf16 %v2260, %v2259
      %v2286 = vpack.c.bf16 %v2262, %v2261
      %v2287 = vpack.c.bf16 %v2264, %v2263
      %v2288 = vpack.c.bf16 %v2266, %v2265
      %v2289 = vpack.c.bf16 %v2268, %v2267
      %v2290 = vpack.c.bf16 %v2270, %v2269
      %v2291 = vpack.c.bf16 %v2272, %v2271
      %v2292 = vpack.c.bf16 %v2274, %v2273
      %v2293 = vpack.c.bf16 %v2276, %v2275
      %v2294 = vpack.c.bf16 %v2278, %v2277
      %s2295 = scalar_lea.vmem %s5, 10
      %v2296 = vld [vmem:[%s2295] sm:$0x3]
      %v2298 = vsel %vm339, %v2279, 0
      %v2301 = vsel %vm339, %v2280, 0
      %v2304 = vsel %vm339, %v2281, 0
      %v2307 = vsel %vm339, %v2282, 0
      %v2310 = vsel %vm339, %v2283, 0
      %v2313 = vsel %vm339, %v2284, 0
      %v2316 = vsel %vm339, %v2285, 0
      %v2319 = vsel %vm339, %v2286, 0
      %v2322 = vsel %vm339, %v2287, 0
      %v2325 = vsel %vm339, %v2288, 0
      %v2328 = vsel %vm339, %v2289, 0
      %v2331 = vsel %vm339, %v2290, 0
      %v2334 = vsel %vm339, %v2291, 0
      %v2337 = vsel %vm339, %v2292, 0
      %v2340 = vsel %vm339, %v2293, 0
      %v2343 = vsel %vm339, %v2294, 0
      %v2346 = vsel %vm988, %v2296, 0
      %2348 = vmatprep.subr.bf16.mxu0 0
      %2349 = vmatpush1.bf16.msra.mxu0 %v2346
      %2350 = vmatprep.subr.bf16.mxu0 0
      %2351 = vmatpush1.bf16.msra.mxu0 0
      %2352 = vmatprep.subr.bf16.mxu0 0
      %2353 = vmatpush1.bf16.msra.mxu0 0
      %2354 = vmatprep.subr.bf16.mxu0 0
      %2355 = vmatpush1.bf16.msra.mxu0 0
      %2356 = vmatprep.subr.bf16.mxu0 0
      %2357 = vmatpush1.bf16.msra.mxu0 0
      %2358 = vmatprep.subr.bf16.mxu0 0
      %2359 = vmatpush1.bf16.msra.mxu0 0
      %2360 = vmatprep.subr.bf16.mxu0 0
      %2361 = vmatpush1.bf16.msra.mxu0 0
      %2362 = vmatprep.subr.bf16.mxu0 0
      %2363 = vmatpush1.bf16.msra.mxu0 0
      %2364 = vmatprep.subr.bf16.mxu0 0
      %2365 = vmatpush1.bf16.msra.mxu0 0
      %2366 = vmatprep.subr.bf16.mxu0 0
      %2367 = vmatpush1.bf16.msra.mxu0 0
      %2368 = vmatprep.subr.bf16.mxu0 0
      %2369 = vmatpush1.bf16.msra.mxu0 0
      %2370 = vmatprep.subr.bf16.mxu0 0
      %2371 = vmatpush1.bf16.msra.mxu0 0
      %2372 = vmatprep.subr.bf16.mxu0 0
      %2373 = vmatpush1.bf16.msra.mxu0 0
      %2374 = vmatprep.subr.bf16.mxu0 0
      %2375 = vmatpush1.bf16.msra.mxu0 0
      %2376 = vmatprep.subr.bf16.mxu0 0
      %2377 = vmatpush1.bf16.msra.mxu0 0
      %2378 = vmatprep.subr.bf16.mxu0 0
      %2379 = vmatpush1.bf16.msra.mxu0 0
      %2380 = vmatprep.mubr.bf16.mxu0 0
      %2381 = vmatmul.mubr.bf16.gmra.mrb[0].mxu0 %v2298
      %v2382 = vpop.f32.mrb[0].mxu0
      %v2383 = vadd.f32 0.0, %v2382
      %v2384 = vpop.f32.mrb[0].mxu0
      %v2385 = vpop.f32.mrb[0].mxu0
      %v2386 = vadd.f32 0.0, %v2385
      %v2387 = vpop.f32.mrb[0].mxu0
      %2388 = vmatprep.mubr.bf16.mxu0 0
      %2389 = vmatmul.mubr.bf16.gmra.mrb[0].mxu0 %v2301
      %v2390 = vpop.f32.mrb[0].mxu0
      %v2391 = vadd.f32 0.0, %v2390
      %v2392 = vpop.f32.mrb[0].mxu0
      %v2393 = vpop.f32.mrb[0].mxu0
      %v2394 = vadd.f32 0.0, %v2393
      %v2395 = vpop.f32.mrb[0].mxu0
      %2396 = vmatprep.mubr.bf16.mxu0 0
      %2397 = vmatmul.mubr.bf16.gmra.mrb[0].mxu0 %v2304
      %v2398 = vpop.f32.mrb[0].mxu0
      %v2399 = vadd.f32 0.0, %v2398
      %v2400 = vpop.f32.mrb[0].mxu0
      %v2401 = vpop.f32.mrb[0].mxu0
      %v2402 = vadd.f32 0.0, %v2401
      %v2403 = vpop.f32.mrb[0].mxu0
      %2404 = vmatprep.mubr.bf16.mxu0 0
      %2405 = vmatmul.mubr.bf16.gmra.mrb[0].mxu0 %v2307
      %v2406 = vpop.f32.mrb[0].mxu0
      %v2407 = vadd.f32 0.0, %v2406
      %v2408 = vpop.f32.mrb[0].mxu0
      %v2409 = vpop.f32.mrb[0].mxu0
      %v2410 = vadd.f32 0.0, %v2409
      %v2411 = vpop.f32.mrb[0].mxu0
      %2412 = vmatprep.mubr.bf16.mxu0 0
      %2413 = vmatmul.mubr.bf16.gmra.mrb[0].mxu0 %v2310
      %v2414 = vpop.f32.mrb[0].mxu0
      %v2415 = vadd.f32 0.0, %v2414
      %v2416 = vpop.f32.mrb[0].mxu0
      %v2417 = vpop.f32.mrb[0].mxu0
      %v2418 = vadd.f32 0.0, %v2417
      %v2419 = vpop.f32.mrb[0].mxu0
      %2420 = vmatprep.mubr.bf16.mxu0 0
      %2421 = vmatmul.mubr.bf16.gmra.mrb[0].mxu0 %v2313
      %v2422 = vpop.f32.mrb[0].mxu0
      %v2423 = vadd.f32 0.0, %v2422
      %v2424 = vpop.f32.mrb[0].mxu0
      %v2425 = vpop.f32.mrb[0].mxu0
      %v2426 = vadd.f32 0.0, %v2425
      %v2427 = vpop.f32.mrb[0].mxu0
      %2428 = vmatprep.mubr.bf16.mxu0 0
      %2429 = vmatmul.mubr.bf16.gmra.mrb[0].mxu0 %v2316
      %v2430 = vpop.f32.mrb[0].mxu0
      %v2431 = vadd.f32 0.0, %v2430
      %v2432 = vpop.f32.mrb[0].mxu0
      %v2433 = vpop.f32.mrb[0].mxu0
      %v2434 = vadd.f32 0.0, %v2433
      %v2435 = vpop.f32.mrb[0].mxu0
      %2436 = vmatprep.mubr.bf16.mxu0 0
      %2437 = vmatmul.mubr.bf16.gmra.mrb[0].mxu0 %v2319
      %v2438 = vpop.f32.mrb[0].mxu0
      %v2439 = vadd.f32 0.0, %v2438
      %v2440 = vpop.f32.mrb[0].mxu0
      %v2441 = vpop.f32.mrb[0].mxu0
      %v2442 = vadd.f32 0.0, %v2441
      %v2443 = vpop.f32.mrb[0].mxu0
      %2444 = vmatprep.mubr.bf16.mxu0 0
      %2445 = vmatmul.mubr.bf16.gmra.mrb[0].mxu0 %v2322
      %v2446 = vpop.f32.mrb[0].mxu0
      %v2447 = vadd.f32 0.0, %v2446
      %v2448 = vpop.f32.mrb[0].mxu0
      %v2449 = vpop.f32.mrb[0].mxu0
      %v2450 = vadd.f32 0.0, %v2449
      %v2451 = vpop.f32.mrb[0].mxu0
      %2452 = vmatprep.mubr.bf16.mxu0 0
      %2453 = vmatmul.mubr.bf16.gmra.mrb[0].mxu0 %v2325
      %v2454 = vpop.f32.mrb[0].mxu0
      %v2455 = vadd.f32 0.0, %v2454
      %v2456 = vpop.f32.mrb[0].mxu0
      %v2457 = vpop.f32.mrb[0].mxu0
      %v2458 = vadd.f32 0.0, %v2457
      %v2459 = vpop.f32.mrb[0].mxu0
      %2460 = vmatprep.mubr.bf16.mxu0 0
      %2461 = vmatmul.mubr.bf16.gmra.mrb[0].mxu0 %v2328
      %v2462 = vpop.f32.mrb[0].mxu0
      %v2463 = vadd.f32 0.0, %v2462
      %v2464 = vpop.f32.mrb[0].mxu0
      %v2465 = vpop.f32.mrb[0].mxu0
      %v2466 = vadd.f32 0.0, %v2465
      %v2467 = vpop.f32.mrb[0].mxu0
      %2468 = vmatprep.mubr.bf16.mxu0 0
      %2469 = vmatmul.mubr.bf16.gmra.mrb[0].mxu0 %v2331
      %v2470 = vpop.f32.mrb[0].mxu0
      %v2471 = vadd.f32 0.0, %v2470
      %v2472 = vpop.f32.mrb[0].mxu0
      %v2473 = vpop.f32.mrb[0].mxu0
      %v2474 = vadd.f32 0.0, %v2473
      %v2475 = vpop.f32.mrb[0].mxu0
      %2476 = vmatprep.mubr.bf16.mxu0 0
      %2477 = vmatmul.mubr.bf16.gmra.mrb[0].mxu0 %v2334
      %v2478 = vpop.f32.mrb[0].mxu0
      %v2479 = vadd.f32 0.0, %v2478
      %v2480 = vpop.f32.mrb[0].mxu0
      %v2481 = vpop.f32.mrb[0].mxu0
      %v2482 = vadd.f32 0.0, %v2481
      %v2483 = vpop.f32.mrb[0].mxu0
      %2484 = vmatprep.mubr.bf16.mxu0 0
      %2485 = vmatmul.mubr.bf16.gmra.mrb[0].mxu0 %v2337
      %v2486 = vpop.f32.mrb[0].mxu0
      %v2487 = vadd.f32 0.0, %v2486
      %v2488 = vpop.f32.mrb[0].mxu0
      %v2489 = vpop.f32.mrb[0].mxu0
      %v2490 = vadd.f32 0.0, %v2489
      %v2491 = vpop.f32.mrb[0].mxu0
      %2492 = vmatprep.mubr.bf16.mxu0 0
      %2493 = vmatmul.mubr.bf16.gmra.mrb[0].mxu0 %v2340
      %v2494 = vpop.f32.mrb[0].mxu0
      %v2495 = vadd.f32 0.0, %v2494
      %v2496 = vpop.f32.mrb[0].mxu0
      %v2497 = vpop.f32.mrb[0].mxu0
      %v2498 = vadd.f32 0.0, %v2497
      %v2499 = vpop.f32.mrb[0].mxu0
      %2500 = vmatprep.mubr.bf16.mxu0 0
      %2501 = vmatmul.mubr.bf16.gmra.mrb[0].mxu0 %v2343
      %v2502 = vpop.f32.mrb[0].mxu0
      %v2503 = vadd.f32 0.0, %v2502
      %v2504 = vpop.f32.mrb[0].mxu0
      %v2505 = vpop.f32.mrb[0].mxu0
      %v2506 = vadd.f32 0.0, %v2505
      %v2507 = vpop.f32.mrb[0].mxu0
      %2508 = vdwg.mxu0
      %v2509 = vadd.f32 %v2215, %v2383
      %v2510 = vadd.f32 %v2216, %v2386
      %v2511 = vadd.f32 %v2217, %v2391
      %v2512 = vadd.f32 %v2218, %v2394
      %v2513 = vadd.f32 %v2219, %v2399
      %v2514 = vadd.f32 %v2220, %v2402
      %v2515 = vadd.f32 %v2221, %v2407
      %v2516 = vadd.f32 %v2222, %v2410
      %v2517 = vadd.f32 %v2223, %v2415
      %v2518 = vadd.f32 %v2224, %v2418
      %v2519 = vadd.f32 %v2225, %v2423
      %v2520 = vadd.f32 %v2226, %v2426
      %v2521 = vadd.f32 %v2227, %v2431
      %v2522 = vadd.f32 %v2228, %v2434
      %v2523 = vadd.f32 %v2229, %v2439
      %v2524 = vadd.f32 %v2230, %v2442
      %v2525 = vadd.f32 %v2231, %v2447
      %v2526 = vadd.f32 %v2232, %v2450
      %v2527 = vadd.f32 %v2233, %v2455
      %v2528 = vadd.f32 %v2234, %v2458
      %v2529 = vadd.f32 %v2235, %v2463
      %v2530 = vadd.f32 %v2236, %v2466
      %v2531 = vadd.f32 %v2237, %v2471
      %v2532 = vadd.f32 %v2238, %v2474
      %v2533 = vadd.f32 %v2239, %v2479
      %v2534 = vadd.f32 %v2240, %v2482
      %v2535 = vadd.f32 %v2241, %v2487
      %v2536 = vadd.f32 %v2242, %v2490
      %v2537 = vadd.f32 %v2243, %v2495
      %v2538 = vadd.f32 %v2244, %v2498
      %v2539 = vadd.f32 %v2245, %v2503
      %v2540 = vadd.f32 %v2246, %v2506
      %s2541 = scalar_lea.vmem [#allocation2], 48
      %v2542 = vld [vmem:[%s2541] sm:$0xff]
      %v2543 = vld [vmem:[%s2541 + $0x8] sm:$0xff]
      %v2544 = vld [vmem:[%s2541 + $0x18] sm:$0xff]
      %v2545 = vld [vmem:[%s2541 + $0x20] sm:$0xff]
      %v2546 = vld [vmem:[%s2541 + $0x30] sm:$0xff]
      %v2547 = vld [vmem:[%s2541 + $0x38] sm:$0xff]
      %v2548 = vld [vmem:[%s2541 + $0x48] sm:$0xff]
      %v2549 = vld [vmem:[%s2541 + $0x50] sm:$0xff]
      %v2550 = vld [vmem:[%s2541 + $0x60] sm:$0xff]
      %v2551 = vld [vmem:[%s2541 + $0x68] sm:$0xff]
      %v2552 = vld [vmem:[%s2541 + $0x78] sm:$0xff]
      %v2553 = vld [vmem:[%s2541 + $0x80] sm:$0xff]
      %v2554 = vld [vmem:[%s2541 + $0x90] sm:$0xff]
      %v2555 = vld [vmem:[%s2541 + $0x98] sm:$0xff]
      %v2556 = vld [vmem:[%s2541 + $0xa8] sm:$0xff]
      %v2557 = vld [vmem:[%s2541 + $0xb0] sm:$0xff]
      %v2558 = vld [vmem:[%s2541 + $0xc0] sm:$0xff]
      %v2559 = vld [vmem:[%s2541 + $0xc8] sm:$0xff]
      %v2560 = vld [vmem:[%s2541 + $0xd8] sm:$0xff]
      %v2561 = vld [vmem:[%s2541 + $0xe0] sm:$0xff]
      %v2562 = vld [vmem:[%s2541 + $0xf0] sm:$0xff]
      %v2563 = vld [vmem:[%s2541 + $0xf8] sm:$0xff]
      %v2564 = vld [vmem:[%s2541 + $0x108] sm:$0xff]
      %v2565 = vld [vmem:[%s2541 + $0x110] sm:$0xff]
      %v2566 = vld [vmem:[%s2541 + $0x120] sm:$0xff]
      %v2567 = vld [vmem:[%s2541 + $0x128] sm:$0xff]
      %v2568 = vld [vmem:[%s2541 + $0x138] sm:$0xff]
      %v2569 = vld [vmem:[%s2541 + $0x140] sm:$0xff]
      %v2570 = vld [vmem:[%s2541 + $0x150] sm:$0xff]
      %v2571 = vld [vmem:[%s2541 + $0x158] sm:$0xff]
      %v2572 = vld [vmem:[%s2541 + $0x168] sm:$0xff]
      %v2573 = vld [vmem:[%s2541 + $0x170] sm:$0xff]
      %v2574 = vpack.c.bf16 %v2543, %v2542
      %v2575 = vpack.c.bf16 %v2545, %v2544
      %v2576 = vpack.c.bf16 %v2547, %v2546
      %v2577 = vpack.c.bf16 %v2549, %v2548
      %v2578 = vpack.c.bf16 %v2551, %v2550
      %v2579 = vpack.c.bf16 %v2553, %v2552
      %v2580 = vpack.c.bf16 %v2555, %v2554
      %v2581 = vpack.c.bf16 %v2557, %v2556
      %v2582 = vpack.c.bf16 %v2559, %v2558
      %v2583 = vpack.c.bf16 %v2561, %v2560
      %v2584 = vpack.c.bf16 %v2563, %v2562
      %v2585 = vpack.c.bf16 %v2565, %v2564
      %v2586 = vpack.c.bf16 %v2567, %v2566
      %v2587 = vpack.c.bf16 %v2569, %v2568
      %v2588 = vpack.c.bf16 %v2571, %v2570
      %v2589 = vpack.c.bf16 %v2573, %v2572
      %s2590 = scalar_lea.vmem %s5, 12
      %v2591 = vld [vmem:[%s2590] sm:$0x3]
      %v2593 = vsel %vm339, %v2574, 0
      %v2596 = vsel %vm339, %v2575, 0
      %v2599 = vsel %vm339, %v2576, 0
      %v2602 = vsel %vm339, %v2577, 0
      %v2605 = vsel %vm339, %v2578, 0
      %v2608 = vsel %vm339, %v2579, 0
      %v2611 = vsel %vm339, %v2580, 0
      %v2614 = vsel %vm339, %v2581, 0
      %v2617 = vsel %vm339, %v2582, 0
      %v2620 = vsel %vm339, %v2583, 0
      %v2623 = vsel %vm339, %v2584, 0
      %v2626 = vsel %vm339, %v2585, 0
      %v2629 = vsel %vm339, %v2586, 0
      %v2632 = vsel %vm339, %v2587, 0
      %v2635 = vsel %vm339, %v2588, 0
      %v2638 = vsel %vm339, %v2589, 0
      %v2641 = vsel %vm988, %v2591, 0
      %2643 = vmatprep.subr.bf16.mxu0 0
      %2644 = vmatpush1.bf16.msra.mxu0 %v2641
      %2645 = vmatprep.subr.bf16.mxu0 0
      %2646 = vmatpush1.bf16.msra.mxu0 0
      %2647 = vmatprep.subr.bf16.mxu0 0
      %2648 = vmatpush1.bf16.msra.mxu0 0
      %2649 = vmatprep.subr.bf16.mxu0 0
      %2650 = vmatpush1.bf16.msra.mxu0 0
      %2651 = vmatprep.subr.bf16.mxu0 0
      %2652 = vmatpush1.bf16.msra.mxu0 0
      %2653 = vmatprep.subr.bf16.mxu0 0
      %2654 = vmatpush1.bf16.msra.mxu0 0
      %2655 = vmatprep.subr.bf16.mxu0 0
      %2656 = vmatpush1.bf16.msra.mxu0 0
      %2657 = vmatprep.subr.bf16.mxu0 0
      %2658 = vmatpush1.bf16.msra.mxu0 0
      %2659 = vmatprep.subr.bf16.mxu0 0
      %2660 = vmatpush1.bf16.msra.mxu0 0
      %2661 = vmatprep.subr.bf16.mxu0 0
      %2662 = vmatpush1.bf16.msra.mxu0 0
      %2663 = vmatprep.subr.bf16.mxu0 0
      %2664 = vmatpush1.bf16.msra.mxu0 0
      %2665 = vmatprep.subr.bf16.mxu0 0
      %2666 = vmatpush1.bf16.msra.mxu0 0
      %2667 = vmatprep.subr.bf16.mxu0 0
      %2668 = vmatpush1.bf16.msra.mxu0 0
      %2669 = vmatprep.subr.bf16.mxu0 0
      %2670 = vmatpush1.bf16.msra.mxu0 0
      %2671 = vmatprep.subr.bf16.mxu0 0
      %2672 = vmatpush1.bf16.msra.mxu0 0
      %2673 = vmatprep.subr.bf16.mxu0 0
      %2674 = vmatpush1.bf16.msra.mxu0 0
      %2675 = vmatprep.mubr.bf16.mxu0 0
      %2676 = vmatmul.mubr.bf16.gmra.mrb[0].mxu0 %v2593
      %v2677 = vpop.f32.mrb[0].mxu0
      %v2678 = vadd.f32 0.0, %v2677
      %v2679 = vpop.f32.mrb[0].mxu0
      %v2680 = vpop.f32.mrb[0].mxu0
      %v2681 = vadd.f32 0.0, %v2680
      %v2682 = vpop.f32.mrb[0].mxu0
      %2683 = vmatprep.mubr.bf16.mxu0 0
      %2684 = vmatmul.mubr.bf16.gmra.mrb[0].mxu0 %v2596
      %v2685 = vpop.f32.mrb[0].mxu0
      %v2686 = vadd.f32 0.0, %v2685
      %v2687 = vpop.f32.mrb[0].mxu0
      %v2688 = vpop.f32.mrb[0].mxu0
      %v2689 = vadd.f32 0.0, %v2688
      %v2690 = vpop.f32.mrb[0].mxu0
      %2691 = vmatprep.mubr.bf16.mxu0 0
      %2692 = vmatmul.mubr.bf16.gmra.mrb[0].mxu0 %v2599
      %v2693 = vpop.f32.mrb[0].mxu0
      %v2694 = vadd.f32 0.0, %v2693
      %v2695 = vpop.f32.mrb[0].mxu0
      %v2696 = vpop.f32.mrb[0].mxu0
      %v2697 = vadd.f32 0.0, %v2696
      %v2698 = vpop.f32.mrb[0].mxu0
      %2699 = vmatprep.mubr.bf16.mxu0 0
      %2700 = vmatmul.mubr.bf16.gmra.mrb[0].mxu0 %v2602
      %v2701 = vpop.f32.mrb[0].mxu0
      %v2702 = vadd.f32 0.0, %v2701
      %v2703 = vpop.f32.mrb[0].mxu0
      %v2704 = vpop.f32.mrb[0].mxu0
      %v2705 = vadd.f32 0.0, %v2704
      %v2706 = vpop.f32.mrb[0].mxu0
      %2707 = vmatprep.mubr.bf16.mxu0 0
      %2708 = vmatmul.mubr.bf16.gmra.mrb[0].mxu0 %v2605
      %v2709 = vpop.f32.mrb[0].mxu0
      %v2710 = vadd.f32 0.0, %v2709
      %v2711 = vpop.f32.mrb[0].mxu0
      %v2712 = vpop.f32.mrb[0].mxu0
      %v2713 = vadd.f32 0.0, %v2712
      %v2714 = vpop.f32.mrb[0].mxu0
      %2715 = vmatprep.mubr.bf16.mxu0 0
      %2716 = vmatmul.mubr.bf16.gmra.mrb[0].mxu0 %v2608
      %v2717 = vpop.f32.mrb[0].mxu0
      %v2718 = vadd.f32 0.0, %v2717
      %v2719 = vpop.f32.mrb[0].mxu0
      %v2720 = vpop.f32.mrb[0].mxu0
      %v2721 = vadd.f32 0.0, %v2720
      %v2722 = vpop.f32.mrb[0].mxu0
      %2723 = vmatprep.mubr.bf16.mxu0 0
      %2724 = vmatmul.mubr.bf16.gmra.mrb[0].mxu0 %v2611
      %v2725 = vpop.f32.mrb[0].mxu0
      %v2726 = vadd.f32 0.0, %v2725
      %v2727 = vpop.f32.mrb[0].mxu0
      %v2728 = vpop.f32.mrb[0].mxu0
      %v2729 = vadd.f32 0.0, %v2728
      %v2730 = vpop.f32.mrb[0].mxu0
      %2731 = vmatprep.mubr.bf16.mxu0 0
      %2732 = vmatmul.mubr.bf16.gmra.mrb[0].mxu0 %v2614
      %v2733 = vpop.f32.mrb[0].mxu0
      %v2734 = vadd.f32 0.0, %v2733
      %v2735 = vpop.f32.mrb[0].mxu0
      %v2736 = vpop.f32.mrb[0].mxu0
      %v2737 = vadd.f32 0.0, %v2736
      %v2738 = vpop.f32.mrb[0].mxu0
      %2739 = vmatprep.mubr.bf16.mxu0 0
      %2740 = vmatmul.mubr.bf16.gmra.mrb[0].mxu0 %v2617
      %v2741 = vpop.f32.mrb[0].mxu0
      %v2742 = vadd.f32 0.0, %v2741
      %v2743 = vpop.f32.mrb[0].mxu0
      %v2744 = vpop.f32.mrb[0].mxu0
      %v2745 = vadd.f32 0.0, %v2744
      %v2746 = vpop.f32.mrb[0].mxu0
      %2747 = vmatprep.mubr.bf16.mxu0 0
      %2748 = vmatmul.mubr.bf16.gmra.mrb[0].mxu0 %v2620
      %v2749 = vpop.f32.mrb[0].mxu0
      %v2750 = vadd.f32 0.0, %v2749
      %v2751 = vpop.f32.mrb[0].mxu0
      %v2752 = vpop.f32.mrb[0].mxu0
      %v2753 = vadd.f32 0.0, %v2752
      %v2754 = vpop.f32.mrb[0].mxu0
      %2755 = vmatprep.mubr.bf16.mxu0 0
      %2756 = vmatmul.mubr.bf16.gmra.mrb[0].mxu0 %v2623
      %v2757 = vpop.f32.mrb[0].mxu0
      %v2758 = vadd.f32 0.0, %v2757
      %v2759 = vpop.f32.mrb[0].mxu0
      %v2760 = vpop.f32.mrb[0].mxu0
      %v2761 = vadd.f32 0.0, %v2760
      %v2762 = vpop.f32.mrb[0].mxu0
      %2763 = vmatprep.mubr.bf16.mxu0 0
      %2764 = vmatmul.mubr.bf16.gmra.mrb[0].mxu0 %v2626
      %v2765 = vpop.f32.mrb[0].mxu0
      %v2766 = vadd.f32 0.0, %v2765
      %v2767 = vpop.f32.mrb[0].mxu0
      %v2768 = vpop.f32.mrb[0].mxu0
      %v2769 = vadd.f32 0.0, %v2768
      %v2770 = vpop.f32.mrb[0].mxu0
      %2771 = vmatprep.mubr.bf16.mxu0 0
      %2772 = vmatmul.mubr.bf16.gmra.mrb[0].mxu0 %v2629
      %v2773 = vpop.f32.mrb[0].mxu0
      %v2774 = vadd.f32 0.0, %v2773
      %v2775 = vpop.f32.mrb[0].mxu0
      %v2776 = vpop.f32.mrb[0].mxu0
      %v2777 = vadd.f32 0.0, %v2776
      %v2778 = vpop.f32.mrb[0].mxu0
      %2779 = vmatprep.mubr.bf16.mxu0 0
      %2780 = vmatmul.mubr.bf16.gmra.mrb[0].mxu0 %v2632
      %v2781 = vpop.f32.mrb[0].mxu0
      %v2782 = vadd.f32 0.0, %v2781
      %v2783 = vpop.f32.mrb[0].mxu0
      %v2784 = vpop.f32.mrb[0].mxu0
      %v2785 = vadd.f32 0.0, %v2784
      %v2786 = vpop.f32.mrb[0].mxu0
      %2787 = vmatprep.mubr.bf16.mxu0 0
      %2788 = vmatmul.mubr.bf16.gmra.mrb[0].mxu0 %v2635
      %v2789 = vpop.f32.mrb[0].mxu0
      %v2790 = vadd.f32 0.0, %v2789
      %v2791 = vpop.f32.mrb[0].mxu0
      %v2792 = vpop.f32.mrb[0].mxu0
      %v2793 = vadd.f32 0.0, %v2792
      %v2794 = vpop.f32.mrb[0].mxu0
      %2795 = vmatprep.mubr.bf16.mxu0 0
      %2796 = vmatmul.mubr.bf16.gmra.mrb[0].mxu0 %v2638
      %v2797 = vpop.f32.mrb[0].mxu0
      %v2798 = vadd.f32 0.0, %v2797
      %v2799 = vpop.f32.mrb[0].mxu0
      %v2800 = vpop.f32.mrb[0].mxu0
      %v2801 = vadd.f32 0.0, %v2800
      %v2802 = vpop.f32.mrb[0].mxu0
      %2803 = vdwg.mxu0
      %v2804 = vadd.f32 %v2509, %v2678
      %v2805 = vadd.f32 %v2510, %v2681
      %v2806 = vadd.f32 %v2511, %v2686
      %v2807 = vadd.f32 %v2512, %v2689
      %v2808 = vadd.f32 %v2513, %v2694
      %v2809 = vadd.f32 %v2514, %v2697
      %v2810 = vadd.f32 %v2515, %v2702
      %v2811 = vadd.f32 %v2516, %v2705
      %v2812 = vadd.f32 %v2517, %v2710
      %v2813 = vadd.f32 %v2518, %v2713
      %v2814 = vadd.f32 %v2519, %v2718
      %v2815 = vadd.f32 %v2520, %v2721
      %v2816 = vadd.f32 %v2521, %v2726
      %v2817 = vadd.f32 %v2522, %v2729
      %v2818 = vadd.f32 %v2523, %v2734
      %v2819 = vadd.f32 %v2524, %v2737
      %v2820 = vadd.f32 %v2525, %v2742
      %v2821 = vadd.f32 %v2526, %v2745
      %v2822 = vadd.f32 %v2527, %v2750
      %v2823 = vadd.f32 %v2528, %v2753
      %v2824 = vadd.f32 %v2529, %v2758
      %v2825 = vadd.f32 %v2530, %v2761
      %v2826 = vadd.f32 %v2531, %v2766
      %v2827 = vadd.f32 %v2532, %v2769
      %v2828 = vadd.f32 %v2533, %v2774
      %v2829 = vadd.f32 %v2534, %v2777
      %v2830 = vadd.f32 %v2535, %v2782
      %v2831 = vadd.f32 %v2536, %v2785
      %v2832 = vadd.f32 %v2537, %v2790
      %v2833 = vadd.f32 %v2538, %v2793
      %v2834 = vadd.f32 %v2539, %v2798
      %v2835 = vadd.f32 %v2540, %v2801
      %v2836 = vld [vmem:[%s2541 + $0x1] sm:$0xff]
      %v2837 = vld [vmem:[%s2541 + $0x9] sm:$0xff]
      %v2838 = vld [vmem:[%s2541 + $0x19] sm:$0xff]
      %v2839 = vld [vmem:[%s2541 + $0x21] sm:$0xff]
      %v2840 = vld [vmem:[%s2541 + $0x31] sm:$0xff]
      %v2841 = vld [vmem:[%s2541 + $0x39] sm:$0xff]
      %v2842 = vld [vmem:[%s2541 + $0x49] sm:$0xff]
      %v2843 = vld [vmem:[%s2541 + $0x51] sm:$0xff]
      %v2844 = vld [vmem:[%s2541 + $0x61] sm:$0xff]
      %v2845 = vld [vmem:[%s2541 + $0x69] sm:$0xff]
      %v2846 = vld [vmem:[%s2541 + $0x79] sm:$0xff]
      %v2847 = vld [vmem:[%s2541 + $0x81] sm:$0xff]
      %v2848 = vld [vmem:[%s2541 + $0x91] sm:$0xff]
      %v2849 = vld [vmem:[%s2541 + $0x99] sm:$0xff]
      %v2850 = vld [vmem:[%s2541 + $0xa9] sm:$0xff]
      %v2851 = vld [vmem:[%s2541 + $0xb1] sm:$0xff]
      %v2852 = vld [vmem:[%s2541 + $0xc1] sm:$0xff]
      %v2853 = vld [vmem:[%s2541 + $0xc9] sm:$0xff]
      %v2854 = vld [vmem:[%s2541 + $0xd9] sm:$0xff]
      %v2855 = vld [vmem:[%s2541 + $0xe1] sm:$0xff]
      %v2856 = vld [vmem:[%s2541 + $0xf1] sm:$0xff]
      %v2857 = vld [vmem:[%s2541 + $0xf9] sm:$0xff]
      %v2858 = vld [vmem:[%s2541 + $0x109] sm:$0xff]
      %v2859 = vld [vmem:[%s2541 + $0x111] sm:$0xff]
      %v2860 = vld [vmem:[%s2541 + $0x121] sm:$0xff]
      %v2861 = vld [vmem:[%s2541 + $0x129] sm:$0xff]
      %v2862 = vld [vmem:[%s2541 + $0x139] sm:$0xff]
      %v2863 = vld [vmem:[%s2541 + $0x141] sm:$0xff]
      %v2864 = vld [vmem:[%s2541 + $0x151] sm:$0xff]
      %v2865 = vld [vmem:[%s2541 + $0x159] sm:$0xff]
      %v2866 = vld [vmem:[%s2541 + $0x169] sm:$0xff]
      %v2867 = vld [vmem:[%s2541 + $0x171] sm:$0xff]
      %v2868 = vpack.c.bf16 %v2837, %v2836
      %v2869 = vpack.c.bf16 %v2839, %v2838
      %v2870 = vpack.c.bf16 %v2841, %v2840
      %v2871 = vpack.c.bf16 %v2843, %v2842
      %v2872 = vpack.c.bf16 %v2845, %v2844
      %v2873 = vpack.c.bf16 %v2847, %v2846
      %v2874 = vpack.c.bf16 %v2849, %v2848
      %v2875 = vpack.c.bf16 %v2851, %v2850
      %v2876 = vpack.c.bf16 %v2853, %v2852
      %v2877 = vpack.c.bf16 %v2855, %v2854
      %v2878 = vpack.c.bf16 %v2857, %v2856
      %v2879 = vpack.c.bf16 %v2859, %v2858
      %v2880 = vpack.c.bf16 %v2861, %v2860
      %v2881 = vpack.c.bf16 %v2863, %v2862
      %v2882 = vpack.c.bf16 %v2865, %v2864
      %v2883 = vpack.c.bf16 %v2867, %v2866
      %s2884 = scalar_lea.vmem %s5, 14
      %v2885 = vld [vmem:[%s2884] sm:$0x3]
      %v2887 = vsel %vm339, %v2868, 0
      %v2890 = vsel %vm339, %v2869, 0
      %v2893 = vsel %vm339, %v2870, 0
      %v2896 = vsel %vm339, %v2871, 0
      %v2899 = vsel %vm339, %v2872, 0
      %v2902 = vsel %vm339, %v2873, 0
      %v2905 = vsel %vm339, %v2874, 0
      %v2908 = vsel %vm339, %v2875, 0
      %v2911 = vsel %vm339, %v2876, 0
      %v2914 = vsel %vm339, %v2877, 0
      %v2917 = vsel %vm339, %v2878, 0
      %v2920 = vsel %vm339, %v2879, 0
      %v2923 = vsel %vm339, %v2880, 0
      %v2926 = vsel %vm339, %v2881, 0
      %v2929 = vsel %vm339, %v2882, 0
      %v2932 = vsel %vm339, %v2883, 0
      %v2935 = vsel %vm988, %v2885, 0
      %2937 = vmatprep.subr.bf16.mxu0 0
      %2938 = vmatpush1.bf16.msra.mxu0 %v2935
      %2939 = vmatprep.subr.bf16.mxu0 0
      %2940 = vmatpush1.bf16.msra.mxu0 0
      %2941 = vmatprep.subr.bf16.mxu0 0
      %2942 = vmatpush1.bf16.msra.mxu0 0
      %2943 = vmatprep.subr.bf16.mxu0 0
      %2944 = vmatpush1.bf16.msra.mxu0 0
      %2945 = vmatprep.subr.bf16.mxu0 0
      %2946 = vmatpush1.bf16.msra.mxu0 0
      %2947 = vmatprep.subr.bf16.mxu0 0
      %2948 = vmatpush1.bf16.msra.mxu0 0
      %2949 = vmatprep.subr.bf16.mxu0 0
      %2950 = vmatpush1.bf16.msra.mxu0 0
      %2951 = vmatprep.subr.bf16.mxu0 0
      %2952 = vmatpush1.bf16.msra.mxu0 0
      %2953 = vmatprep.subr.bf16.mxu0 0
      %2954 = vmatpush1.bf16.msra.mxu0 0
      %2955 = vmatprep.subr.bf16.mxu0 0
      %2956 = vmatpush1.bf16.msra.mxu0 0
      %2957 = vmatprep.subr.bf16.mxu0 0
      %2958 = vmatpush1.bf16.msra.mxu0 0
      %2959 = vmatprep.subr.bf16.mxu0 0
      %2960 = vmatpush1.bf16.msra.mxu0 0
      %2961 = vmatprep.subr.bf16.mxu0 0
      %2962 = vmatpush1.bf16.msra.mxu0 0
      %2963 = vmatprep.subr.bf16.mxu0 0
      %2964 = vmatpush1.bf16.msra.mxu0 0
      %2965 = vmatprep.subr.bf16.mxu0 0
      %2966 = vmatpush1.bf16.msra.mxu0 0
      %2967 = vmatprep.subr.bf16.mxu0 0
      %2968 = vmatpush1.bf16.msra.mxu0 0
      %2969 = vmatprep.mubr.bf16.mxu0 0
      %2970 = vmatmul.mubr.bf16.gmra.mrb[0].mxu0 %v2887
      %v2971 = vpop.f32.mrb[0].mxu0
      %v2972 = vadd.f32 0.0, %v2971
      %v2973 = vpop.f32.mrb[0].mxu0
      %v2974 = vpop.f32.mrb[0].mxu0
      %v2975 = vadd.f32 0.0, %v2974
      %v2976 = vpop.f32.mrb[0].mxu0
      %2977 = vmatprep.mubr.bf16.mxu0 0
      %2978 = vmatmul.mubr.bf16.gmra.mrb[0].mxu0 %v2890
      %v2979 = vpop.f32.mrb[0].mxu0
      %v2980 = vadd.f32 0.0, %v2979
      %v2981 = vpop.f32.mrb[0].mxu0
      %v2982 = vpop.f32.mrb[0].mxu0
      %v2983 = vadd.f32 0.0, %v2982
      %v2984 = vpop.f32.mrb[0].mxu0
      %2985 = vmatprep.mubr.bf16.mxu0 0
      %2986 = vmatmul.mubr.bf16.gmra.mrb[0].mxu0 %v2893
      %v2987 = vpop.f32.mrb[0].mxu0
      %v2988 = vadd.f32 0.0, %v2987
      %v2989 = vpop.f32.mrb[0].mxu0
      %v2990 = vpop.f32.mrb[0].mxu0
      %v2991 = vadd.f32 0.0, %v2990
      %v2992 = vpop.f32.mrb[0].mxu0
      %2993 = vmatprep.mubr.bf16.mxu0 0
      %2994 = vmatmul.mubr.bf16.gmra.mrb[0].mxu0 %v2896
      %v2995 = vpop.f32.mrb[0].mxu0
      %v2996 = vadd.f32 0.0, %v2995
      %v2997 = vpop.f32.mrb[0].mxu0
      %v2998 = vpop.f32.mrb[0].mxu0
      %v2999 = vadd.f32 0.0, %v2998
      %v3000 = vpop.f32.mrb[0].mxu0
      %3001 = vmatprep.mubr.bf16.mxu0 0
      %3002 = vmatmul.mubr.bf16.gmra.mrb[0].mxu0 %v2899
      %v3003 = vpop.f32.mrb[0].mxu0
      %v3004 = vadd.f32 0.0, %v3003
      %v3005 = vpop.f32.mrb[0].mxu0
      %v3006 = vpop.f32.mrb[0].mxu0
      %v3007 = vadd.f32 0.0, %v3006
      %v3008 = vpop.f32.mrb[0].mxu0
      %3009 = vmatprep.mubr.bf16.mxu0 0
      %3010 = vmatmul.mubr.bf16.gmra.mrb[0].mxu0 %v2902
      %v3011 = vpop.f32.mrb[0].mxu0
      %v3012 = vadd.f32 0.0, %v3011
      %v3013 = vpop.f32.mrb[0].mxu0
      %v3014 = vpop.f32.mrb[0].mxu0
      %v3015 = vadd.f32 0.0, %v3014
      %v3016 = vpop.f32.mrb[0].mxu0
      %3017 = vmatprep.mubr.bf16.mxu0 0
      %3018 = vmatmul.mubr.bf16.gmra.mrb[0].mxu0 %v2905
      %v3019 = vpop.f32.mrb[0].mxu0
      %v3020 = vadd.f32 0.0, %v3019
      %v3021 = vpop.f32.mrb[0].mxu0
      %v3022 = vpop.f32.mrb[0].mxu0
      %v3023 = vadd.f32 0.0, %v3022
      %v3024 = vpop.f32.mrb[0].mxu0
      %3025 = vmatprep.mubr.bf16.mxu0 0
      %3026 = vmatmul.mubr.bf16.gmra.mrb[0].mxu0 %v2908
      %v3027 = vpop.f32.mrb[0].mxu0
      %v3028 = vadd.f32 0.0, %v3027
      %v3029 = vpop.f32.mrb[0].mxu0
      %v3030 = vpop.f32.mrb[0].mxu0
      %v3031 = vadd.f32 0.0, %v3030
      %v3032 = vpop.f32.mrb[0].mxu0
      %3033 = vmatprep.mubr.bf16.mxu0 0
      %3034 = vmatmul.mubr.bf16.gmra.mrb[0].mxu0 %v2911
      %v3035 = vpop.f32.mrb[0].mxu0
      %v3036 = vadd.f32 0.0, %v3035
      %v3037 = vpop.f32.mrb[0].mxu0
      %v3038 = vpop.f32.mrb[0].mxu0
      %v3039 = vadd.f32 0.0, %v3038
      %v3040 = vpop.f32.mrb[0].mxu0
      %3041 = vmatprep.mubr.bf16.mxu0 0
      %3042 = vmatmul.mubr.bf16.gmra.mrb[0].mxu0 %v2914
      %v3043 = vpop.f32.mrb[0].mxu0
      %v3044 = vadd.f32 0.0, %v3043
      %v3045 = vpop.f32.mrb[0].mxu0
      %v3046 = vpop.f32.mrb[0].mxu0
      %v3047 = vadd.f32 0.0, %v3046
      %v3048 = vpop.f32.mrb[0].mxu0
      %3049 = vmatprep.mubr.bf16.mxu0 0
      %3050 = vmatmul.mubr.bf16.gmra.mrb[0].mxu0 %v2917
      %v3051 = vpop.f32.mrb[0].mxu0
      %v3052 = vadd.f32 0.0, %v3051
      %v3053 = vpop.f32.mrb[0].mxu0
      %v3054 = vpop.f32.mrb[0].mxu0
      %v3055 = vadd.f32 0.0, %v3054
      %v3056 = vpop.f32.mrb[0].mxu0
      %3057 = vmatprep.mubr.bf16.mxu0 0
      %3058 = vmatmul.mubr.bf16.gmra.mrb[0].mxu0 %v2920
      %v3059 = vpop.f32.mrb[0].mxu0
      %v3060 = vadd.f32 0.0, %v3059
      %v3061 = vpop.f32.mrb[0].mxu0
      %v3062 = vpop.f32.mrb[0].mxu0
      %v3063 = vadd.f32 0.0, %v3062
      %v3064 = vpop.f32.mrb[0].mxu0
      %3065 = vmatprep.mubr.bf16.mxu0 0
      %3066 = vmatmul.mubr.bf16.gmra.mrb[0].mxu0 %v2923
      %v3067 = vpop.f32.mrb[0].mxu0
      %v3068 = vadd.f32 0.0, %v3067
      %v3069 = vpop.f32.mrb[0].mxu0
      %v3070 = vpop.f32.mrb[0].mxu0
      %v3071 = vadd.f32 0.0, %v3070
      %v3072 = vpop.f32.mrb[0].mxu0
      %3073 = vmatprep.mubr.bf16.mxu0 0
      %3074 = vmatmul.mubr.bf16.gmra.mrb[0].mxu0 %v2926
      %v3075 = vpop.f32.mrb[0].mxu0
      %v3076 = vadd.f32 0.0, %v3075
      %v3077 = vpop.f32.mrb[0].mxu0
      %v3078 = vpop.f32.mrb[0].mxu0
      %v3079 = vadd.f32 0.0, %v3078
      %v3080 = vpop.f32.mrb[0].mxu0
      %3081 = vmatprep.mubr.bf16.mxu0 0
      %3082 = vmatmul.mubr.bf16.gmra.mrb[0].mxu0 %v2929
      %v3083 = vpop.f32.mrb[0].mxu0
      %v3084 = vadd.f32 0.0, %v3083
      %v3085 = vpop.f32.mrb[0].mxu0
      %v3086 = vpop.f32.mrb[0].mxu0
      %v3087 = vadd.f32 0.0, %v3086
      %v3088 = vpop.f32.mrb[0].mxu0
      %3089 = vmatprep.mubr.bf16.mxu0 0
      %3090 = vmatmul.mubr.bf16.gmra.mrb[0].mxu0 %v2932
      %v3091 = vpop.f32.mrb[0].mxu0
      %v3092 = vadd.f32 0.0, %v3091
      %v3093 = vpop.f32.mrb[0].mxu0
      %v3094 = vpop.f32.mrb[0].mxu0
      %v3095 = vadd.f32 0.0, %v3094
      %v3096 = vpop.f32.mrb[0].mxu0
      %3097 = vdwg.mxu0
      %v3098 = vadd.f32 %v2804, %v2972
      %v3099 = vadd.f32 %v2805, %v2975
      %v3100 = vadd.f32 %v2806, %v2980
      %v3101 = vadd.f32 %v2807, %v2983
      %v3102 = vadd.f32 %v2808, %v2988
      %v3103 = vadd.f32 %v2809, %v2991
      %v3104 = vadd.f32 %v2810, %v2996
      %v3105 = vadd.f32 %v2811, %v2999
      %v3106 = vadd.f32 %v2812, %v3004
      %v3107 = vadd.f32 %v2813, %v3007
      %v3108 = vadd.f32 %v2814, %v3012
      %v3109 = vadd.f32 %v2815, %v3015
      %v3110 = vadd.f32 %v2816, %v3020
      %v3111 = vadd.f32 %v2817, %v3023
      %v3112 = vadd.f32 %v2818, %v3028
      %v3113 = vadd.f32 %v2819, %v3031
      %v3114 = vadd.f32 %v2820, %v3036
      %v3115 = vadd.f32 %v2821, %v3039
      %v3116 = vadd.f32 %v2822, %v3044
      %v3117 = vadd.f32 %v2823, %v3047
      %v3118 = vadd.f32 %v2824, %v3052
      %v3119 = vadd.f32 %v2825, %v3055
      %v3120 = vadd.f32 %v2826, %v3060
      %v3121 = vadd.f32 %v2827, %v3063
      %v3122 = vadd.f32 %v2828, %v3068
      %v3123 = vadd.f32 %v2829, %v3071
      %v3124 = vadd.f32 %v2830, %v3076
      %v3125 = vadd.f32 %v2831, %v3079
      %v3126 = vadd.f32 %v2832, %v3084
      %v3127 = vadd.f32 %v2833, %v3087
      %v3128 = vadd.f32 %v2834, %v3092
      %v3129 = vadd.f32 %v2835, %v3095
      %v3130 = vld [vmem:[%s2541 + $0x2] sm:$0xff]
      %v3131 = vld [vmem:[%s2541 + $0xa] sm:$0xff]
      %v3132 = vld [vmem:[%s2541 + $0x1a] sm:$0xff]
      %v3133 = vld [vmem:[%s2541 + $0x22] sm:$0xff]
      %v3134 = vld [vmem:[%s2541 + $0x32] sm:$0xff]
      %v3135 = vld [vmem:[%s2541 + $0x3a] sm:$0xff]
      %v3136 = vld [vmem:[%s2541 + $0x4a] sm:$0xff]
      %v3137 = vld [vmem:[%s2541 + $0x52] sm:$0xff]
      %v3138 = vld [vmem:[%s2541 + $0x62] sm:$0xff]
      %v3139 = vld [vmem:[%s2541 + $0x6a] sm:$0xff]
      %v3140 = vld [vmem:[%s2541 + $0x7a] sm:$0xff]
      %v3141 = vld [vmem:[%s2541 + $0x82] sm:$0xff]
      %v3142 = vld [vmem:[%s2541 + $0x92] sm:$0xff]
      %v3143 = vld [vmem:[%s2541 + $0x9a] sm:$0xff]
      %v3144 = vld [vmem:[%s2541 + $0xaa] sm:$0xff]
      %v3145 = vld [vmem:[%s2541 + $0xb2] sm:$0xff]
      %v3146 = vld [vmem:[%s2541 + $0xc2] sm:$0xff]
      %v3147 = vld [vmem:[%s2541 + $0xca] sm:$0xff]
      %v3148 = vld [vmem:[%s2541 + $0xda] sm:$0xff]
      %v3149 = vld [vmem:[%s2541 + $0xe2] sm:$0xff]
      %v3150 = vld [vmem:[%s2541 + $0xf2] sm:$0xff]
      %v3151 = vld [vmem:[%s2541 + $0xfa] sm:$0xff]
      %v3152 = vld [vmem:[%s2541 + $0x10a] sm:$0xff]
      %v3153 = vld [vmem:[%s2541 + $0x112] sm:$0xff]
      %v3154 = vld [vmem:[%s2541 + $0x122] sm:$0xff]
      %v3155 = vld [vmem:[%s2541 + $0x12a] sm:$0xff]
      %v3156 = vld [vmem:[%s2541 + $0x13a] sm:$0xff]
      %v3157 = vld [vmem:[%s2541 + $0x142] sm:$0xff]
      %v3158 = vld [vmem:[%s2541 + $0x152] sm:$0xff]
      %v3159 = vld [vmem:[%s2541 + $0x15a] sm:$0xff]
      %v3160 = vld [vmem:[%s2541 + $0x16a] sm:$0xff]
      %v3161 = vld [vmem:[%s2541 + $0x172] sm:$0xff]
      %v3162 = vpack.c.bf16 %v3131, %v3130
      %v3163 = vpack.c.bf16 %v3133, %v3132
      %v3164 = vpack.c.bf16 %v3135, %v3134
      %v3165 = vpack.c.bf16 %v3137, %v3136
      %v3166 = vpack.c.bf16 %v3139, %v3138
      %v3167 = vpack.c.bf16 %v3141, %v3140
      %v3168 = vpack.c.bf16 %v3143, %v3142
      %v3169 = vpack.c.bf16 %v3145, %v3144
      %v3170 = vpack.c.bf16 %v3147, %v3146
      %v3171 = vpack.c.bf16 %v3149, %v3148
      %v3172 = vpack.c.bf16 %v3151, %v3150
      %v3173 = vpack.c.bf16 %v3153, %v3152
      %v3174 = vpack.c.bf16 %v3155, %v3154
      %v3175 = vpack.c.bf16 %v3157, %v3156
      %v3176 = vpack.c.bf16 %v3159, %v3158
      %v3177 = vpack.c.bf16 %v3161, %v3160
      %s3178 = scalar_lea.vmem %s5, 16
      %v3179 = vld [vmem:[%s3178] sm:$0x3]
      %v3181 = vsel %vm339, %v3162, 0
      %v3184 = vsel %vm339, %v3163, 0
      %v3187 = vsel %vm339, %v3164, 0
      %v3190 = vsel %vm339, %v3165, 0
      %v3193 = vsel %vm339, %v3166, 0
      %v3196 = vsel %vm339, %v3167, 0
      %v3199 = vsel %vm339, %v3168, 0
      %v3202 = vsel %vm339, %v3169, 0
      %v3205 = vsel %vm339, %v3170, 0
      %v3208 = vsel %vm339, %v3171, 0
      %v3211 = vsel %vm339, %v3172, 0
      %v3214 = vsel %vm339, %v3173, 0
      %v3217 = vsel %vm339, %v3174, 0
      %v3220 = vsel %vm339, %v3175, 0
      %v3223 = vsel %vm339, %v3176, 0
      %v3226 = vsel %vm339, %v3177, 0
      %v3229 = vsel %vm988, %v3179, 0
      %3231 = vmatprep.subr.bf16.mxu0 0
      %3232 = vmatpush1.bf16.msra.mxu0 %v3229
      %3233 = vmatprep.subr.bf16.mxu0 0
      %3234 = vmatpush1.bf16.msra.mxu0 0
      %3235 = vmatprep.subr.bf16.mxu0 0
      %3236 = vmatpush1.bf16.msra.mxu0 0
      %3237 = vmatprep.subr.bf16.mxu0 0
      %3238 = vmatpush1.bf16.msra.mxu0 0
      %3239 = vmatprep.subr.bf16.mxu0 0
      %3240 = vmatpush1.bf16.msra.mxu0 0
      %3241 = vmatprep.subr.bf16.mxu0 0
      %3242 = vmatpush1.bf16.msra.mxu0 0
      %3243 = vmatprep.subr.bf16.mxu0 0
      %3244 = vmatpush1.bf16.msra.mxu0 0
      %3245 = vmatprep.subr.bf16.mxu0 0
      %3246 = vmatpush1.bf16.msra.mxu0 0
      %3247 = vmatprep.subr.bf16.mxu0 0
      %3248 = vmatpush1.bf16.msra.mxu0 0
      %3249 = vmatprep.subr.bf16.mxu0 0
      %3250 = vmatpush1.bf16.msra.mxu0 0
      %3251 = vmatprep.subr.bf16.mxu0 0
      %3252 = vmatpush1.bf16.msra.mxu0 0
      %3253 = vmatprep.subr.bf16.mxu0 0
      %3254 = vmatpush1.bf16.msra.mxu0 0
      %3255 = vmatprep.subr.bf16.mxu0 0
      %3256 = vmatpush1.bf16.msra.mxu0 0
      %3257 = vmatprep.subr.bf16.mxu0 0
      %3258 = vmatpush1.bf16.msra.mxu0 0
      %3259 = vmatprep.subr.bf16.mxu0 0
      %3260 = vmatpush1.bf16.msra.mxu0 0
      %3261 = vmatprep.subr.bf16.mxu0 0
      %3262 = vmatpush1.bf16.msra.mxu0 0
      %3263 = vmatprep.mubr.bf16.mxu0 0
      %3264 = vmatmul.mubr.bf16.gmra.mrb[0].mxu0 %v3181
      %v3265 = vpop.f32.mrb[0].mxu0
      %v3266 = vadd.f32 0.0, %v3265
      %v3267 = vpop.f32.mrb[0].mxu0
      %v3268 = vpop.f32.mrb[0].mxu0
      %v3269 = vadd.f32 0.0, %v3268
      %v3270 = vpop.f32.mrb[0].mxu0
      %3271 = vmatprep.mubr.bf16.mxu0 0
      %3272 = vmatmul.mubr.bf16.gmra.mrb[0].mxu0 %v3184
      %v3273 = vpop.f32.mrb[0].mxu0
      %v3274 = vadd.f32 0.0, %v3273
      %v3275 = vpop.f32.mrb[0].mxu0
      %v3276 = vpop.f32.mrb[0].mxu0
      %v3277 = vadd.f32 0.0, %v3276
      %v3278 = vpop.f32.mrb[0].mxu0
      %3279 = vmatprep.mubr.bf16.mxu0 0
      %3280 = vmatmul.mubr.bf16.gmra.mrb[0].mxu0 %v3187
      %v3281 = vpop.f32.mrb[0].mxu0
      %v3282 = vadd.f32 0.0, %v3281
      %v3283 = vpop.f32.mrb[0].mxu0
      %v3284 = vpop.f32.mrb[0].mxu0
      %v3285 = vadd.f32 0.0, %v3284
      %v3286 = vpop.f32.mrb[0].mxu0
      %3287 = vmatprep.mubr.bf16.mxu0 0
      %3288 = vmatmul.mubr.bf16.gmra.mrb[0].mxu0 %v3190
      %v3289 = vpop.f32.mrb[0].mxu0
      %v3290 = vadd.f32 0.0, %v3289
      %v3291 = vpop.f32.mrb[0].mxu0
      %v3292 = vpop.f32.mrb[0].mxu0
      %v3293 = vadd.f32 0.0, %v3292
      %v3294 = vpop.f32.mrb[0].mxu0
      %3295 = vmatprep.mubr.bf16.mxu0 0
      %3296 = vmatmul.mubr.bf16.gmra.mrb[0].mxu0 %v3193
      %v3297 = vpop.f32.mrb[0].mxu0
      %v3298 = vadd.f32 0.0, %v3297
      %v3299 = vpop.f32.mrb[0].mxu0
      %v3300 = vpop.f32.mrb[0].mxu0
      %v3301 = vadd.f32 0.0, %v3300
      %v3302 = vpop.f32.mrb[0].mxu0
      %3303 = vmatprep.mubr.bf16.mxu0 0
      %3304 = vmatmul.mubr.bf16.gmra.mrb[0].mxu0 %v3196
      %v3305 = vpop.f32.mrb[0].mxu0
      %v3306 = vadd.f32 0.0, %v3305
      %v3307 = vpop.f32.mrb[0].mxu0
      %v3308 = vpop.f32.mrb[0].mxu0
      %v3309 = vadd.f32 0.0, %v3308
      %v3310 = vpop.f32.mrb[0].mxu0
      %3311 = vmatprep.mubr.bf16.mxu0 0
      %3312 = vmatmul.mubr.bf16.gmra.mrb[0].mxu0 %v3199
      %v3313 = vpop.f32.mrb[0].mxu0
      %v3314 = vadd.f32 0.0, %v3313
      %v3315 = vpop.f32.mrb[0].mxu0
      %v3316 = vpop.f32.mrb[0].mxu0
      %v3317 = vadd.f32 0.0, %v3316
      %v3318 = vpop.f32.mrb[0].mxu0
      %3319 = vmatprep.mubr.bf16.mxu0 0
      %3320 = vmatmul.mubr.bf16.gmra.mrb[0].mxu0 %v3202
      %v3321 = vpop.f32.mrb[0].mxu0
      %v3322 = vadd.f32 0.0, %v3321
      %v3323 = vpop.f32.mrb[0].mxu0
      %v3324 = vpop.f32.mrb[0].mxu0
      %v3325 = vadd.f32 0.0, %v3324
      %v3326 = vpop.f32.mrb[0].mxu0
      %3327 = vmatprep.mubr.bf16.mxu0 0
      %3328 = vmatmul.mubr.bf16.gmra.mrb[0].mxu0 %v3205
      %v3329 = vpop.f32.mrb[0].mxu0
      %v3330 = vadd.f32 0.0, %v3329
      %v3331 = vpop.f32.mrb[0].mxu0
      %v3332 = vpop.f32.mrb[0].mxu0
      %v3333 = vadd.f32 0.0, %v3332
      %v3334 = vpop.f32.mrb[0].mxu0
      %3335 = vmatprep.mubr.bf16.mxu0 0
      %3336 = vmatmul.mubr.bf16.gmra.mrb[0].mxu0 %v3208
      %v3337 = vpop.f32.mrb[0].mxu0
      %v3338 = vadd.f32 0.0, %v3337
      %v3339 = vpop.f32.mrb[0].mxu0
      %v3340 = vpop.f32.mrb[0].mxu0
      %v3341 = vadd.f32 0.0, %v3340
      %v3342 = vpop.f32.mrb[0].mxu0
      %3343 = vmatprep.mubr.bf16.mxu0 0
      %3344 = vmatmul.mubr.bf16.gmra.mrb[0].mxu0 %v3211
      %v3345 = vpop.f32.mrb[0].mxu0
      %v3346 = vadd.f32 0.0, %v3345
      %v3347 = vpop.f32.mrb[0].mxu0
      %v3348 = vpop.f32.mrb[0].mxu0
      %v3349 = vadd.f32 0.0, %v3348
      %v3350 = vpop.f32.mrb[0].mxu0
      %3351 = vmatprep.mubr.bf16.mxu0 0
      %3352 = vmatmul.mubr.bf16.gmra.mrb[0].mxu0 %v3214
      %v3353 = vpop.f32.mrb[0].mxu0
      %v3354 = vadd.f32 0.0, %v3353
      %v3355 = vpop.f32.mrb[0].mxu0
      %v3356 = vpop.f32.mrb[0].mxu0
      %v3357 = vadd.f32 0.0, %v3356
      %v3358 = vpop.f32.mrb[0].mxu0
      %3359 = vmatprep.mubr.bf16.mxu0 0
      %3360 = vmatmul.mubr.bf16.gmra.mrb[0].mxu0 %v3217
      %v3361 = vpop.f32.mrb[0].mxu0
      %v3362 = vadd.f32 0.0, %v3361
      %v3363 = vpop.f32.mrb[0].mxu0
      %v3364 = vpop.f32.mrb[0].mxu0
      %v3365 = vadd.f32 0.0, %v3364
      %v3366 = vpop.f32.mrb[0].mxu0
      %3367 = vmatprep.mubr.bf16.mxu0 0
      %3368 = vmatmul.mubr.bf16.gmra.mrb[0].mxu0 %v3220
      %v3369 = vpop.f32.mrb[0].mxu0
      %v3370 = vadd.f32 0.0, %v3369
      %v3371 = vpop.f32.mrb[0].mxu0
      %v3372 = vpop.f32.mrb[0].mxu0
      %v3373 = vadd.f32 0.0, %v3372
      %v3374 = vpop.f32.mrb[0].mxu0
      %3375 = vmatprep.mubr.bf16.mxu0 0
      %3376 = vmatmul.mubr.bf16.gmra.mrb[0].mxu0 %v3223
      %v3377 = vpop.f32.mrb[0].mxu0
      %v3378 = vadd.f32 0.0, %v3377
      %v3379 = vpop.f32.mrb[0].mxu0
      %v3380 = vpop.f32.mrb[0].mxu0
      %v3381 = vadd.f32 0.0, %v3380
      %v3382 = vpop.f32.mrb[0].mxu0
      %3383 = vmatprep.mubr.bf16.mxu0 0
      %3384 = vmatmul.mubr.bf16.gmra.mrb[0].mxu0 %v3226
      %v3385 = vpop.f32.mrb[0].mxu0
      %v3386 = vadd.f32 0.0, %v3385
      %v3387 = vpop.f32.mrb[0].mxu0
      %v3388 = vpop.f32.mrb[0].mxu0
      %v3389 = vadd.f32 0.0, %v3388
      %v3390 = vpop.f32.mrb[0].mxu0
      %3391 = vdwg.mxu0
      %v3392 = vadd.f32 %v3098, %v3266
      %v3393 = vadd.f32 %v3099, %v3269
      %v3394 = vadd.f32 %v3100, %v3274
      %v3395 = vadd.f32 %v3101, %v3277
      %v3396 = vadd.f32 %v3102, %v3282
      %v3397 = vadd.f32 %v3103, %v3285
      %v3398 = vadd.f32 %v3104, %v3290
      %v3399 = vadd.f32 %v3105, %v3293
      %v3400 = vadd.f32 %v3106, %v3298
      %v3401 = vadd.f32 %v3107, %v3301
      %v3402 = vadd.f32 %v3108, %v3306
      %v3403 = vadd.f32 %v3109, %v3309
      %v3404 = vadd.f32 %v3110, %v3314
      %v3405 = vadd.f32 %v3111, %v3317
      %v3406 = vadd.f32 %v3112, %v3322
      %v3407 = vadd.f32 %v3113, %v3325
      %v3408 = vadd.f32 %v3114, %v3330
      %v3409 = vadd.f32 %v3115, %v3333
      %v3410 = vadd.f32 %v3116, %v3338
      %v3411 = vadd.f32 %v3117, %v3341
      %v3412 = vadd.f32 %v3118, %v3346
      %v3413 = vadd.f32 %v3119, %v3349
      %v3414 = vadd.f32 %v3120, %v3354
      %v3415 = vadd.f32 %v3121, %v3357
      %v3416 = vadd.f32 %v3122, %v3362
      %v3417 = vadd.f32 %v3123, %v3365
      %v3418 = vadd.f32 %v3124, %v3370
      %v3419 = vadd.f32 %v3125, %v3373
      %v3420 = vadd.f32 %v3126, %v3378
      %v3421 = vadd.f32 %v3127, %v3381
      %v3422 = vadd.f32 %v3128, %v3386
      %v3423 = vadd.f32 %v3129, %v3389
      %v3424 = vld [vmem:[%s6] sm:$0x1]
      %v3426 = vlaneseq
      %v3427 = vshrl.u32 %v3426, 7
      %v3428 = vsub.s32 0, %v3427
      %v3429 = vrot.slane %v3424, %v3428
      %v3431 = vadd.f32 %v3392, %v3429
      %v3432 = vadd.f32 %v3393, %v3429
      %v3433 = vadd.f32 %v3394, %v3429
      %v3434 = vadd.f32 %v3395, %v3429
      %v3435 = vadd.f32 %v3396, %v3429
      %v3436 = vadd.f32 %v3397, %v3429
      %v3437 = vadd.f32 %v3398, %v3429
      %v3438 = vadd.f32 %v3399, %v3429
      %v3439 = vadd.f32 %v3400, %v3429
      %v3440 = vadd.f32 %v3401, %v3429
      %v3441 = vadd.f32 %v3402, %v3429
      %v3442 = vadd.f32 %v3403, %v3429
      %v3443 = vadd.f32 %v3404, %v3429
      %v3444 = vadd.f32 %v3405, %v3429
      %v3445 = vadd.f32 %v3406, %v3429
      %v3446 = vadd.f32 %v3407, %v3429
      %v3447 = vadd.f32 %v3408, %v3429
      %v3448 = vadd.f32 %v3409, %v3429
      %v3449 = vadd.f32 %v3410, %v3429
      %v3450 = vadd.f32 %v3411, %v3429
      %v3451 = vadd.f32 %v3412, %v3429
      %v3452 = vadd.f32 %v3413, %v3429
      %v3453 = vadd.f32 %v3414, %v3429
      %v3454 = vadd.f32 %v3415, %v3429
      %v3455 = vadd.f32 %v3416, %v3429
      %v3456 = vadd.f32 %v3417, %v3429
      %v3457 = vadd.f32 %v3418, %v3429
      %v3458 = vadd.f32 %v3419, %v3429
      %v3459 = vadd.f32 %v3420, %v3429
      %v3460 = vadd.f32 %v3421, %v3429
      %v3461 = vadd.f32 %v3422, %v3429
      %v3462 = vadd.f32 %v3423, %v3429
      %v3463 = vld [vmem:[%s7] sm:$0xff]
      %v3464 = vld [vmem:[%s7 + $0x8] sm:$0xff]
      %v3465 = vld [vmem:[%s7 + $0x10] sm:$0xff]
      %v3466 = vld [vmem:[%s7 + $0x18] sm:$0xff]
      %v3467 = vld [vmem:[%s7 + $0x20] sm:$0xff]
      %v3468 = vld [vmem:[%s7 + $0x28] sm:$0xff]
      %v3469 = vld [vmem:[%s7 + $0x30] sm:$0xff]
      %v3470 = vld [vmem:[%s7 + $0x38] sm:$0xff]
      %v3471 = vpack.c.bf16 %v3432, %v3431
      %v3472 = vpack.c.bf16 %v3434, %v3433
      %v3473 = vpack.c.bf16 %v3436, %v3435
      %v3474 = vpack.c.bf16 %v3438, %v3437
      %v3475 = vpack.c.bf16 %v3440, %v3439
      %v3476 = vpack.c.bf16 %v3442, %v3441
      %v3477 = vpack.c.bf16 %v3444, %v3443
      %v3478 = vpack.c.bf16 %v3446, %v3445
      %v3479 = vpack.c.bf16 %v3448, %v3447
      %v3480 = vpack.c.bf16 %v3450, %v3449
      %v3481 = vpack.c.bf16 %v3452, %v3451
      %v3482 = vpack.c.bf16 %v3454, %v3453
      %v3483 = vpack.c.bf16 %v3456, %v3455
      %v3484 = vpack.c.bf16 %v3458, %v3457
      %v3485 = vpack.c.bf16 %v3460, %v3459
      %v3486 = vpack.c.bf16 %v3462, %v3461
      %v3495 = vunpack.c.l.b16 %v3463
      %v3496 = vunpack.c.h.b16 %v3463
      %v3497 = vunpack.c.l.b16 %v3464
      %v3498 = vunpack.c.h.b16 %v3464
      %v3499 = vunpack.c.l.b16 %v3465
      %v3500 = vunpack.c.h.b16 %v3465
      %v3501 = vunpack.c.l.b16 %v3466
      %v3502 = vunpack.c.h.b16 %v3466
      %v3503 = vunpack.c.l.b16 %v3467
      %v3504 = vunpack.c.h.b16 %v3467
      %v3505 = vunpack.c.l.b16 %v3468
      %v3506 = vunpack.c.h.b16 %v3468
      %v3507 = vunpack.c.l.b16 %v3469
      %v3508 = vunpack.c.h.b16 %v3469
      %v3509 = vunpack.c.l.b16 %v3470
      %v3510 = vunpack.c.h.b16 %v3470
      %v3511 = vpack.c.b16 %v3497, %v3495
      %v3512 = vpack.c.b16 %v3498, %v3496
      %v3513 = vpack.c.b16 %v3501, %v3499
      %v3514 = vpack.c.b16 %v3502, %v3500
      %v3515 = vpack.c.b16 %v3505, %v3503
      %v3516 = vpack.c.b16 %v3506, %v3504
      %v3517 = vpack.c.b16 %v3509, %v3507
      %v3518 = vpack.c.b16 %v3510, %v3508
      %3527 = vmatprep.subr.bf16.mxu0 0
      %3528 = vmatpush1.bf16.msra.mxu0 %v3471
      %3529 = vmatprep.subr.bf16.mxu0 0
      %3530 = vmatpush1.bf16.msra.mxu0 %v3472
      %3531 = vmatprep.subr.bf16.mxu0 0
      %3532 = vmatpush1.bf16.msra.mxu0 %v3473
      %3533 = vmatprep.subr.bf16.mxu0 0
      %3534 = vmatpush1.bf16.msra.mxu0 %v3474
      %3535 = vmatprep.subr.bf16.mxu0 0
      %3536 = vmatpush1.bf16.msra.mxu0 %v3475
      %3537 = vmatprep.subr.bf16.mxu0 0
      %3538 = vmatpush1.bf16.msra.mxu0 %v3476
      %3539 = vmatprep.subr.bf16.mxu0 0
      %3540 = vmatpush1.bf16.msra.mxu0 %v3477
      %3541 = vmatprep.subr.bf16.mxu0 0
      %3542 = vmatpush1.bf16.msra.mxu0 %v3478
      %3543 = vmatprep.subr.bf16.mxu0 0
      %3544 = vmatpush1.bf16.msra.mxu0 %v3479
      %3545 = vmatprep.subr.bf16.mxu0 0
      %3546 = vmatpush1.bf16.msra.mxu0 %v3480
      %3547 = vmatprep.subr.bf16.mxu0 0
      %3548 = vmatpush1.bf16.msra.mxu0 %v3481
      %3549 = vmatprep.subr.bf16.mxu0 0
      %3550 = vmatpush1.bf16.msra.mxu0 %v3482
      %3551 = vmatprep.subr.bf16.mxu0 0
      %3552 = vmatpush1.bf16.msra.mxu0 %v3483
      %3553 = vmatprep.subr.bf16.mxu0 0
      %3554 = vmatpush1.bf16.msra.mxu0 %v3484
      %3555 = vmatprep.subr.bf16.mxu0 0
      %3556 = vmatpush1.bf16.msra.mxu0 %v3485
      %3557 = vmatprep.subr.bf16.mxu0 0
      %3558 = vmatpush1.bf16.msra.mxu0 %v3486
      %3559 = vmatprep.mubr.bf16.mxu0 %v3512
      %3560 = vmatmul.mubr.bf16.gmra.mrb[0].mxu0 %v3511
      %v3561 = vpop.f32.mrb[0].mxu0
      %v3562 = vadd.f32 0.0, %v3561
      %v3563 = vpop.f32.mrb[0].mxu0
      %v3564 = vpop.f32.mrb[0].mxu0
      %v3565 = vadd.f32 0.0, %v3564
      %v3566 = vpop.f32.mrb[0].mxu0
      %3567 = vmatprep.mubr.bf16.mxu0 %v3514
      %3568 = vmatmul.mubr.bf16.gmra.mrb[0].mxu0 %v3513
      %v3569 = vpop.f32.mrb[0].mxu0
      %v3570 = vadd.f32 0.0, %v3569
      %v3571 = vpop.f32.mrb[0].mxu0
      %v3572 = vpop.f32.mrb[0].mxu0
      %v3573 = vadd.f32 0.0, %v3572
      %v3574 = vpop.f32.mrb[0].mxu0
      %3575 = vmatprep.mubr.bf16.mxu0 %v3516
      %3576 = vmatmul.mubr.bf16.gmra.mrb[0].mxu0 %v3515
      %v3577 = vpop.f32.mrb[0].mxu0
      %v3578 = vadd.f32 0.0, %v3577
      %v3579 = vpop.f32.mrb[0].mxu0
      %v3580 = vpop.f32.mrb[0].mxu0
      %v3581 = vadd.f32 0.0, %v3580
      %v3582 = vpop.f32.mrb[0].mxu0
      %3583 = vmatprep.mubr.bf16.mxu0 %v3518
      %3584 = vmatmul.mubr.bf16.gmra.mrb[0].mxu0 %v3517
      %v3585 = vpop.f32.mrb[0].mxu0
      %v3586 = vadd.f32 0.0, %v3585
      %v3587 = vpop.f32.mrb[0].mxu0
      %v3588 = vpop.f32.mrb[0].mxu0
      %v3589 = vadd.f32 0.0, %v3588
      %v3590 = vpop.f32.mrb[0].mxu0
      %3591 = vdwg.mxu0
      %v3592 = vsel %vm339, %v3562, 0.0
      %v3593 = vsel %vm339, %v3565, 0.0
      %v3594 = vadd.f32 %v3592, %v3593
      %v3595 = vsel %vm339, %v3570, 0.0
      %v3596 = vadd.f32 %v3594, %v3595
      %v3597 = vsel %vm339, %v3573, 0.0
      %v3598 = vadd.f32 %v3596, %v3597
      %v3599 = vsel %vm339, %v3578, 0.0
      %v3600 = vadd.f32 %v3598, %v3599
      %v3601 = vsel %vm339, %v3581, 0.0
      %v3602 = vadd.f32 %v3600, %v3601
      %v3603 = vsel %vm339, %v3586, 0.0
      %v3604 = vadd.f32 %v3602, %v3603
      %v3605 = vsel %vm339, %v3589, 0.0
      %v3606 = vadd.f32 %v3604, %v3605
      %v3607 = vrot.slane %v3606, 4
      %v3608 = vadd.f32 %v3606, %v3607
      %v3609 = vrot.slane %v3608, 2
      %v3610 = vadd.f32 %v3608, %v3609
      %v3611 = vrot.slane %v3610, 1
      %v3612 = vadd.f32 %v3610, %v3611
      %v3613 = vrcp.pop 64.0
      %v3614 = vmul.f32 %v3612, %v3613
      %v3615 = vsub.f32 %v3562, %v3614
      %v3616 = vsub.f32 %v3565, %v3614
      %v3617 = vsub.f32 %v3570, %v3614
      %v3618 = vsub.f32 %v3573, %v3614
      %v3619 = vsub.f32 %v3578, %v3614
      %v3620 = vsub.f32 %v3581, %v3614
      %v3621 = vsub.f32 %v3586, %v3614
      %v3622 = vsub.f32 %v3589, %v3614
      %v3623 = vmul.f32 %v3615, %v3615
      %v3624 = vmul.f32 %v3616, %v3616
      %v3625 = vmul.f32 %v3617, %v3617
      %v3626 = vmul.f32 %v3618, %v3618
      %v3627 = vmul.f32 %v3619, %v3619
      %v3628 = vmul.f32 %v3620, %v3620
      %v3629 = vmul.f32 %v3621, %v3621
      %v3630 = vmul.f32 %v3622, %v3622
      %v3631 = vsel %vm339, %v3623, 0.0
      %v3632 = vsel %vm339, %v3624, 0.0
      %v3633 = vadd.f32 %v3631, %v3632
      %v3634 = vsel %vm339, %v3625, 0.0
      %v3635 = vadd.f32 %v3633, %v3634
      %v3636 = vsel %vm339, %v3626, 0.0
      %v3637 = vadd.f32 %v3635, %v3636
      %v3638 = vsel %vm339, %v3627, 0.0
      %v3639 = vadd.f32 %v3637, %v3638
      %v3640 = vsel %vm339, %v3628, 0.0
      %v3641 = vadd.f32 %v3639, %v3640
      %v3642 = vsel %vm339, %v3629, 0.0
      %v3643 = vadd.f32 %v3641, %v3642
      %v3644 = vsel %vm339, %v3630, 0.0
      %v3645 = vadd.f32 %v3643, %v3644
      %v3646 = vrot.slane %v3645, 4
      %v3647 = vadd.f32 %v3645, %v3646
      %v3648 = vrot.slane %v3647, 2
      %v3649 = vadd.f32 %v3647, %v3648
      %v3650 = vrot.slane %v3649, 1
      %v3651 = vadd.f32 %v3649, %v3650
      %v3652 = vmul.f32 %v3651, %v3613
      %v3653 = vadd.f32 %v3652, 1e-05
      %v3654 = vrsqrt.pop %v3653
      %v3655 = vmul.f32 %v3615, %v3654
      %v3656 = vmul.f32 %v3616, %v3654
      %v3657 = vmul.f32 %v3617, %v3654
      %v3658 = vmul.f32 %v3618, %v3654
      %v3659 = vmul.f32 %v3619, %v3654
      %v3660 = vmul.f32 %v3620, %v3654
      %v3661 = vmul.f32 %v3621, %v3654
      %v3662 = vmul.f32 %v3622, %v3654
      %v3663 = vld [vmem:[%s3] sm:$0x1]
      %v3665 = vlaneseq
      %v3666 = vshrl.u32 %v3665, 7
      %v3667 = vsub.s32 0, %v3666
      %v3668 = vrot.slane %v3663, %v3667
      %v3670 = vmul.f32 %v3655, %v3668
      %v3671 = vmul.f32 %v3656, %v3668
      %v3672 = vmul.f32 %v3657, %v3668
      %v3673 = vmul.f32 %v3658, %v3668
      %v3674 = vmul.f32 %v3659, %v3668
      %v3675 = vmul.f32 %v3660, %v3668
      %v3676 = vmul.f32 %v3661, %v3668
      %v3677 = vmul.f32 %v3662, %v3668
      %v3678 = vld [vmem:[%s4] sm:$0x1]
      %v3680 = vlaneseq
      %v3681 = vshrl.u32 %v3680, 7
      %v3682 = vsub.s32 0, %v3681
      %v3683 = vrot.slane %v3678, %v3682
      %v3685 = vadd.f32 %v3670, %v3683
      %v3686 = vadd.f32 %v3671, %v3683
      %v3687 = vadd.f32 %v3672, %v3683
      %v3688 = vadd.f32 %v3673, %v3683
      %v3689 = vadd.f32 %v3674, %v3683
      %v3690 = vadd.f32 %v3675, %v3683
      %v3691 = vadd.f32 %v3676, %v3683
      %v3692 = vadd.f32 %v3677, %v3683
      %vm3693 = vcmp.ge.f32.partialorder %v3685, 0.0
      %vm3694 = vcmp.ge.f32.partialorder %v3686, 0.0
      %vm3695 = vcmp.ge.f32.partialorder %v3687, 0.0
      %vm3696 = vcmp.ge.f32.partialorder %v3688, 0.0
      %vm3697 = vcmp.ge.f32.partialorder %v3689, 0.0
      %vm3698 = vcmp.ge.f32.partialorder %v3690, 0.0
      %vm3699 = vcmp.ge.f32.partialorder %v3691, 0.0
      %vm3700 = vcmp.ge.f32.partialorder %v3692, 0.0
      %v3701 = vmul.f32 %v3685, 0.2
      %v3702 = vmul.f32 %v3686, 0.2
      %v3703 = vmul.f32 %v3687, 0.2
      %v3704 = vmul.f32 %v3688, 0.2
      %v3705 = vmul.f32 %v3689, 0.2
      %v3706 = vmul.f32 %v3690, 0.2
      %v3707 = vmul.f32 %v3691, 0.2
      %v3708 = vmul.f32 %v3692, 0.2
      %v3709 = vsel %vm3693, %v3685, %v3701
      %v3710 = vsel %vm3694, %v3686, %v3702
      %v3711 = vsel %vm3695, %v3687, %v3703
      %v3712 = vsel %vm3696, %v3688, %v3704
      %v3713 = vsel %vm3697, %v3689, %v3705
      %v3714 = vsel %vm3698, %v3690, %v3706
      %v3715 = vsel %vm3699, %v3691, %v3707
      %v3716 = vsel %vm3700, %v3692, %v3708
      %v3717 = vpack.c.bf16 %v3709, %v3709
      %v3718 = vpack.c.bf16 %v3710, %v3710
      %v3719 = vpack.c.bf16 %v3711, %v3711
      %v3720 = vpack.c.bf16 %v3712, %v3712
      %v3721 = vpack.c.bf16 %v3713, %v3713
      %v3722 = vpack.c.bf16 %v3714, %v3714
      %v3723 = vpack.c.bf16 %v3715, %v3715
      %v3724 = vpack.c.bf16 %v3716, %v3716
      %vm3725 = vcmask 27648
      %3726 = vst.msk [vmem:[%s305] sm:$0xf] %vm3725, %v3717
      %3727 = vst.msk [vmem:[%s305 + $0x4] sm:$0xf] %vm3725, %v3718
      %3728 = vst.msk [vmem:[%s305 + $0x8] sm:$0xf] %vm3725, %v3719
      %3729 = vst.msk [vmem:[%s305 + $0xc] sm:$0xf] %vm3725, %v3720
      %3730 = vst.msk [vmem:[%s305 + $0x10] sm:$0xf] %vm3725, %v3721
      %3731 = vst.msk [vmem:[%s305 + $0x14] sm:$0xf] %vm3725, %v3722
      %3732 = vst.msk [vmem:[%s305 + $0x18] sm:$0xf] %vm3725, %v3723
      %3733 = vst.msk [vmem:[%s305 + $0x1c] sm:$0xf] %vm3725, %v3724
      %p3734 = scmp.lt.s32.totalorder %s19, 1
      %s3735 = scalar_select %p3734, %s19, 1
      %s3736 = smul.addr %s3735, 8
      %s3737 = smul.addr %s3736, 4
      %s3738 = scalar_lea.vmem %s8, %s3737
      // Predicated region
      $region53: #{res_blk_forward.2} parent=51 // pred_check
        %p3739 = pneg %p210
      $region54: #{res_blk_forward.2} parent=51 // pred_check_branch
        %3741 = sbr.rel (%p3739) target = $region56
      $region55: #{res_blk_forward.2} parent=51 // pred_region
        _
      $region56: #{res_blk_forward.2} parent=51 // pred_fallthru
        _
    $region52: #{res_blk_forward.2} parent=5 // pred_fallthru
      _
    %p3742 = scmp.le.s32.totalorder 2, %s14
    // Predicated region
    $region57: #{res_blk_forward.2} parent=5 // pred_check
      %p3743 = pneg %p3742
    $region58: #{res_blk_forward.2} parent=5 // pred_check_branch
      %3745 = sbr.rel (%p3743) target = $region60
    $region59: #{res_blk_forward.2} parent=5 // pred_region
      %s3746 = ssub.s32 %s14, 2
      // Predicated region
      $region61: #{res_blk_forward.2} parent=59 // pred_check
        %p3747 = pneg %p216
      $region62: #{res_blk_forward.2} parent=59 // pred_check_branch
        %3749 = sbr.rel (%p3747) target = $region64
      $region63: #{res_blk_forward.2} parent=59 // pred_region
        %p3750 = scmp.lt.s32.totalorder %s20, 1
        %s3751 = scalar_select %p3750, %s20, 1
        %s3752 = smul.addr %s3751, 8
        %s3753 = smul.addr %s3752, 4
        %s3754 = scalar_lea.vmem %s8, %s3753
      $region64: #{res_blk_forward.2} parent=59 // pred_fallthru
        _
    $region60: #{res_blk_forward.2} parent=5 // pred_fallthru
      _
  $region6: #{res_blk_forward.2} parent=0 // loop_footer
    %s18 = sadd.s32 1, %s14
  $region7: #{res_blk_forward.2} parent=0 // loop_footer_branch
    %13 = sbr.rel target = $region3
  $region8: #{res_blk_forward.2} parent=0 // loop_exit
    _

</llo_original>
